<compile_context>
chip_gen: v7x
topology: tpu7x:2x2x1
jax: 0.10.0
libtpu: 0.0.40
codegen_flags: <defaults>
</compile_context>

<pallas_src>
import jax
import jax.numpy as jnp
from jax.experimental import pallas as pl
from jax.experimental.pallas import tpu as pltpu

# Explicit scoped-VMEM budget: above the 16/32 MiB defaults, below v7x's 64 MiB physical.
_VMEM_LIMIT_BYTES = 48 * 1024 * 1024


def _largest_divisor_at_most(n, cap):
    for c in range(min(cap, n), 0, -1):
        if n % c == 0:
            return c
    return 1


def _pick_vocab_tile(v, cap):
    # Prefer a multiple of 128 (lane / MXU friendly), else a multiple of 8, else full V.
    for tv in range(min(cap, v), 0, -1):
        if v % tv == 0 and tv % 128 == 0:
            return tv
    for tv in range(min(cap, v), 0, -1):
        if v % tv == 0 and tv % 8 == 0:
            return tv
    return v


# ----------------------------------------------------------------------------- stage 1
def rnn_recurrence_kernel(emb_ref, wih_ref, whh_ref, bh_ref,
                          h_out_ref, xproj_ref, h_carry_ref):
    """One time-chunk of the tanh RNN.

    emb_ref   : (tT*Bp, E)  time-major flattened embeddings for this chunk
    wih_ref   : (E, H)      input->hidden weight (pre-transposed)
    whh_ref   : (H, H)      hidden->hidden weight (pre-transposed)
    bh_ref    : (1, H)      b_ih + b_hh
    h_out_ref : (tT, Bp, H) hidden states of this chunk (kernel output block)
    xproj_ref : (tT*Bp, H)  f32 VMEM scratch for the hoisted input projection
    h_carry_ref:(Bp, H)     f32 VMEM scratch carrying h across grid steps
    """
    nb = h_carry_ref.shape[0]     # padded batch (multiple of 8 -> sublane aligned)
    t_chunk = h_out_ref.shape[0]

    @pl.when(pl.program_id(0) == 0)
    def _():
        h_carry_ref[...] = jnp.zeros_like(h_carry_ref)

    # Hoisted input projection: one big MXU matmul for the whole chunk (+ fused bias).
    xproj_ref[...] = (
        jnp.dot(emb_ref[...], wih_ref[...], preferred_element_type=jnp.float32)
        + bh_ref[...])

    whh = whh_ref[...]

    def step(i, h):
        r = pl.multiple_of(i * nb, nb)                       # 8-aligned sublane offset
        pre = xproj_ref[pl.ds(r, nb), :] + jnp.dot(
            h.astype(whh.dtype), whh, preferred_element_type=jnp.float32)
        h_new = jnp.tanh(pre)                                # f32 tanh (v5e-safe)
        h_out_ref[i] = h_new.astype(h_out_ref.dtype)
        return h_new

    h_carry_ref[...] = jax.lax.fori_loop(
        0, t_chunk, step, h_carry_ref[...], unroll=True)


# ----------------------------------------------------------------------------- stage 2
def output_projection_kernel(h_ref, w_ref, b_ref, out_ref):
    """Output Linear, written directly in the permuted (B, V, T) layout.

    h_ref   : (Bp, tT, H)  hidden states (batch-major)
    w_ref   : (tV, H)      output weight tile (torch Linear layout)
    b_ref   : (tV, 1)      output bias tile
    out_ref : (B, tV, tT)  logits tile, time on the lane dim
    """
    w = w_ref[...]
    b = b_ref[...]
    for bi in range(out_ref.shape[0]):        # static loop over the (small) real batch
        h_b = h_ref[bi]                       # (tT, H)
        logits = jax.lax.dot_general(         # (tV, H) x (tT, H)^T -> (tV, tT) on MXU
            w, h_b, dimension_numbers=(((1,), (1,)), ((), ())),
            preferred_element_type=jnp.float32)
        out_ref[bi] = (logits + b).astype(out_ref.dtype)


# ----------------------------------------------------------------------------- wrapper
def lm_rnn_forward(input_ids, params, *, t_chunk_rnn=8, v_tile=256,
                   compute_dtype=jnp.float32):
    """Full LM_RNN forward. input_ids: (B, T) int32. Returns (B, V, T) float32."""
    emb_table = params["emb_table"]                   # (V, E)
    w_ih_t = params["w_ih_t"]                         # (E, H)
    w_hh_t = params["w_hh_t"]                         # (H, H)
    b_h = params["b_ih"] + params["b_hh"]             # (1, H) f32
    w_out = params["w_out"]                           # (V, H) torch Linear layout
    b_out = params["b_out"]                           # (V, 1)

    B, T = input_ids.shape
    V, E = emb_table.shape
    H = w_hh_t.shape[0]
    cdt = jnp.dtype(compute_dtype)                    # bf16 on v6e/v7x for 2x MXU

    # --- glue: embedding gather (data-dependent gather stays in XLA) ---
    # TODO(synk): nn.Embedding gather has no rectangular-BlockSpec Pallas equivalent here.
    emb = jnp.take(emb_table, input_ids, axis=0)      # (B, T, E)

    # Sublane-align the batch so time-major flattening is layout-trivial.
    Bp = ((B + 7) // 8) * 8
    if Bp != B:
        emb = jnp.pad(emb, ((0, Bp - B), (0, 0), (0, 0)))
    emb2d = jnp.transpose(emb, (1, 0, 2)).reshape(T * Bp, E).astype(cdt)  # row = t*Bp + b

    # ---------------- stage 1: recurrence over time chunks ----------------
    tT = _largest_divisor_at_most(T, t_chunk_rnn)
    rnn_cost = pl.CostEstimate(
        flops=2 * T * Bp * (E * H + H * H),
        transcendentals=T * Bp * H,
        bytes_accessed=4 * (T * Bp * E + T * Bp * H + E * H + H * H + 2 * H))

    h_all = pl.pallas_call(
        rnn_recurrence_kernel,
        out_shape=jax.ShapeDtypeStruct((T, Bp, H), cdt),
        grid=(T // tT,),
        in_specs=[
            pl.BlockSpec((tT * Bp, E), lambda t: (t, 0)),   # pipelined emb chunk
            pl.BlockSpec((E, H), lambda t: (0, 0)),
            pl.BlockSpec((H, H), lambda t: (0, 0)),
            pl.BlockSpec((1, H), lambda t: (0, 0)),
        ],
        out_specs=pl.BlockSpec((tT, Bp, H), lambda t: (t, 0, 0)),
        scratch_shapes=[
            pltpu.VMEM((tT * Bp, H), jnp.float32),          # hoisted xproj staging
            pltpu.VMEM((Bp, H), jnp.float32),               # hidden-state carry
        ],
        compiler_params=pltpu.CompilerParams(
            dimension_semantics=("arbitrary",),             # sequential carried loop
            vmem_limit_bytes=_VMEM_LIMIT_BYTES),
        cost_estimate=rnn_cost,
    )(emb2d, w_ih_t.astype(cdt), w_hh_t.astype(cdt), b_h)

    # Small relayout (hidden states only, V/H times smaller than the logits) so the
    # projection kernel can use clean leading-dim batch indexing.
    h_bt = jnp.transpose(h_all, (1, 0, 2))                  # (Bp, T, H)

    # ---------------- stage 2: V-tiled output projection -> (B, V, T) ----------------
    tV = _pick_vocab_tile(V, v_tile)
    tT2 = 128 if (T % 128 == 0) else T                      # lane-dense out when possible
    proj_cost = pl.CostEstimate(
        flops=2 * B * V * T * H,
        transcendentals=0,
        bytes_accessed=4 * (Bp * T * H + V * H + V + B * V * T))

    out = pl.pallas_call(
        output_projection_kernel,
        out_shape=jax.ShapeDtypeStruct((B, V, T), jnp.float32),
        grid=(V // tV, T // tT2),
        in_specs=[
            pl.BlockSpec((Bp, tT2, H), lambda v, t: (0, t, 0)),
            pl.BlockSpec((tV, H), lambda v, t: (v, 0)),
            pl.BlockSpec((tV, 1), lambda v, t: (v, 0)),
        ],
        out_specs=pl.BlockSpec((B, tV, tT2), lambda v, t: (0, v, t)),
        compiler_params=pltpu.CompilerParams(
            dimension_semantics=("parallel", "parallel"),   # megacore-shardable GEMM
            vmem_limit_bytes=_VMEM_LIMIT_BYTES),
        cost_estimate=proj_cost,
    )(h_bt, w_out.astype(cdt), b_out)

    return out                                              # (B, V, T) == permute(0,2,1)


# ----------------------------------------------------------------------------- params / reference
def init_params(key, emb_size, hidden_size, output_size, pad_index=0):
    ks = jax.random.split(key, 7)
    scale = 1.0 / jnp.sqrt(jnp.float32(hidden_size))
    u = lambda k, shape: jax.random.uniform(k, shape, jnp.float32, -scale, scale)
    emb_table = jax.random.normal(ks[0], (output_size, emb_size), jnp.float32) * 0.1
    emb_table = emb_table.at[pad_index].set(0.0)            # padding_idx row is zero
    return {
        "emb_table": emb_table,
        "w_ih_t": u(ks[1], (emb_size, hidden_size)),        # pre-transposed: x @ W
        "w_hh_t": u(ks[2], (hidden_size, hidden_size)),     # pre-transposed: h @ W
        "b_ih":   u(ks[3], (1, hidden_size)),
        "b_hh":   u(ks[4], (1, hidden_size)),
        "w_out":  u(ks[5], (output_size, hidden_size)),     # torch nn.Linear layout (V, H)
        "b_out":  u(ks[6], (output_size, 1)),
    }


def reference_forward(input_ids, params):
    """Pure-JAX reference of the PyTorch semantics."""
    emb = jnp.take(params["emb_table"], input_ids, axis=0)              # (B, T, E)
    b_h = params["b_ih"] + params["b_hh"]
    B = input_ids.shape[0]
    H = params["w_hh_t"].shape[0]

    def step(h, x_t):
        h = jnp.tanh(x_t @ params["w_ih_t"] + h @ params["w_hh_t"] + b_h)
        return h, h

    _, hs = jax.lax.scan(step, jnp.zeros((B, H), jnp.float32),
                         jnp.transpose(emb, (1, 0, 2)))                 # (T, B, H)
    rnn_out = jnp.transpose(hs, (1, 0, 2))                              # (B, T, H)
    logits = rnn_out @ params["w_out"].T + params["b_out"][:, 0]        # (B, T, V)
    return jnp.transpose(logits, (0, 2, 1))                             # (B, V, T)


if __name__ == "__main__":
    B, T = 8, 32
    emb_size, hidden_size, output_size = 128, 128, 512      # H multiple of 128 (MXU-friendly)
    pad_index = 0

    key = jax.random.PRNGKey(0)
    k_param, k_ids = jax.random.split(key)
    params = init_params(k_param, emb_size, hidden_size, output_size, pad_index)
    input_ids = jax.random.randint(k_ids, (B, T), 0, output_size, dtype=jnp.int32)

    fwd = jax.jit(lm_rnn_forward,
                  static_argnames=("t_chunk_rnn", "v_tile", "compute_dtype"))
    out = jax.block_until_ready(fwd(input_ids, params))
    ref = jax.block_until_ready(reference_forward(input_ids, params))

    assert out.shape == (B, output_size, T), out.shape
    # Tolerance covers possible MXU-vs-XLA default f32 matmul precision differences.
    assert jnp.allclose(out, ref, atol=2e-2, rtol=2e-2), \
        float(jnp.max(jnp.abs(out - ref)))

    print("KERNEL_OK")
</pallas_src>

<mosaic_0001>
module attributes {stable_mosaic.version = 11 : i64} {
  func.func @output_projection_kernel(%arg0: i32, %arg1: i32, %arg2: memref<8x32x128xf32, #tpu.memory_space<vmem>>, %arg3: memref<256x128xf32, #tpu.memory_space<vmem>>, %arg4: memref<256x1xf32, #tpu.memory_space<vmem>>, %arg5: memref<8x256x32xf32, #tpu.memory_space<vmem>>) attributes {dimension_semantics = [#tpu.dimension_semantics<parallel>, #tpu.dimension_semantics<parallel>], iteration_bounds = array<i64: 2, 1>, scalar_prefetch = 0 : i64, scratch_operands = 0 : i64, tpu.core_type = #tpu.core_type<tc>, window_params = [{transform_indices = @transform_0, window_bounds = array<i64: 8, 32, 128>}, {transform_indices = @transform_1, window_bounds = array<i64: 256, 128>}, {transform_indices = @transform_2, window_bounds = array<i64: 256, 1>}, {transform_indices = @transform_3, window_bounds = array<i64: 8, 256, 32>}]} {
    %c0 = arith.constant 0 : index
    %c0_0 = arith.constant 0 : index
    %0 = vector.load %arg3[%c0, %c0_0] : memref<256x128xf32, #tpu.memory_space<vmem>>, vector<256x128xf32>
    %c0_1 = arith.constant 0 : index
    %c0_2 = arith.constant 0 : index
    %1 = vector.load %arg4[%c0_1, %c0_2] : memref<256x1xf32, #tpu.memory_space<vmem>>, vector<256x1xf32>
    %c0_3 = arith.constant 0 : index
    %c0_4 = arith.constant 0 : index
    %c0_5 = arith.constant 0 : index
    %2 = vector.load %arg2[%c0_3, %c0_4, %c0_5] : memref<8x32x128xf32, #tpu.memory_space<vmem>>, vector<1x32x128xf32>
    %3 = vector.shape_cast %2 : vector<1x32x128xf32> to vector<32x128xf32>
    %cst = arith.constant dense<0.000000e+00> : vector<256x32xf32>
    %4 = tpu.matmul %0, %3, %cst {dimension_numbers = #tpu.dot_dimension_numbers<[1], [1], [0], [0], [0, 0, 1, 0], [], []>} : vector<256x128xf32>, vector<32x128xf32>, vector<256x32xf32> -> vector<256x32xf32>
    %5 = vector.broadcast %1 : vector<256x1xf32> to vector<256x32xf32>
    %6 = arith.addf %4, %5 : vector<256x32xf32>
    %c0_6 = arith.constant 0 : index
    %c0_7 = arith.constant 0 : index
    %c0_8 = arith.constant 0 : index
    %7 = vector.load %arg5[%c0_6, %c0_7, %c0_8] : memref<8x256x32xf32, #tpu.memory_space<vmem>>, vector<1x256x32xf32>
    %8 = vector.shape_cast %7 : vector<1x256x32xf32> to vector<256x32xf32>
    %9 = vector.shape_cast %6 : vector<256x32xf32> to vector<1x256x32xf32>
    tpu.vector_store %arg5[%c0_6, %c0_7, %c0_8], %9 {strides = array<i32>} : memref<8x256x32xf32, #tpu.memory_space<vmem>>, vector<1x256x32xf32>,
    %c1 = arith.constant 1 : index
    %c0_9 = arith.constant 0 : index
    %c0_10 = arith.constant 0 : index
    %10 = vector.load %arg2[%c1, %c0_9, %c0_10] : memref<8x32x128xf32, #tpu.memory_space<vmem>>, vector<1x32x128xf32>
    %11 = vector.shape_cast %10 : vector<1x32x128xf32> to vector<32x128xf32>
    %cst_11 = arith.constant dense<0.000000e+00> : vector<256x32xf32>
    %12 = tpu.matmul %0, %11, %cst_11 {dimension_numbers = #tpu.dot_dimension_numbers<[1], [1], [0], [0], [0, 0, 1, 0], [], []>} : vector<256x128xf32>, vector<32x128xf32>, vector<256x32xf32> -> vector<256x32xf32>
    %13 = vector.broadcast %1 : vector<256x1xf32> to vector<256x32xf32>
    %14 = arith.addf %12, %13 : vector<256x32xf32>
    %c1_12 = arith.constant 1 : index
    %c0_13 = arith.constant 0 : index
    %c0_14 = arith.constant 0 : index
    %15 = vector.load %arg5[%c1_12, %c0_13, %c0_14] : memref<8x256x32xf32, #tpu.memory_space<vmem>>, vector<1x256x32xf32>
    %16 = vector.shape_cast %15 : vector<1x256x32xf32> to vector<256x32xf32>
    %17 = vector.shape_cast %14 : vector<256x32xf32> to vector<1x256x32xf32>
    tpu.vector_store %arg5[%c1_12, %c0_13, %c0_14], %17 {strides = array<i32>} : memref<8x256x32xf32, #tpu.memory_space<vmem>>, vector<1x256x32xf32>,
    %c2 = arith.constant 2 : index
    %c0_15 = arith.constant 0 : index
    %c0_16 = arith.constant 0 : index
    %18 = vector.load %arg2[%c2, %c0_15, %c0_16] : memref<8x32x128xf32, #tpu.memory_space<vmem>>, vector<1x32x128xf32>
    %19 = vector.shape_cast %18 : vector<1x32x128xf32> to vector<32x128xf32>
    %cst_17 = arith.constant dense<0.000000e+00> : vector<256x32xf32>
    %20 = tpu.matmul %0, %19, %cst_17 {dimension_numbers = #tpu.dot_dimension_numbers<[1], [1], [0], [0], [0, 0, 1, 0], [], []>} : vector<256x128xf32>, vector<32x128xf32>, vector<256x32xf32> -> vector<256x32xf32>
    %21 = vector.broadcast %1 : vector<256x1xf32> to vector<256x32xf32>
    %22 = arith.addf %20, %21 : vector<256x32xf32>
    %c2_18 = arith.constant 2 : index
    %c0_19 = arith.constant 0 : index
    %c0_20 = arith.constant 0 : index
    %23 = vector.load %arg5[%c2_18, %c0_19, %c0_20] : memref<8x256x32xf32, #tpu.memory_space<vmem>>, vector<1x256x32xf32>
    %24 = vector.shape_cast %23 : vector<1x256x32xf32> to vector<256x32xf32>
    %25 = vector.shape_cast %22 : vector<256x32xf32> to vector<1x256x32xf32>
    tpu.vector_store %arg5[%c2_18, %c0_19, %c0_20], %25 {strides = array<i32>} : memref<8x256x32xf32, #tpu.memory_space<vmem>>, vector<1x256x32xf32>,
    %c3 = arith.constant 3 : index
    %c0_21 = arith.constant 0 : index
    %c0_22 = arith.constant 0 : index
    %26 = vector.load %arg2[%c3, %c0_21, %c0_22] : memref<8x32x128xf32, #tpu.memory_space<vmem>>, vector<1x32x128xf32>
    %27 = vector.shape_cast %26 : vector<1x32x128xf32> to vector<32x128xf32>
    %cst_23 = arith.constant dense<0.000000e+00> : vector<256x32xf32>
    %28 = tpu.matmul %0, %27, %cst_23 {dimension_numbers = #tpu.dot_dimension_numbers<[1], [1], [0], [0], [0, 0, 1, 0], [], []>} : vector<256x128xf32>, vector<32x128xf32>, vector<256x32xf32> -> vector<256x32xf32>
    %29 = vector.broadcast %1 : vector<256x1xf32> to vector<256x32xf32>
    %30 = arith.addf %28, %29 : vector<256x32xf32>
    %c3_24 = arith.constant 3 : index
    %c0_25 = arith.constant 0 : index
    %c0_26 = arith.constant 0 : index
    %31 = vector.load %arg5[%c3_24, %c0_25, %c0_26] : memref<8x256x32xf32, #tpu.memory_space<vmem>>, vector<1x256x32xf32>
    %32 = vector.shape_cast %31 : vector<1x256x32xf32> to vector<256x32xf32>
    %33 = vector.shape_cast %30 : vector<256x32xf32> to vector<1x256x32xf32>
    tpu.vector_store %arg5[%c3_24, %c0_25, %c0_26], %33 {strides = array<i32>} : memref<8x256x32xf32, #tpu.memory_space<vmem>>, vector<1x256x32xf32>,
    %c4 = arith.constant 4 : index
    %c0_27 = arith.constant 0 : index
    %c0_28 = arith.constant 0 : index
    %34 = vector.load %arg2[%c4, %c0_27, %c0_28] : memref<8x32x128xf32, #tpu.memory_space<vmem>>, vector<1x32x128xf32>
    %35 = vector.shape_cast %34 : vector<1x32x128xf32> to vector<32x128xf32>
    %cst_29 = arith.constant dense<0.000000e+00> : vector<256x32xf32>
    %36 = tpu.matmul %0, %35, %cst_29 {dimension_numbers = #tpu.dot_dimension_numbers<[1], [1], [0], [0], [0, 0, 1, 0], [], []>} : vector<256x128xf32>, vector<32x128xf32>, vector<256x32xf32> -> vector<256x32xf32>
    %37 = vector.broadcast %1 : vector<256x1xf32> to vector<256x32xf32>
    %38 = arith.addf %36, %37 : vector<256x32xf32>
    %c4_30 = arith.constant 4 : index
    %c0_31 = arith.constant 0 : index
    %c0_32 = arith.constant 0 : index
    %39 = vector.load %arg5[%c4_30, %c0_31, %c0_32] : memref<8x256x32xf32, #tpu.memory_space<vmem>>, vector<1x256x32xf32>
    %40 = vector.shape_cast %39 : vector<1x256x32xf32> to vector<256x32xf32>
    %41 = vector.shape_cast %38 : vector<256x32xf32> to vector<1x256x32xf32>
    tpu.vector_store %arg5[%c4_30, %c0_31, %c0_32], %41 {strides = array<i32>} : memref<8x256x32xf32, #tpu.memory_space<vmem>>, vector<1x256x32xf32>,
    %c5 = arith.constant 5 : index
    %c0_33 = arith.constant 0 : index
    %c0_34 = arith.constant 0 : index
    %42 = vector.load %arg2[%c5, %c0_33, %c0_34] : memref<8x32x128xf32, #tpu.memory_space<vmem>>, vector<1x32x128xf32>
    %43 = vector.shape_cast %42 : vector<1x32x128xf32> to vector<32x128xf32>
    %cst_35 = arith.constant dense<0.000000e+00> : vector<256x32xf32>
    %44 = tpu.matmul %0, %43, %cst_35 {dimension_numbers = #tpu.dot_dimension_numbers<[1], [1], [0], [0], [0, 0, 1, 0], [], []>} : vector<256x128xf32>, vector<32x128xf32>, vector<256x32xf32> -> vector<256x32xf32>
    %45 = vector.broadcast %1 : vector<256x1xf32> to vector<256x32xf32>
    %46 = arith.addf %44, %45 : vector<256x32xf32>
    %c5_36 = arith.constant 5 : index
    %c0_37 = arith.constant 0 : index
    %c0_38 = arith.constant 0 : index
    %47 = vector.load %arg5[%c5_36, %c0_37, %c0_38] : memref<8x256x32xf32, #tpu.memory_space<vmem>>, vector<1x256x32xf32>
    %48 = vector.shape_cast %47 : vector<1x256x32xf32> to vector<256x32xf32>
    %49 = vector.shape_cast %46 : vector<256x32xf32> to vector<1x256x32xf32>
    tpu.vector_store %arg5[%c5_36, %c0_37, %c0_38], %49 {strides = array<i32>} : memref<8x256x32xf32, #tpu.memory_space<vmem>>, vector<1x256x32xf32>,
    %c6 = arith.constant 6 : index
    %c0_39 = arith.constant 0 : index
    %c0_40 = arith.constant 0 : index
    %50 = vector.load %arg2[%c6, %c0_39, %c0_40] : memref<8x32x128xf32, #tpu.memory_space<vmem>>, vector<1x32x128xf32>
    %51 = vector.shape_cast %50 : vector<1x32x128xf32> to vector<32x128xf32>
    %cst_41 = arith.constant dense<0.000000e+00> : vector<256x32xf32>
    %52 = tpu.matmul %0, %51, %cst_41 {dimension_numbers = #tpu.dot_dimension_numbers<[1], [1], [0], [0], [0, 0, 1, 0], [], []>} : vector<256x128xf32>, vector<32x128xf32>, vector<256x32xf32> -> vector<256x32xf32>
    %53 = vector.broadcast %1 : vector<256x1xf32> to vector<256x32xf32>
    %54 = arith.addf %52, %53 : vector<256x32xf32>
    %c6_42 = arith.constant 6 : index
    %c0_43 = arith.constant 0 : index
    %c0_44 = arith.constant 0 : index
    %55 = vector.load %arg5[%c6_42, %c0_43, %c0_44] : memref<8x256x32xf32, #tpu.memory_space<vmem>>, vector<1x256x32xf32>
    %56 = vector.shape_cast %55 : vector<1x256x32xf32> to vector<256x32xf32>
    %57 = vector.shape_cast %54 : vector<256x32xf32> to vector<1x256x32xf32>
    tpu.vector_store %arg5[%c6_42, %c0_43, %c0_44], %57 {strides = array<i32>} : memref<8x256x32xf32, #tpu.memory_space<vmem>>, vector<1x256x32xf32>,
    %c7 = arith.constant 7 : index
    %c0_45 = arith.constant 0 : index
    %c0_46 = arith.constant 0 : index
    %58 = vector.load %arg2[%c7, %c0_45, %c0_46] : memref<8x32x128xf32, #tpu.memory_space<vmem>>, vector<1x32x128xf32>
    %59 = vector.shape_cast %58 : vector<1x32x128xf32> to vector<32x128xf32>
    %cst_47 = arith.constant dense<0.000000e+00> : vector<256x32xf32>
    %60 = tpu.matmul %0, %59, %cst_47 {dimension_numbers = #tpu.dot_dimension_numbers<[1], [1], [0], [0], [0, 0, 1, 0], [], []>} : vector<256x128xf32>, vector<32x128xf32>, vector<256x32xf32> -> vector<256x32xf32>
    %61 = vector.broadcast %1 : vector<256x1xf32> to vector<256x32xf32>
    %62 = arith.addf %60, %61 : vector<256x32xf32>
    %c7_48 = arith.constant 7 : index
    %c0_49 = arith.constant 0 : index
    %c0_50 = arith.constant 0 : index
    %63 = vector.load %arg5[%c7_48, %c0_49, %c0_50] : memref<8x256x32xf32, #tpu.memory_space<vmem>>, vector<1x256x32xf32>
    %64 = vector.shape_cast %63 : vector<1x256x32xf32> to vector<256x32xf32>
    %65 = vector.shape_cast %62 : vector<256x32xf32> to vector<1x256x32xf32>
    tpu.vector_store %arg5[%c7_48, %c0_49, %c0_50], %65 {strides = array<i32>} : memref<8x256x32xf32, #tpu.memory_space<vmem>>, vector<1x256x32xf32>,
    return
  }
  func.func @transform_0(%arg0: i32, %arg1: i32) -> (i32, i32, i32) {
    %c0_i32 = arith.constant 0 : i32
    %c0_i32_0 = arith.constant 0 : i32
    %c0_i32_1 = arith.constant 0 : i32
    return %c0_i32, %arg1, %c0_i32_0 : i32, i32, i32
  }
  func.func @transform_1(%arg0: i32, %arg1: i32) -> (i32, i32) {
    %c0_i32 = arith.constant 0 : i32
    %c0_i32_0 = arith.constant 0 : i32
    return %arg0, %c0_i32 : i32, i32
  }
  func.func @transform_2(%arg0: i32, %arg1: i32) -> (i32, i32) {
    %c0_i32 = arith.constant 0 : i32
    %c0_i32_0 = arith.constant 0 : i32
    return %arg0, %c0_i32 : i32, i32
  }
  func.func @transform_3(%arg0: i32, %arg1: i32) -> (i32, i32, i32) {
    %c0_i32 = arith.constant 0 : i32
    %c0_i32_0 = arith.constant 0 : i32
    return %c0_i32, %arg0, %arg1 : i32, i32, i32
  }
}

module attributes {stable_mosaic.version = 11 : i64} {
  func.func @rnn_recurrence_kernel(%arg0: i32, %arg1: memref<64x128xf32, #tpu.memory_space<vmem>>, %arg2: memref<128x128xf32, #tpu.memory_space<vmem>>, %arg3: memref<128x128xf32, #tpu.memory_space<vmem>>, %arg4: memref<1x128xf32, #tpu.memory_space<vmem>>, %arg5: memref<8x8x128xf32, #tpu.memory_space<vmem>>, %arg6: memref<64x128xf32, #tpu.memory_space<vmem>>, %arg7: memref<8x128xf32, #tpu.memory_space<vmem>>) attributes {dimension_semantics = [#tpu.dimension_semantics<arbitrary>], iteration_bounds = array<i64: 4>, scalar_prefetch = 0 : i64, scratch_operands = 2 : i64, tpu.core_type = #tpu.core_type<tc>, window_params = [{transform_indices = @transform_0, window_bounds = array<i64: 64, 128>}, {pipeline_mode = #tpu.pipeline_mode<synchronous>, transform_indices = @transform_1, window_bounds = array<i64: 128, 128>}, {pipeline_mode = #tpu.pipeline_mode<synchronous>, transform_indices = @transform_2, window_bounds = array<i64: 128, 128>}, {pipeline_mode = #tpu.pipeline_mode<synchronous>, transform_indices = @transform_3, window_bounds = array<i64: 1, 128>}, {transform_indices = @transform_4, window_bounds = array<i64: 8, 8, 128>}]} {
    %c0_i32 = arith.constant 0 : i32
    %0 = arith.cmpi eq, %arg0, %c0_i32 : i32
    %1 = arith.extui %0 : i1 to i32
    %c0_i32_0 = arith.constant 0 : i32
    %2 = arith.cmpi ne, %1, %c0_i32_0 : i32
    scf.if %2 {
      %cst_55 = arith.constant 0.000000e+00 : f32
      %101 = vector.broadcast %cst_55 : f32 to vector<8x128xf32>
      %c0_56 = arith.constant 0 : index
      %c0_57 = arith.constant 0 : index
      %102 = vector.load %arg7[%c0_56, %c0_57] : memref<8x128xf32, #tpu.memory_space<vmem>>, vector<8x128xf32>
      tpu.vector_store %arg7[%c0_56, %c0_57], %101 {strides = array<i32>} : memref<8x128xf32, #tpu.memory_space<vmem>>, vector<8x128xf32>,
    } else {
    }
    %c0 = arith.constant 0 : index
    %c0_1 = arith.constant 0 : index
    %3 = vector.load %arg1[%c0, %c0_1] : memref<64x128xf32, #tpu.memory_space<vmem>>, vector<64x128xf32>
    %c0_2 = arith.constant 0 : index
    %c0_3 = arith.constant 0 : index
    %4 = vector.load %arg2[%c0_2, %c0_3] : memref<128x128xf32, #tpu.memory_space<vmem>>, vector<128x128xf32>
    %cst = arith.constant dense<0.000000e+00> : vector<64x128xf32>
    %5 = tpu.matmul %3, %4, %cst {dimension_numbers = #tpu.dot_dimension_numbers<[1], [0], [0], [1], [0, 0, 1, 1], [], []>} : vector<64x128xf32>, vector<128x128xf32>, vector<64x128xf32> -> vector<64x128xf32>
    %c0_4 = arith.constant 0 : index
    %c0_5 = arith.constant 0 : index
    %6 = vector.load %arg4[%c0_4, %c0_5] : memref<1x128xf32, #tpu.memory_space<vmem>>, vector<1x128xf32>
    %7 = vector.broadcast %6 : vector<1x128xf32> to vector<64x128xf32>
    %8 = arith.addf %5, %7 : vector<64x128xf32>
    %c0_6 = arith.constant 0 : index
    %c0_7 = arith.constant 0 : index
    %9 = vector.load %arg6[%c0_6, %c0_7] : memref<64x128xf32, #tpu.memory_space<vmem>>, vector<64x128xf32>
    tpu.vector_store %arg6[%c0_6, %c0_7], %8 {strides = array<i32>} : memref<64x128xf32, #tpu.memory_space<vmem>>, vector<64x128xf32>,
    %c0_8 = arith.constant 0 : index
    %c0_9 = arith.constant 0 : index
    %10 = vector.load %arg3[%c0_8, %c0_9] : memref<128x128xf32, #tpu.memory_space<vmem>>, vector<128x128xf32>
    %c0_10 = arith.constant 0 : index
    %c0_11 = arith.constant 0 : index
    %11 = vector.load %arg7[%c0_10, %c0_11] : memref<8x128xf32, #tpu.memory_space<vmem>>, vector<8x128xf32>
    %c0_i32_12 = arith.constant 0 : i32
    %c8_i32 = arith.constant 8 : i32
    %12 = arith.muli %c0_i32_12, %c8_i32 : i32
    %13 = tpu.assume_multiple %12, 8 : i32
    %14 = arith.index_cast %13 : i32 to index
    %c0_13 = arith.constant 0 : index
    %15 = vector.load %arg6[%14, %c0_13] : memref<64x128xf32, #tpu.memory_space<vmem>>, vector<8x128xf32>
    %cst_14 = arith.constant dense<0.000000e+00> : vector<8x128xf32>
    %16 = tpu.matmul %11, %10, %cst_14 {dimension_numbers = #tpu.dot_dimension_numbers<[1], [0], [0], [1], [0, 0, 1, 1], [], []>} : vector<8x128xf32>, vector<128x128xf32>, vector<8x128xf32> -> vector<8x128xf32>
    %17 = arith.addf %15, %16 : vector<8x128xf32>
    %18 = math.tanh %17 : vector<8x128xf32>
    %19 = arith.index_cast %c0_i32_12 : i32 to index
    %c0_15 = arith.constant 0 : index
    %c0_16 = arith.constant 0 : index
    %20 = vector.load %arg5[%19, %c0_15, %c0_16] : memref<8x8x128xf32, #tpu.memory_space<vmem>>, vector<1x8x128xf32>
    %21 = vector.shape_cast %20 : vector<1x8x128xf32> to vector<8x128xf32>
    %22 = vector.shape_cast %18 : vector<8x128xf32> to vector<1x8x128xf32>
    tpu.vector_store %arg5[%19, %c0_15, %c0_16], %22 {strides = array<i32>} : memref<8x8x128xf32, #tpu.memory_space<vmem>>, vector<1x8x128xf32>,
    %c1_i32 = arith.constant 1 : i32
    %c8_i32_17 = arith.constant 8 : i32
    %23 = arith.muli %c1_i32, %c8_i32_17 : i32
    %24 = tpu.assume_multiple %23, 8 : i32
    %25 = arith.index_cast %24 : i32 to index
    %c0_18 = arith.constant 0 : index
    %26 = vector.load %arg6[%25, %c0_18] : memref<64x128xf32, #tpu.memory_space<vmem>>, vector<8x128xf32>
    %cst_19 = arith.constant dense<0.000000e+00> : vector<8x128xf32>
    %27 = tpu.matmul %18, %10, %cst_19 {dimension_numbers = #tpu.dot_dimension_numbers<[1], [0], [0], [1], [0, 0, 1, 1], [], []>} : vector<8x128xf32>, vector<128x128xf32>, vector<8x128xf32> -> vector<8x128xf32>
    %28 = arith.addf %26, %27 : vector<8x128xf32>
    %29 = math.tanh %28 : vector<8x128xf32>
    %30 = arith.index_cast %c1_i32 : i32 to index
    %c0_20 = arith.constant 0 : index
    %c0_21 = arith.constant 0 : index
    %31 = vector.load %arg5[%30, %c0_20, %c0_21] : memref<8x8x128xf32, #tpu.memory_space<vmem>>, vector<1x8x128xf32>
    %32 = vector.shape_cast %31 : vector<1x8x128xf32> to vector<8x128xf32>
    %33 = vector.shape_cast %29 : vector<8x128xf32> to vector<1x8x128xf32>
    tpu.vector_store %arg5[%30, %c0_20, %c0_21], %33 {strides = array<i32>} : memref<8x8x128xf32, #tpu.memory_space<vmem>>, vector<1x8x128xf32>,
    %c2_i32 = arith.constant 2 : i32
    %c8_i32_22 = arith.constant 8 : i32
    %34 = arith.muli %c2_i32, %c8_i32_22 : i32
    %35 = tpu.assume_multiple %34, 8 : i32
    %36 = arith.index_cast %35 : i32 to index
    %c0_23 = arith.constant 0 : index
    %37 = vector.load %arg6[%36, %c0_23] : memref<64x128xf32, #tpu.memory_space<vmem>>, vector<8x128xf32>
    %cst_24 = arith.constant dense<0.000000e+00> : vector<8x128xf32>
    %38 = tpu.matmul %29, %10, %cst_24 {dimension_numbers = #tpu.dot_dimension_numbers<[1], [0], [0], [1], [0, 0, 1, 1], [], []>} : vector<8x128xf32>, vector<128x128xf32>, vector<8x128xf32> -> vector<8x128xf32>
    %39 = arith.addf %37, %38 : vector<8x128xf32>
    %40 = math.tanh %39 : vector<8x128xf32>
    %41 = arith.index_cast %c2_i32 : i32 to index
    %c0_25 = arith.constant 0 : index
    %c0_26 = arith.constant 0 : index
    %42 = vector.load %arg5[%41, %c0_25, %c0_26] : memref<8x8x128xf32, #tpu.memory_space<vmem>>, vector<1x8x128xf32>
    %43 = vector.shape_cast %42 : vector<1x8x128xf32> to vector<8x128xf32>
    %44 = vector.shape_cast %40 : vector<8x128xf32> to vector<1x8x128xf32>
    tpu.vector_store %arg5[%41, %c0_25, %c0_26], %44 {strides = array<i32>} : memref<8x8x128xf32, #tpu.memory_space<vmem>>, vector<1x8x128xf32>,
    %c3_i32 = arith.constant 3 : i32
    %c8_i32_27 = arith.constant 8 : i32
    %45 = arith.muli %c3_i32, %c8_i32_27 : i32
    %46 = tpu.assume_multiple %45, 8 : i32
    %47 = arith.index_cast %46 : i32 to index
    %c0_28 = arith.constant 0 : index
    %48 = vector.load %arg6[%47, %c0_28] : memref<64x128xf32, #tpu.memory_space<vmem>>, vector<8x128xf32>
    %cst_29 = arith.constant dense<0.000000e+00> : vector<8x128xf32>
    %49 = tpu.matmul %40, %10, %cst_29 {dimension_numbers = #tpu.dot_dimension_numbers<[1], [0], [0], [1], [0, 0, 1, 1], [], []>} : vector<8x128xf32>, vector<128x128xf32>, vector<8x128xf32> -> vector<8x128xf32>
    %50 = arith.addf %48, %49 : vector<8x128xf32>
    %51 = math.tanh %50 : vector<8x128xf32>
    %52 = arith.index_cast %c3_i32 : i32 to index
    %c0_30 = arith.constant 0 : index
    %c0_31 = arith.constant 0 : index
    %53 = vector.load %arg5[%52, %c0_30, %c0_31] : memref<8x8x128xf32, #tpu.memory_space<vmem>>, vector<1x8x128xf32>
    %54 = vector.shape_cast %53 : vector<1x8x128xf32> to vector<8x128xf32>
    %55 = vector.shape_cast %51 : vector<8x128xf32> to vector<1x8x128xf32>
    tpu.vector_store %arg5[%52, %c0_30, %c0_31], %55 {strides = array<i32>} : memref<8x8x128xf32, #tpu.memory_space<vmem>>, vector<1x8x128xf32>,
    %c4_i32 = arith.constant 4 : i32
    %c8_i32_32 = arith.constant 8 : i32
    %56 = arith.muli %c4_i32, %c8_i32_32 : i32
    %57 = tpu.assume_multiple %56, 8 : i32
    %58 = arith.index_cast %57 : i32 to index
    %c0_33 = arith.constant 0 : index
    %59 = vector.load %arg6[%58, %c0_33] : memref<64x128xf32, #tpu.memory_space<vmem>>, vector<8x128xf32>
    %cst_34 = arith.constant dense<0.000000e+00> : vector<8x128xf32>
    %60 = tpu.matmul %51, %10, %cst_34 {dimension_numbers = #tpu.dot_dimension_numbers<[1], [0], [0], [1], [0, 0, 1, 1], [], []>} : vector<8x128xf32>, vector<128x128xf32>, vector<8x128xf32> -> vector<8x128xf32>
    %61 = arith.addf %59, %60 : vector<8x128xf32>
    %62 = math.tanh %61 : vector<8x128xf32>
    %63 = arith.index_cast %c4_i32 : i32 to index
    %c0_35 = arith.constant 0 : index
    %c0_36 = arith.constant 0 : index
    %64 = vector.load %arg5[%63, %c0_35, %c0_36] : memref<8x8x128xf32, #tpu.memory_space<vmem>>, vector<1x8x128xf32>
    %65 = vector.shape_cast %64 : vector<1x8x128xf32> to vector<8x128xf32>
    %66 = vector.shape_cast %62 : vector<8x128xf32> to vector<1x8x128xf32>
    tpu.vector_store %arg5[%63, %c0_35, %c0_36], %66 {strides = array<i32>} : memref<8x8x128xf32, #tpu.memory_space<vmem>>, vector<1x8x128xf32>,
    %c5_i32 = arith.constant 5 : i32
    %c8_i32_37 = arith.constant 8 : i32
    %67 = arith.muli %c5_i32, %c8_i32_37 : i32
    %68 = tpu.assume_multiple %67, 8 : i32
    %69 = arith.index_cast %68 : i32 to index
    %c0_38 = arith.constant 0 : index
    %70 = vector.load %arg6[%69, %c0_38] : memref<64x128xf32, #tpu.memory_space<vmem>>, vector<8x128xf32>
    %cst_39 = arith.constant dense<0.000000e+00> : vector<8x128xf32>
    %71 = tpu.matmul %62, %10, %cst_39 {dimension_numbers = #tpu.dot_dimension_numbers<[1], [0], [0], [1], [0, 0, 1, 1], [], []>} : vector<8x128xf32>, vector<128x128xf32>, vector<8x128xf32> -> vector<8x128xf32>
    %72 = arith.addf %70, %71 : vector<8x128xf32>
    %73 = math.tanh %72 : vector<8x128xf32>
    %74 = arith.index_cast %c5_i32 : i32 to index
    %c0_40 = arith.constant 0 : index
    %c0_41 = arith.constant 0 : index
    %75 = vector.load %arg5[%74, %c0_40, %c0_41] : memref<8x8x128xf32, #tpu.memory_space<vmem>>, vector<1x8x128xf32>
    %76 = vector.shape_cast %75 : vector<1x8x128xf32> to vector<8x128xf32>
    %77 = vector.shape_cast %73 : vector<8x128xf32> to vector<1x8x128xf32>
    tpu.vector_store %arg5[%74, %c0_40, %c0_41], %77 {strides = array<i32>} : memref<8x8x128xf32, #tpu.memory_space<vmem>>, vector<1x8x128xf32>,
    %c6_i32 = arith.constant 6 : i32
    %c8_i32_42 = arith.constant 8 : i32
    %78 = arith.muli %c6_i32, %c8_i32_42 : i32
    %79 = tpu.assume_multiple %78, 8 : i32
    %80 = arith.index_cast %79 : i32 to index
    %c0_43 = arith.constant 0 : index
    %81 = vector.load %arg6[%80, %c0_43] : memref<64x128xf32, #tpu.memory_space<vmem>>, vector<8x128xf32>
    %cst_44 = arith.constant dense<0.000000e+00> : vector<8x128xf32>
    %82 = tpu.matmul %73, %10, %cst_44 {dimension_numbers = #tpu.dot_dimension_numbers<[1], [0], [0], [1], [0, 0, 1, 1], [], []>} : vector<8x128xf32>, vector<128x128xf32>, vector<8x128xf32> -> vector<8x128xf32>
    %83 = arith.addf %81, %82 : vector<8x128xf32>
    %84 = math.tanh %83 : vector<8x128xf32>
    %85 = arith.index_cast %c6_i32 : i32 to index
    %c0_45 = arith.constant 0 : index
    %c0_46 = arith.constant 0 : index
    %86 = vector.load %arg5[%85, %c0_45, %c0_46] : memref<8x8x128xf32, #tpu.memory_space<vmem>>, vector<1x8x128xf32>
    %87 = vector.shape_cast %86 : vector<1x8x128xf32> to vector<8x128xf32>
    %88 = vector.shape_cast %84 : vector<8x128xf32> to vector<1x8x128xf32>
    tpu.vector_store %arg5[%85, %c0_45, %c0_46], %88 {strides = array<i32>} : memref<8x8x128xf32, #tpu.memory_space<vmem>>, vector<1x8x128xf32>,
    %c7_i32 = arith.constant 7 : i32
    %c8_i32_47 = arith.constant 8 : i32
    %89 = arith.muli %c7_i32, %c8_i32_47 : i32
    %90 = tpu.assume_multiple %89, 8 : i32
    %91 = arith.index_cast %90 : i32 to index
    %c0_48 = arith.constant 0 : index
    %92 = vector.load %arg6[%91, %c0_48] : memref<64x128xf32, #tpu.memory_space<vmem>>, vector<8x128xf32>
    %cst_49 = arith.constant dense<0.000000e+00> : vector<8x128xf32>
    %93 = tpu.matmul %84, %10, %cst_49 {dimension_numbers = #tpu.dot_dimension_numbers<[1], [0], [0], [1], [0, 0, 1, 1], [], []>} : vector<8x128xf32>, vector<128x128xf32>, vector<8x128xf32> -> vector<8x128xf32>
    %94 = arith.addf %92, %93 : vector<8x128xf32>
    %95 = math.tanh %94 : vector<8x128xf32>
    %96 = arith.index_cast %c7_i32 : i32 to index
    %c0_50 = arith.constant 0 : index
    %c0_51 = arith.constant 0 : index
    %97 = vector.load %arg5[%96, %c0_50, %c0_51] : memref<8x8x128xf32, #tpu.memory_space<vmem>>, vector<1x8x128xf32>
    %98 = vector.shape_cast %97 : vector<1x8x128xf32> to vector<8x128xf32>
    %99 = vector.shape_cast %95 : vector<8x128xf32> to vector<1x8x128xf32>
    tpu.vector_store %arg5[%96, %c0_50, %c0_51], %99 {strides = array<i32>} : memref<8x8x128xf32, #tpu.memory_space<vmem>>, vector<1x8x128xf32>,
    %c8_i32_52 = arith.constant 8 : i32
    %c0_53 = arith.constant 0 : index
    %c0_54 = arith.constant 0 : index
    %100 = vector.load %arg7[%c0_53, %c0_54] : memref<8x128xf32, #tpu.memory_space<vmem>>, vector<8x128xf32>
    tpu.vector_store %arg7[%c0_53, %c0_54], %95 {strides = array<i32>} : memref<8x128xf32, #tpu.memory_space<vmem>>, vector<8x128xf32>,
    return
  }
  func.func @transform_0(%arg0: i32) -> (i32, i32) {
    %c0_i32 = arith.constant 0 : i32
    %c0_i32_0 = arith.constant 0 : i32
    return %arg0, %c0_i32 : i32, i32
  }
  func.func @transform_1(%arg0: i32) -> (i32, i32) {
    %c0_i32 = arith.constant 0 : i32
    %c0_i32_0 = arith.constant 0 : i32
    %c0_i32_1 = arith.constant 0 : i32
    return %c0_i32, %c0_i32_0 : i32, i32
  }
  func.func @transform_2(%arg0: i32) -> (i32, i32) {
    %c0_i32 = arith.constant 0 : i32
    %c0_i32_0 = arith.constant 0 : i32
    %c0_i32_1 = arith.constant 0 : i32
    return %c0_i32, %c0_i32_0 : i32, i32
  }
  func.func @transform_3(%arg0: i32) -> (i32, i32) {
    %c0_i32 = arith.constant 0 : i32
    %c0_i32_0 = arith.constant 0 : i32
    %c0_i32_1 = arith.constant 0 : i32
    return %c0_i32, %c0_i32_0 : i32, i32
  }
  func.func @transform_4(%arg0: i32) -> (i32, i32, i32) {
    %c0_i32 = arith.constant 0 : i32
    %c0_i32_0 = arith.constant 0 : i32
    %c0_i32_1 = arith.constant 0 : i32
    return %arg0, %c0_i32, %c0_i32_0 : i32, i32, i32
  }
}

</mosaic_0001>

<llo_original>
// kernel: lm_rnn_forward.3
$region0: #{lm_rnn_forward.3}
  #allocation0 [shape = 'u32[]', space=smem, size = 0x4, offset = 0x4, fixed_abs, tag = 'smem constant byte address 0x4 - core index']
  #allocation1 [shape = 'u32[144,128]{1,0:T(1,128)}', space=vmem, size = 0x12000, scoped, tag = 'internal scratch']
  %s0 = inlined_call_operand.vmem [shape: f32[8,32,128], index: 0, kind: input, shape index: {}]
  %s1 = inlined_call_operand.vmem [shape: f32[512,128], index: 1, kind: input, shape index: {}]
  %s2 = inlined_call_operand.vmem [shape: f32[512,1], index: 2, kind: input, shape index: {}]
  %s3 = inlined_call_operand.vmem [shape: f32[8,512,32], index: 3, kind: output, shape index: {}]
  %s4 = sld [smem:[#allocation0]]
  $region79: #{lm_rnn_forward.3} parent=0
    _
  %s6 = ssub.s32 1, %s4
  %s7 = scalar_select 0, %s6, %s4
  $region1: #{lm_rnn_forward.3} parent=0
    #allocation2 [shape = 'u8[2097152]{0}', space=vmem, size = 0x200000, scoped, tag = 'output window, operand 0']
    loop: start=0, step=1, limit=4
    $region2: #{lm_rnn_forward.3} parent=1 // loop_pre_header
      _
    $region3: #{lm_rnn_forward.3} parent=1 // loop_header
      %s9 = sphi 0, %s13
      %p10 = scmp.ge.s32.totalorder %s9, 4
      %s16 = sphi 0, %s28
      %s17 = sphi 0, %s24
      %s18 = sphi 0, %s16
      %s19 = sphi 0, %s17
      %s20 = sphi 0, %s18
      %s21 = sphi 0, %s19
      %s31 = sphi 0, %s33
      %s34 = sphi 0, %s31
      %s35 = sphi 0, %s34
      %s51 = sphi 0, %s35
      %s57 = sphi 0, %s59
      %s60 = sphi 0, %s57
      %s61 = sphi 0, %s60
      %s77 = sphi 0, %s61
      %s83 = sphi 0, %s85
      %s86 = sphi 0, %s83
      %s87 = sphi 0, %s86
      %s103 = sphi 0, %s87
      %s111 = sphi 0, %s113
      %s114 = sphi 0, %s111
      %s115 = sphi 0, %s114
      %s131 = sphi 0, %s115
    $region4: #{lm_rnn_forward.3} parent=1 // loop_header_branch
      %12 = sbr.rel (%p10) target = $region8
    $region5: #{lm_rnn_forward.3} parent=1 // loop_body
      %s14 = ssub.s32 %s9, 1
      %s15 = ssub.s32 %s9, 2
      %s22 = sadd.s32 1, %s17
      %p23 = scmp.ge.s32.totalorder %s22, 1
      %s24 = scalar_select %p23, 0, %s22
      %s25 = sadd.s32 1, %s16
      %s26 = scalar_select %p23, %s25, %s16
      %p27 = scmp.ge.s32.totalorder %s26, 2
      %s28 = scalar_select %p27, 0, %s26
      %s29 = ssub.s32 %s17, %s24
      %p30 = scmp.eq.s32.totalorder %s29, 0
      %s32 = sadd.s32 %s31, 1
      %s33 = scalar_select %p30, %s31, %s32
      %p36 = pneg %p30
      %p37 = scmp.eq.s32.totalorder %s9, 1
      %p38 = por %p36, %p37
      %p39 = scmp.ne.s32.totalorder %s31, %s34
      %p40 = scmp.eq.s32.totalorder %s9, 0
      %p41 = por %p39, %p40
      %p42 = scmp.ne.s32.totalorder %s31, %s34
      %p43 = scmp.eq.s32.totalorder %s14, 1
      %p44 = por %p42, %p43
      %p45 = scmp.ne.s32.totalorder %s34, %s35
      %p46 = scmp.eq.s32.totalorder %s14, 0
      %p47 = por %p45, %p46
      %p48 = scmp.ne.s32.totalorder %s34, %s35
      %p49 = scmp.eq.s32.totalorder %s15, 1
      %p50 = por %p48, %p49
      %p52 = scmp.ne.s32.totalorder %s35, %s51
      %p53 = scmp.eq.s32.totalorder %s15, 0
      %p54 = por %p52, %p53
      %s55 = ssub.s32 %s16, %s28
      %p56 = scmp.eq.s32.totalorder %s55, 0
      %s58 = sadd.s32 %s57, 1
      %s59 = scalar_select %p56, %s57, %s58
      %p62 = pneg %p56
      %p63 = scmp.eq.s32.totalorder %s9, 1
      %p64 = por %p62, %p63
      %p65 = scmp.ne.s32.totalorder %s57, %s60
      %p66 = scmp.eq.s32.totalorder %s9, 0
      %p67 = por %p65, %p66
      %p68 = scmp.ne.s32.totalorder %s57, %s60
      %p69 = scmp.eq.s32.totalorder %s14, 1
      %p70 = por %p68, %p69
      %p71 = scmp.ne.s32.totalorder %s60, %s61
      %p72 = scmp.eq.s32.totalorder %s14, 0
      %p73 = por %p71, %p72
      %p74 = scmp.ne.s32.totalorder %s60, %s61
      %p75 = scmp.eq.s32.totalorder %s15, 1
      %p76 = por %p74, %p75
      %p78 = scmp.ne.s32.totalorder %s61, %s77
      %p79 = scmp.eq.s32.totalorder %s15, 0
      %p80 = por %p78, %p79
      %s81 = ssub.s32 %s16, %s28
      %p82 = scmp.eq.s32.totalorder %s81, 0
      %s84 = sadd.s32 %s83, 1
      %s85 = scalar_select %p82, %s83, %s84
      %p88 = pneg %p82
      %p89 = scmp.eq.s32.totalorder %s9, 1
      %p90 = por %p88, %p89
      %p91 = scmp.ne.s32.totalorder %s83, %s86
      %p92 = scmp.eq.s32.totalorder %s9, 0
      %p93 = por %p91, %p92
      %p94 = scmp.ne.s32.totalorder %s83, %s86
      %p95 = scmp.eq.s32.totalorder %s14, 1
      %p96 = por %p94, %p95
      %p97 = scmp.ne.s32.totalorder %s86, %s87
      %p98 = scmp.eq.s32.totalorder %s14, 0
      %p99 = por %p97, %p98
      %p100 = scmp.ne.s32.totalorder %s86, %s87
      %p101 = scmp.eq.s32.totalorder %s15, 1
      %p102 = por %p100, %p101
      %p104 = scmp.ne.s32.totalorder %s87, %s103
      %p105 = scmp.eq.s32.totalorder %s15, 0
      %p106 = por %p104, %p105
      %s107 = ssub.s32 %s16, %s28
      %s108 = ssub.s32 %s17, %s24
      %s109 = sor.u32 %s107, %s108
      %p110 = scmp.eq.s32.totalorder %s109, 0
      %s112 = sadd.s32 %s111, 1
      %s113 = scalar_select %p110, %s111, %s112
      %p116 = pneg %p110
      %p117 = scmp.eq.s32.totalorder %s9, 1
      %p118 = por %p116, %p117
      %p119 = scmp.ne.s32.totalorder %s111, %s114
      %p120 = scmp.eq.s32.totalorder %s9, 0
      %p121 = por %p119, %p120
      %p122 = scmp.ne.s32.totalorder %s111, %s114
      %p123 = scmp.eq.s32.totalorder %s14, 1
      %p124 = por %p122, %p123
      %p125 = scmp.ne.s32.totalorder %s114, %s115
      %p126 = scmp.eq.s32.totalorder %s14, 0
      %p127 = por %p125, %p126
      %p128 = scmp.ne.s32.totalorder %s114, %s115
      %p129 = scmp.eq.s32.totalorder %s15, 1
      %p130 = por %p128, %p129
      %p132 = scmp.ne.s32.totalorder %s115, %s131
      %p133 = scmp.eq.s32.totalorder %s15, 0
      %p134 = por %p132, %p133
      %p135 = scmp.le.s32.totalorder 1, %s9
      %p136 = scmp.lt.s32.totalorder %s9, 3
      %p137 = pnand %p135, %p136
      %p138 = pneg %p137
      // Predicated region
      $region9: #{lm_rnn_forward.3} parent=5 // pred_check
        _
      $region10: #{lm_rnn_forward.3} parent=5 // pred_check_branch
        %140 = sbr.rel (%p137) target = $region12
      $region11: #{lm_rnn_forward.3} parent=5 // pred_region
        %s141 = ssub.s32 %s9, 1
        // Predicated region
        $region13: #{lm_rnn_forward.3} parent=11 // pred_check
          %p142 = pneg %p47
        $region14: #{lm_rnn_forward.3} parent=11 // pred_check_branch
          %144 = sbr.rel (%p142) target = $region16
        $region15: #{lm_rnn_forward.3} parent=11 // pred_region
          %s145 = smul.u32 4, %s19
          %p146 = scmp.lt.s32.totalorder %s145, 3
          %s147 = scalar_select %p146, %s145, 3
          %s148 = smul.addr %s147, 8
          %s149 = scalar_lea.vmem %s0, %s148
          %s150 = smul.u32 4, %s19
        $region16: #{lm_rnn_forward.3} parent=11 // pred_fallthru
          _
      $region12: #{lm_rnn_forward.3} parent=5 // pred_fallthru
        _
      %p151 = scmp.lt.s32.totalorder %s9, 2
      // Predicated region
      $region17: #{lm_rnn_forward.3} parent=5 // pred_check
        %p152 = pneg %p151
      $region18: #{lm_rnn_forward.3} parent=5 // pred_check_branch
        %154 = sbr.rel (%p152) target = $region20
      $region19: #{lm_rnn_forward.3} parent=5 // pred_region
        // Predicated region
        $region21: #{lm_rnn_forward.3} parent=19 // pred_check
          %p155 = pneg %p67
        $region22: #{lm_rnn_forward.3} parent=19 // pred_check_branch
          %157 = sbr.rel (%p155) target = $region24
        $region23: #{lm_rnn_forward.3} parent=19 // pred_region
          %s158 = smul.u32 32, %s16
          %p159 = scmp.lt.s32.totalorder %s158, 63
          %s160 = scalar_select %p159, %s158, 63
          %s161 = smul.addr %s160, 8
          %s162 = scalar_lea.vmem %s1, %s161
          %s163 = smul.u32 32, %s16
        $region24: #{lm_rnn_forward.3} parent=19 // pred_fallthru
          _
        // Predicated region
        $region25: #{lm_rnn_forward.3} parent=19 // pred_check
          %p164 = pneg %p93
        $region26: #{lm_rnn_forward.3} parent=19 // pred_check_branch
          %166 = sbr.rel (%p164) target = $region28
        $region27: #{lm_rnn_forward.3} parent=19 // pred_region
          %s167 = smul.u32 32, %s16
          %p168 = scmp.lt.s32.totalorder %s167, 63
          %s169 = scalar_select %p168, %s167, 63
          %s170 = smul.addr %s169, 8
          %s171 = scalar_lea.vmem %s2, %s170
          %s172 = smul.u32 32, %s16
        $region28: #{lm_rnn_forward.3} parent=19 // pred_fallthru
          _
      $region20: #{lm_rnn_forward.3} parent=5 // pred_fallthru
        _
      %p173 = scmp.le.s32.totalorder 1, %s9
      %p174 = scmp.lt.s32.totalorder %s9, 3
      %p175 = pnand %p173, %p174
      %p176 = pneg %p175
      // Predicated region
      $region29: #{lm_rnn_forward.3} parent=5 // pred_check
        _
      $region30: #{lm_rnn_forward.3} parent=5 // pred_check_branch
        %178 = sbr.rel (%p175) target = $region32
      $region31: #{lm_rnn_forward.3} parent=5 // pred_region
        %s179 = ssub.s32 %s9, 1
        %s180 = smul.u32 4, %s19
        %p181 = scmp.lt.s32.totalorder %s180, 3
        %s182 = scalar_select %p181, %s180, 3
        %s183 = smul.addr %s182, 8
        %s184 = scalar_lea.vmem %s0, %s183
        %p185 = pneg %p47
        %p186 = pneg %p44
        %s187 = smul.u32 32, %s18
        %p188 = scmp.lt.s32.totalorder %s187, 63
        %s189 = scalar_select %p188, %s187, 63
        %s190 = smul.addr %s189, 8
        %s191 = scalar_lea.vmem %s1, %s190
        %p192 = pneg %p73
        %p193 = pneg %p70
        %s194 = smul.u32 32, %s18
        %p195 = scmp.lt.s32.totalorder %s194, 63
        %s196 = scalar_select %p195, %s194, 63
        %s197 = smul.addr %s196, 8
        %s198 = scalar_lea.vmem %s2, %s197
        %p199 = pneg %p99
        %p200 = pneg %p96
        %p201 = pneg %p127
        %p202 = pneg %p124
        %s203 = sand.u32 %s114, 1
        %s204 = sand.u32 %s114, 1
        %s205 = smul.addr %s204, 2048
        %s206 = scalar_lea.vmem [#allocation2], %s205
        %s207 = smul.u32 4, %s19
        %p208 = scmp.lt.s32.totalorder %s207, 3
        %s209 = scalar_select %p208, %s207, 3
        %s210 = smul.addr %s209, 8
        %s211 = scalar_lea.vmem %s0, %s210
        %s212 = smul.u32 4, %s19
        %s213 = smul.u32 32, %s18
        %p214 = scmp.lt.s32.totalorder %s213, 63
        %s215 = scalar_select %p214, %s213, 63
        %s216 = smul.addr %s215, 8
        %s217 = scalar_lea.vmem %s1, %s216
        %s218 = smul.u32 32, %s18
        %s219 = smul.u32 32, %s18
        %p220 = scmp.lt.s32.totalorder %s219, 63
        %s221 = scalar_select %p220, %s219, 63
        %s222 = smul.addr %s221, 8
        %s223 = scalar_lea.vmem %s2, %s222
        %s224 = smul.u32 32, %s18
        %s225 = smul.u32 32, %s18
        %v226 = vld [vmem:[%s217] sm:$0xff]
        %v227 = vld [vmem:[%s217 + $0x8] sm:$0xff]
        %v228 = vld [vmem:[%s217 + $0x10] sm:$0xff]
        %v229 = vld [vmem:[%s217 + $0x18] sm:$0xff]
        %v230 = vld [vmem:[%s217 + $0x20] sm:$0xff]
        %v231 = vld [vmem:[%s217 + $0x28] sm:$0xff]
        %v232 = vld [vmem:[%s217 + $0x30] sm:$0xff]
        %v233 = vld [vmem:[%s217 + $0x38] sm:$0xff]
        %v234 = vld [vmem:[%s217 + $0x40] sm:$0xff]
        %v235 = vld [vmem:[%s217 + $0x48] sm:$0xff]
        %v236 = vld [vmem:[%s217 + $0x50] sm:$0xff]
        %v237 = vld [vmem:[%s217 + $0x58] sm:$0xff]
        %v238 = vld [vmem:[%s217 + $0x60] sm:$0xff]
        %v239 = vld [vmem:[%s217 + $0x68] sm:$0xff]
        %v240 = vld [vmem:[%s217 + $0x70] sm:$0xff]
        %v241 = vld [vmem:[%s217 + $0x78] sm:$0xff]
        %v242 = vld [vmem:[%s217 + $0x80] sm:$0xff]
        %v243 = vld [vmem:[%s217 + $0x88] sm:$0xff]
        %v244 = vld [vmem:[%s217 + $0x90] sm:$0xff]
        %v245 = vld [vmem:[%s217 + $0x98] sm:$0xff]
        %v246 = vld [vmem:[%s217 + $0xa0] sm:$0xff]
        %v247 = vld [vmem:[%s217 + $0xa8] sm:$0xff]
        %v248 = vld [vmem:[%s217 + $0xb0] sm:$0xff]
        %v249 = vld [vmem:[%s217 + $0xb8] sm:$0xff]
        %v250 = vld [vmem:[%s217 + $0xc0] sm:$0xff]
        %v251 = vld [vmem:[%s217 + $0xc8] sm:$0xff]
        %v252 = vld [vmem:[%s217 + $0xd0] sm:$0xff]
        %v253 = vld [vmem:[%s217 + $0xd8] sm:$0xff]
        %v254 = vld [vmem:[%s217 + $0xe0] sm:$0xff]
        %v255 = vld [vmem:[%s217 + $0xe8] sm:$0xff]
        %v256 = vld [vmem:[%s217 + $0xf0] sm:$0xff]
        %v257 = vld [vmem:[%s217 + $0xf8] sm:$0xff]
        %v258 = vld [vmem:[%s223] sm:$0xff]
        %v259 = vld [vmem:[%s223 + $0x8] sm:$0xff]
        %v260 = vld [vmem:[%s223 + $0x10] sm:$0xff]
        %v261 = vld [vmem:[%s223 + $0x18] sm:$0xff]
        %v262 = vld [vmem:[%s223 + $0x20] sm:$0xff]
        %v263 = vld [vmem:[%s223 + $0x28] sm:$0xff]
        %v264 = vld [vmem:[%s223 + $0x30] sm:$0xff]
        %v265 = vld [vmem:[%s223 + $0x38] sm:$0xff]
        %v266 = vld [vmem:[%s223 + $0x40] sm:$0xff]
        %v267 = vld [vmem:[%s223 + $0x48] sm:$0xff]
        %v268 = vld [vmem:[%s223 + $0x50] sm:$0xff]
        %v269 = vld [vmem:[%s223 + $0x58] sm:$0xff]
        %v270 = vld [vmem:[%s223 + $0x60] sm:$0xff]
        %v271 = vld [vmem:[%s223 + $0x68] sm:$0xff]
        %v272 = vld [vmem:[%s223 + $0x70] sm:$0xff]
        %v273 = vld [vmem:[%s223 + $0x78] sm:$0xff]
        %v274 = vld [vmem:[%s223 + $0x80] sm:$0xff]
        %v275 = vld [vmem:[%s223 + $0x88] sm:$0xff]
        %v276 = vld [vmem:[%s223 + $0x90] sm:$0xff]
        %v277 = vld [vmem:[%s223 + $0x98] sm:$0xff]
        %v278 = vld [vmem:[%s223 + $0xa0] sm:$0xff]
        %v279 = vld [vmem:[%s223 + $0xa8] sm:$0xff]
        %v280 = vld [vmem:[%s223 + $0xb0] sm:$0xff]
        %v281 = vld [vmem:[%s223 + $0xb8] sm:$0xff]
        %v282 = vld [vmem:[%s223 + $0xc0] sm:$0xff]
        %v283 = vld [vmem:[%s223 + $0xc8] sm:$0xff]
        %v284 = vld [vmem:[%s223 + $0xd0] sm:$0xff]
        %v285 = vld [vmem:[%s223 + $0xd8] sm:$0xff]
        %v286 = vld [vmem:[%s223 + $0xe0] sm:$0xff]
        %v287 = vld [vmem:[%s223 + $0xe8] sm:$0xff]
        %v288 = vld [vmem:[%s223 + $0xf0] sm:$0xff]
        %v289 = vld [vmem:[%s223 + $0xf8] sm:$0xff]
        %v290 = vld [vmem:[%s211] sm:$0xff]
        %v291 = vld [vmem:[%s211 + $0x8] sm:$0xff]
        %v292 = vld [vmem:[%s211 + $0x10] sm:$0xff]
        %v293 = vld [vmem:[%s211 + $0x18] sm:$0xff]
        %295 = vset.pattern.permute.xlu0 0
        %296 = vperm.xlu0 %295, %v258
        %v297 = vpop.permute.xlu0 %296
        %300 = vset.pattern.permute.xlu0 0
        %301 = vperm.xlu0 %300, %v259
        %v302 = vpop.permute.xlu0 %301
        %305 = vset.pattern.permute.xlu0 0
        %306 = vperm.xlu0 %305, %v260
        %v307 = vpop.permute.xlu0 %306
        %310 = vset.pattern.permute.xlu0 0
        %311 = vperm.xlu0 %310, %v261
        %v312 = vpop.permute.xlu0 %311
        %315 = vset.pattern.permute.xlu0 0
        %316 = vperm.xlu0 %315, %v262
        %v317 = vpop.permute.xlu0 %316
        %320 = vset.pattern.permute.xlu0 0
        %321 = vperm.xlu0 %320, %v263
        %v322 = vpop.permute.xlu0 %321
        %325 = vset.pattern.permute.xlu0 0
        %326 = vperm.xlu0 %325, %v264
        %v327 = vpop.permute.xlu0 %326
        %330 = vset.pattern.permute.xlu0 0
        %331 = vperm.xlu0 %330, %v265
        %v332 = vpop.permute.xlu0 %331
        %335 = vset.pattern.permute.xlu0 0
        %336 = vperm.xlu0 %335, %v266
        %v337 = vpop.permute.xlu0 %336
        %340 = vset.pattern.permute.xlu0 0
        %341 = vperm.xlu0 %340, %v267
        %v342 = vpop.permute.xlu0 %341
        %345 = vset.pattern.permute.xlu0 0
        %346 = vperm.xlu0 %345, %v268
        %v347 = vpop.permute.xlu0 %346
        %350 = vset.pattern.permute.xlu0 0
        %351 = vperm.xlu0 %350, %v269
        %v352 = vpop.permute.xlu0 %351
        %355 = vset.pattern.permute.xlu0 0
        %356 = vperm.xlu0 %355, %v270
        %v357 = vpop.permute.xlu0 %356
        %360 = vset.pattern.permute.xlu0 0
        %361 = vperm.xlu0 %360, %v271
        %v362 = vpop.permute.xlu0 %361
        %365 = vset.pattern.permute.xlu0 0
        %366 = vperm.xlu0 %365, %v272
        %v367 = vpop.permute.xlu0 %366
        %370 = vset.pattern.permute.xlu0 0
        %371 = vperm.xlu0 %370, %v273
        %v372 = vpop.permute.xlu0 %371
        %375 = vset.pattern.permute.xlu0 0
        %376 = vperm.xlu0 %375, %v274
        %v377 = vpop.permute.xlu0 %376
        %380 = vset.pattern.permute.xlu0 0
        %381 = vperm.xlu0 %380, %v275
        %v382 = vpop.permute.xlu0 %381
        %385 = vset.pattern.permute.xlu0 0
        %386 = vperm.xlu0 %385, %v276
        %v387 = vpop.permute.xlu0 %386
        %390 = vset.pattern.permute.xlu0 0
        %391 = vperm.xlu0 %390, %v277
        %v392 = vpop.permute.xlu0 %391
        %395 = vset.pattern.permute.xlu0 0
        %396 = vperm.xlu0 %395, %v278
        %v397 = vpop.permute.xlu0 %396
        %400 = vset.pattern.permute.xlu0 0
        %401 = vperm.xlu0 %400, %v279
        %v402 = vpop.permute.xlu0 %401
        %405 = vset.pattern.permute.xlu0 0
        %406 = vperm.xlu0 %405, %v280
        %v407 = vpop.permute.xlu0 %406
        %410 = vset.pattern.permute.xlu0 0
        %411 = vperm.xlu0 %410, %v281
        %v412 = vpop.permute.xlu0 %411
        %415 = vset.pattern.permute.xlu0 0
        %416 = vperm.xlu0 %415, %v282
        %v417 = vpop.permute.xlu0 %416
        %420 = vset.pattern.permute.xlu0 0
        %421 = vperm.xlu0 %420, %v283
        %v422 = vpop.permute.xlu0 %421
        %425 = vset.pattern.permute.xlu0 0
        %426 = vperm.xlu0 %425, %v284
        %v427 = vpop.permute.xlu0 %426
        %430 = vset.pattern.permute.xlu0 0
        %431 = vperm.xlu0 %430, %v285
        %v432 = vpop.permute.xlu0 %431
        %435 = vset.pattern.permute.xlu0 0
        %436 = vperm.xlu0 %435, %v286
        %v437 = vpop.permute.xlu0 %436
        %440 = vset.pattern.permute.xlu0 0
        %441 = vperm.xlu0 %440, %v287
        %v442 = vpop.permute.xlu0 %441
        %445 = vset.pattern.permute.xlu0 0
        %446 = vperm.xlu0 %445, %v288
        %v447 = vpop.permute.xlu0 %446
        %450 = vset.pattern.permute.xlu0 0
        %451 = vperm.xlu0 %450, %v289
        %v452 = vpop.permute.xlu0 %451
        %454 = vmatprep.subr.mxu0 0.0
        %455 = vmatpush1.xpose.msra.mxu0 %v290
        %456 = vmatprep.subr.mxu0 0.0
        %457 = vmatpush1.xpose.msra.mxu0 %v291
        %458 = vmatprep.subr.mxu0 0.0
        %459 = vmatpush1.xpose.msra.mxu0 %v292
        %460 = vmatprep.subr.mxu0 0.0
        %461 = vmatpush1.xpose.msra.mxu0 %v293
        %462 = vmatprep.subr.mxu0 0.0
        %463 = vmatpush1.xpose.msra.mxu0 0.0
        %464 = vmatprep.subr.mxu0 0.0
        %465 = vmatpush1.xpose.msra.mxu0 0.0
        %466 = vmatprep.subr.mxu0 0.0
        %467 = vmatpush1.xpose.msra.mxu0 0.0
        %468 = vmatprep.subr.mxu0 0.0
        %469 = vmatpush1.xpose.msra.mxu0 0.0
        %470 = vmatprep.subr.mxu0 0.0
        %471 = vmatpush1.xpose.msra.mxu0 0.0
        %472 = vmatprep.subr.mxu0 0.0
        %473 = vmatpush1.xpose.msra.mxu0 0.0
        %474 = vmatprep.subr.mxu0 0.0
        %475 = vmatpush1.xpose.msra.mxu0 0.0
        %476 = vmatprep.subr.mxu0 0.0
        %477 = vmatpush1.xpose.msra.mxu0 0.0
        %478 = vmatprep.subr.mxu0 0.0
        %479 = vmatpush1.xpose.msra.mxu0 0.0
        %480 = vmatprep.subr.mxu0 0.0
        %481 = vmatpush1.xpose.msra.mxu0 0.0
        %482 = vmatprep.subr.mxu0 0.0
        %483 = vmatpush1.xpose.msra.mxu0 0.0
        %484 = vmatprep.subr.mxu0 0.0
        %485 = vmatpush1.xpose.msra.mxu0 0.0
        %486 = vmatprep.subr.mxu0 0.0
        %487 = vmatpush1.xpose.msra.mxu0 0.0
        %488 = vmatprep.subr.mxu0 0.0
        %489 = vmatpush1.xpose.msra.mxu0 0.0
        %490 = vmatprep.subr.mxu0 0.0
        %491 = vmatpush1.xpose.msra.mxu0 0.0
        %492 = vmatprep.subr.mxu0 0.0
        %493 = vmatpush1.xpose.msra.mxu0 0.0
        %494 = vmatprep.subr.mxu0 0.0
        %495 = vmatpush1.xpose.msra.mxu0 0.0
        %496 = vmatprep.subr.mxu0 0.0
        %497 = vmatpush1.xpose.msra.mxu0 0.0
        %498 = vmatprep.subr.mxu0 0.0
        %499 = vmatpush1.xpose.msra.mxu0 0.0
        %500 = vmatprep.subr.mxu0 0.0
        %501 = vmatpush1.xpose.msra.mxu0 0.0
        %502 = vmatprep.subr.mxu0 0.0
        %503 = vmatpush1.xpose.msra.mxu0 0.0
        %504 = vmatprep.subr.mxu0 0.0
        %505 = vmatpush1.xpose.msra.mxu0 0.0
        %506 = vmatprep.subr.mxu0 0.0
        %507 = vmatpush1.xpose.msra.mxu0 0.0
        %508 = vmatprep.subr.mxu0 0.0
        %509 = vmatpush1.xpose.msra.mxu0 0.0
        %510 = vmatprep.subr.mxu0 0.0
        %511 = vmatpush1.xpose.msra.mxu0 0.0
        %512 = vmatprep.subr.mxu0 0.0
        %513 = vmatpush1.xpose.msra.mxu0 0.0
        %514 = vmatprep.subr.mxu0 0.0
        %515 = vmatpush1.xpose.msra.mxu0 0.0
        %516 = vmatprep.subr.mxu0 0.0
        %517 = vmatpush1.xpose.msra.mxu0 0.0
        %518 = vmatprep.mubr.f32.mxu0 0.0
        %519 = vmatmul.mubr.f32.gmra.mrb[0].mxu0 %v226
        %v520 = vpop.f32.mrb[0].mxu0
        %v521 = vadd.f32 %v297, %v520
        %v522 = vpop.f32.mrb[0].mxu0
        %523 = vmatprep.mubr.f32.mxu0 0.0
        %524 = vmatmul.mubr.f32.gmra.mrb[0].mxu0 %v227
        %v525 = vpop.f32.mrb[0].mxu0
        %v526 = vadd.f32 %v302, %v525
        %v527 = vpop.f32.mrb[0].mxu0
        %528 = vmatprep.mubr.f32.mxu0 0.0
        %529 = vmatmul.mubr.f32.gmra.mrb[0].mxu0 %v228
        %v530 = vpop.f32.mrb[0].mxu0
        %v531 = vadd.f32 %v307, %v530
        %v532 = vpop.f32.mrb[0].mxu0
        %533 = vmatprep.mubr.f32.mxu0 0.0
        %534 = vmatmul.mubr.f32.gmra.mrb[0].mxu0 %v229
        %v535 = vpop.f32.mrb[0].mxu0
        %v536 = vadd.f32 %v312, %v535
        %v537 = vpop.f32.mrb[0].mxu0
        %538 = vmatprep.mubr.f32.mxu0 0.0
        %539 = vmatmul.mubr.f32.gmra.mrb[0].mxu0 %v230
        %v540 = vpop.f32.mrb[0].mxu0
        %v541 = vadd.f32 %v317, %v540
        %v542 = vpop.f32.mrb[0].mxu0
        %543 = vmatprep.mubr.f32.mxu0 0.0
        %544 = vmatmul.mubr.f32.gmra.mrb[0].mxu0 %v231
        %v545 = vpop.f32.mrb[0].mxu0
        %v546 = vadd.f32 %v322, %v545
        %v547 = vpop.f32.mrb[0].mxu0
        %548 = vmatprep.mubr.f32.mxu0 0.0
        %549 = vmatmul.mubr.f32.gmra.mrb[0].mxu0 %v232
        %v550 = vpop.f32.mrb[0].mxu0
        %v551 = vadd.f32 %v327, %v550
        %v552 = vpop.f32.mrb[0].mxu0
        %553 = vmatprep.mubr.f32.mxu0 0.0
        %554 = vmatmul.mubr.f32.gmra.mrb[0].mxu0 %v233
        %v555 = vpop.f32.mrb[0].mxu0
        %v556 = vadd.f32 %v332, %v555
        %v557 = vpop.f32.mrb[0].mxu0
        %558 = vmatprep.mubr.f32.mxu0 0.0
        %559 = vmatmul.mubr.f32.gmra.mrb[0].mxu0 %v234
        %v560 = vpop.f32.mrb[0].mxu0
        %v561 = vadd.f32 %v337, %v560
        %v562 = vpop.f32.mrb[0].mxu0
        %563 = vmatprep.mubr.f32.mxu0 0.0
        %564 = vmatmul.mubr.f32.gmra.mrb[0].mxu0 %v235
        %v565 = vpop.f32.mrb[0].mxu0
        %v566 = vadd.f32 %v342, %v565
        %v567 = vpop.f32.mrb[0].mxu0
        %568 = vmatprep.mubr.f32.mxu0 0.0
        %569 = vmatmul.mubr.f32.gmra.mrb[0].mxu0 %v236
        %v570 = vpop.f32.mrb[0].mxu0
        %v571 = vadd.f32 %v347, %v570
        %v572 = vpop.f32.mrb[0].mxu0
        %573 = vmatprep.mubr.f32.mxu0 0.0
        %574 = vmatmul.mubr.f32.gmra.mrb[0].mxu0 %v237
        %v575 = vpop.f32.mrb[0].mxu0
        %v576 = vadd.f32 %v352, %v575
        %v577 = vpop.f32.mrb[0].mxu0
        %578 = vmatprep.mubr.f32.mxu0 0.0
        %579 = vmatmul.mubr.f32.gmra.mrb[0].mxu0 %v238
        %v580 = vpop.f32.mrb[0].mxu0
        %v581 = vadd.f32 %v357, %v580
        %v582 = vpop.f32.mrb[0].mxu0
        %583 = vmatprep.mubr.f32.mxu0 0.0
        %584 = vmatmul.mubr.f32.gmra.mrb[0].mxu0 %v239
        %v585 = vpop.f32.mrb[0].mxu0
        %v586 = vadd.f32 %v362, %v585
        %v587 = vpop.f32.mrb[0].mxu0
        %588 = vmatprep.mubr.f32.mxu0 0.0
        %589 = vmatmul.mubr.f32.gmra.mrb[0].mxu0 %v240
        %v590 = vpop.f32.mrb[0].mxu0
        %v591 = vadd.f32 %v367, %v590
        %v592 = vpop.f32.mrb[0].mxu0
        %593 = vmatprep.mubr.f32.mxu0 0.0
        %594 = vmatmul.mubr.f32.gmra.mrb[0].mxu0 %v241
        %v595 = vpop.f32.mrb[0].mxu0
        %v596 = vadd.f32 %v372, %v595
        %v597 = vpop.f32.mrb[0].mxu0
        %598 = vmatprep.mubr.f32.mxu0 0.0
        %599 = vmatmul.mubr.f32.gmra.mrb[0].mxu0 %v242
        %v600 = vpop.f32.mrb[0].mxu0
        %v601 = vadd.f32 %v377, %v600
        %v602 = vpop.f32.mrb[0].mxu0
        %603 = vmatprep.mubr.f32.mxu0 0.0
        %604 = vmatmul.mubr.f32.gmra.mrb[0].mxu0 %v243
        %v605 = vpop.f32.mrb[0].mxu0
        %v606 = vadd.f32 %v382, %v605
        %v607 = vpop.f32.mrb[0].mxu0
        %608 = vmatprep.mubr.f32.mxu0 0.0
        %609 = vmatmul.mubr.f32.gmra.mrb[0].mxu0 %v244
        %v610 = vpop.f32.mrb[0].mxu0
        %v611 = vadd.f32 %v387, %v610
        %v612 = vpop.f32.mrb[0].mxu0
        %613 = vmatprep.mubr.f32.mxu0 0.0
        %614 = vmatmul.mubr.f32.gmra.mrb[0].mxu0 %v245
        %v615 = vpop.f32.mrb[0].mxu0
        %v616 = vadd.f32 %v392, %v615
        %v617 = vpop.f32.mrb[0].mxu0
        %618 = vmatprep.mubr.f32.mxu0 0.0
        %619 = vmatmul.mubr.f32.gmra.mrb[0].mxu0 %v246
        %v620 = vpop.f32.mrb[0].mxu0
        %v621 = vadd.f32 %v397, %v620
        %v622 = vpop.f32.mrb[0].mxu0
        %623 = vmatprep.mubr.f32.mxu0 0.0
        %624 = vmatmul.mubr.f32.gmra.mrb[0].mxu0 %v247
        %v625 = vpop.f32.mrb[0].mxu0
        %v626 = vadd.f32 %v402, %v625
        %v627 = vpop.f32.mrb[0].mxu0
        %628 = vmatprep.mubr.f32.mxu0 0.0
        %629 = vmatmul.mubr.f32.gmra.mrb[0].mxu0 %v248
        %v630 = vpop.f32.mrb[0].mxu0
        %v631 = vadd.f32 %v407, %v630
        %v632 = vpop.f32.mrb[0].mxu0
        %633 = vmatprep.mubr.f32.mxu0 0.0
        %634 = vmatmul.mubr.f32.gmra.mrb[0].mxu0 %v249
        %v635 = vpop.f32.mrb[0].mxu0
        %v636 = vadd.f32 %v412, %v635
        %v637 = vpop.f32.mrb[0].mxu0
        %638 = vmatprep.mubr.f32.mxu0 0.0
        %639 = vmatmul.mubr.f32.gmra.mrb[0].mxu0 %v250
        %v640 = vpop.f32.mrb[0].mxu0
        %v641 = vadd.f32 %v417, %v640
        %v642 = vpop.f32.mrb[0].mxu0
        %643 = vmatprep.mubr.f32.mxu0 0.0
        %644 = vmatmul.mubr.f32.gmra.mrb[0].mxu0 %v251
        %v645 = vpop.f32.mrb[0].mxu0
        %v646 = vadd.f32 %v422, %v645
        %v647 = vpop.f32.mrb[0].mxu0
        %648 = vmatprep.mubr.f32.mxu0 0.0
        %649 = vmatmul.mubr.f32.gmra.mrb[0].mxu0 %v252
        %v650 = vpop.f32.mrb[0].mxu0
        %v651 = vadd.f32 %v427, %v650
        %v652 = vpop.f32.mrb[0].mxu0
        %653 = vmatprep.mubr.f32.mxu0 0.0
        %654 = vmatmul.mubr.f32.gmra.mrb[0].mxu0 %v253
        %v655 = vpop.f32.mrb[0].mxu0
        %v656 = vadd.f32 %v432, %v655
        %v657 = vpop.f32.mrb[0].mxu0
        %658 = vmatprep.mubr.f32.mxu0 0.0
        %659 = vmatmul.mubr.f32.gmra.mrb[0].mxu0 %v254
        %v660 = vpop.f32.mrb[0].mxu0
        %v661 = vadd.f32 %v437, %v660
        %v662 = vpop.f32.mrb[0].mxu0
        %663 = vmatprep.mubr.f32.mxu0 0.0
        %664 = vmatmul.mubr.f32.gmra.mrb[0].mxu0 %v255
        %v665 = vpop.f32.mrb[0].mxu0
        %v666 = vadd.f32 %v442, %v665
        %v667 = vpop.f32.mrb[0].mxu0
        %668 = vmatprep.mubr.f32.mxu0 0.0
        %669 = vmatmul.mubr.f32.gmra.mrb[0].mxu0 %v256
        %v670 = vpop.f32.mrb[0].mxu0
        %v671 = vadd.f32 %v447, %v670
        %v672 = vpop.f32.mrb[0].mxu0
        %673 = vmatprep.mubr.f32.mxu0 0.0
        %674 = vmatmul.mubr.f32.gmra.mrb[0].mxu0 %v257
        %v675 = vpop.f32.mrb[0].mxu0
        %v676 = vadd.f32 %v452, %v675
        %v677 = vpop.f32.mrb[0].mxu0
        %678 = vdwg.mxu0
        %vm679 = vcmask 261120
        %680 = vst.msk [vmem:[%s206] sm:$0xff] %vm679, %v521
        %681 = vst.msk [vmem:[%s206 + $0x8] sm:$0xff] %vm679, %v526
        %682 = vst.msk [vmem:[%s206 + $0x10] sm:$0xff] %vm679, %v531
        %683 = vst.msk [vmem:[%s206 + $0x18] sm:$0xff] %vm679, %v536
        %684 = vst.msk [vmem:[%s206 + $0x20] sm:$0xff] %vm679, %v541
        %685 = vst.msk [vmem:[%s206 + $0x28] sm:$0xff] %vm679, %v546
        %686 = vst.msk [vmem:[%s206 + $0x30] sm:$0xff] %vm679, %v551
        %687 = vst.msk [vmem:[%s206 + $0x38] sm:$0xff] %vm679, %v556
        %688 = vst.msk [vmem:[%s206 + $0x40] sm:$0xff] %vm679, %v561
        %689 = vst.msk [vmem:[%s206 + $0x48] sm:$0xff] %vm679, %v566
        %690 = vst.msk [vmem:[%s206 + $0x50] sm:$0xff] %vm679, %v571
        %691 = vst.msk [vmem:[%s206 + $0x58] sm:$0xff] %vm679, %v576
        %692 = vst.msk [vmem:[%s206 + $0x60] sm:$0xff] %vm679, %v581
        %693 = vst.msk [vmem:[%s206 + $0x68] sm:$0xff] %vm679, %v586
        %694 = vst.msk [vmem:[%s206 + $0x70] sm:$0xff] %vm679, %v591
        %695 = vst.msk [vmem:[%s206 + $0x78] sm:$0xff] %vm679, %v596
        %696 = vst.msk [vmem:[%s206 + $0x80] sm:$0xff] %vm679, %v601
        %697 = vst.msk [vmem:[%s206 + $0x88] sm:$0xff] %vm679, %v606
        %698 = vst.msk [vmem:[%s206 + $0x90] sm:$0xff] %vm679, %v611
        %699 = vst.msk [vmem:[%s206 + $0x98] sm:$0xff] %vm679, %v616
        %700 = vst.msk [vmem:[%s206 + $0xa0] sm:$0xff] %vm679, %v621
        %701 = vst.msk [vmem:[%s206 + $0xa8] sm:$0xff] %vm679, %v626
        %702 = vst.msk [vmem:[%s206 + $0xb0] sm:$0xff] %vm679, %v631
        %703 = vst.msk [vmem:[%s206 + $0xb8] sm:$0xff] %vm679, %v636
        %704 = vst.msk [vmem:[%s206 + $0xc0] sm:$0xff] %vm679, %v641
        %705 = vst.msk [vmem:[%s206 + $0xc8] sm:$0xff] %vm679, %v646
        %706 = vst.msk [vmem:[%s206 + $0xd0] sm:$0xff] %vm679, %v651
        %707 = vst.msk [vmem:[%s206 + $0xd8] sm:$0xff] %vm679, %v656
        %708 = vst.msk [vmem:[%s206 + $0xe0] sm:$0xff] %vm679, %v661
        %709 = vst.msk [vmem:[%s206 + $0xe8] sm:$0xff] %vm679, %v666
        %710 = vst.msk [vmem:[%s206 + $0xf0] sm:$0xff] %vm679, %v671
        %711 = vst.msk [vmem:[%s206 + $0xf8] sm:$0xff] %vm679, %v676
        %s712 = scalar_lea.vmem %s211, 32
        %v713 = vld [vmem:[%s712] sm:$0xff]
        %v714 = vld [vmem:[%s712 + $0x8] sm:$0xff]
        %v715 = vld [vmem:[%s712 + $0x10] sm:$0xff]
        %v716 = vld [vmem:[%s712 + $0x18] sm:$0xff]
        %717 = vmatprep.subr.mxu0 0.0
        %718 = vmatpush1.xpose.msra.mxu0 %v713
        %719 = vmatprep.subr.mxu0 0.0
        %720 = vmatpush1.xpose.msra.mxu0 %v714
        %721 = vmatprep.subr.mxu0 0.0
        %722 = vmatpush1.xpose.msra.mxu0 %v715
        %723 = vmatprep.subr.mxu0 0.0
        %724 = vmatpush1.xpose.msra.mxu0 %v716
        %725 = vmatprep.subr.mxu0 0.0
        %726 = vmatpush1.xpose.msra.mxu0 0.0
        %727 = vmatprep.subr.mxu0 0.0
        %728 = vmatpush1.xpose.msra.mxu0 0.0
        %729 = vmatprep.subr.mxu0 0.0
        %730 = vmatpush1.xpose.msra.mxu0 0.0
        %731 = vmatprep.subr.mxu0 0.0
        %732 = vmatpush1.xpose.msra.mxu0 0.0
        %733 = vmatprep.subr.mxu0 0.0
        %734 = vmatpush1.xpose.msra.mxu0 0.0
        %735 = vmatprep.subr.mxu0 0.0
        %736 = vmatpush1.xpose.msra.mxu0 0.0
        %737 = vmatprep.subr.mxu0 0.0
        %738 = vmatpush1.xpose.msra.mxu0 0.0
        %739 = vmatprep.subr.mxu0 0.0
        %740 = vmatpush1.xpose.msra.mxu0 0.0
        %741 = vmatprep.subr.mxu0 0.0
        %742 = vmatpush1.xpose.msra.mxu0 0.0
        %743 = vmatprep.subr.mxu0 0.0
        %744 = vmatpush1.xpose.msra.mxu0 0.0
        %745 = vmatprep.subr.mxu0 0.0
        %746 = vmatpush1.xpose.msra.mxu0 0.0
        %747 = vmatprep.subr.mxu0 0.0
        %748 = vmatpush1.xpose.msra.mxu0 0.0
        %749 = vmatprep.subr.mxu0 0.0
        %750 = vmatpush1.xpose.msra.mxu0 0.0
        %751 = vmatprep.subr.mxu0 0.0
        %752 = vmatpush1.xpose.msra.mxu0 0.0
        %753 = vmatprep.subr.mxu0 0.0
        %754 = vmatpush1.xpose.msra.mxu0 0.0
        %755 = vmatprep.subr.mxu0 0.0
        %756 = vmatpush1.xpose.msra.mxu0 0.0
        %757 = vmatprep.subr.mxu0 0.0
        %758 = vmatpush1.xpose.msra.mxu0 0.0
        %759 = vmatprep.subr.mxu0 0.0
        %760 = vmatpush1.xpose.msra.mxu0 0.0
        %761 = vmatprep.subr.mxu0 0.0
        %762 = vmatpush1.xpose.msra.mxu0 0.0
        %763 = vmatprep.subr.mxu0 0.0
        %764 = vmatpush1.xpose.msra.mxu0 0.0
        %765 = vmatprep.subr.mxu0 0.0
        %766 = vmatpush1.xpose.msra.mxu0 0.0
        %767 = vmatprep.subr.mxu0 0.0
        %768 = vmatpush1.xpose.msra.mxu0 0.0
        %769 = vmatprep.subr.mxu0 0.0
        %770 = vmatpush1.xpose.msra.mxu0 0.0
        %771 = vmatprep.subr.mxu0 0.0
        %772 = vmatpush1.xpose.msra.mxu0 0.0
        %773 = vmatprep.subr.mxu0 0.0
        %774 = vmatpush1.xpose.msra.mxu0 0.0
        %775 = vmatprep.subr.mxu0 0.0
        %776 = vmatpush1.xpose.msra.mxu0 0.0
        %777 = vmatprep.subr.mxu0 0.0
        %778 = vmatpush1.xpose.msra.mxu0 0.0
        %779 = vmatprep.subr.mxu0 0.0
        %780 = vmatpush1.xpose.msra.mxu0 0.0
        %781 = vmatprep.mubr.f32.mxu0 0.0
        %782 = vmatmul.mubr.f32.gmra.mrb[0].mxu0 %v226
        %v783 = vpop.f32.mrb[0].mxu0
        %v784 = vadd.f32 %v297, %v783
        %v785 = vpop.f32.mrb[0].mxu0
        %786 = vmatprep.mubr.f32.mxu0 0.0
        %787 = vmatmul.mubr.f32.gmra.mrb[0].mxu0 %v227
        %v788 = vpop.f32.mrb[0].mxu0
        %v789 = vadd.f32 %v302, %v788
        %v790 = vpop.f32.mrb[0].mxu0
        %791 = vmatprep.mubr.f32.mxu0 0.0
        %792 = vmatmul.mubr.f32.gmra.mrb[0].mxu0 %v228
        %v793 = vpop.f32.mrb[0].mxu0
        %v794 = vadd.f32 %v307, %v793
        %v795 = vpop.f32.mrb[0].mxu0
        %796 = vmatprep.mubr.f32.mxu0 0.0
        %797 = vmatmul.mubr.f32.gmra.mrb[0].mxu0 %v229
        %v798 = vpop.f32.mrb[0].mxu0
        %v799 = vadd.f32 %v312, %v798
        %v800 = vpop.f32.mrb[0].mxu0
        %801 = vmatprep.mubr.f32.mxu0 0.0
        %802 = vmatmul.mubr.f32.gmra.mrb[0].mxu0 %v230
        %v803 = vpop.f32.mrb[0].mxu0
        %v804 = vadd.f32 %v317, %v803
        %v805 = vpop.f32.mrb[0].mxu0
        %806 = vmatprep.mubr.f32.mxu0 0.0
        %807 = vmatmul.mubr.f32.gmra.mrb[0].mxu0 %v231
        %v808 = vpop.f32.mrb[0].mxu0
        %v809 = vadd.f32 %v322, %v808
        %v810 = vpop.f32.mrb[0].mxu0
        %811 = vmatprep.mubr.f32.mxu0 0.0
        %812 = vmatmul.mubr.f32.gmra.mrb[0].mxu0 %v232
        %v813 = vpop.f32.mrb[0].mxu0
        %v814 = vadd.f32 %v327, %v813
        %v815 = vpop.f32.mrb[0].mxu0
        %816 = vmatprep.mubr.f32.mxu0 0.0
        %817 = vmatmul.mubr.f32.gmra.mrb[0].mxu0 %v233
        %v818 = vpop.f32.mrb[0].mxu0
        %v819 = vadd.f32 %v332, %v818
        %v820 = vpop.f32.mrb[0].mxu0
        %821 = vmatprep.mubr.f32.mxu0 0.0
        %822 = vmatmul.mubr.f32.gmra.mrb[0].mxu0 %v234
        %v823 = vpop.f32.mrb[0].mxu0
        %v824 = vadd.f32 %v337, %v823
        %v825 = vpop.f32.mrb[0].mxu0
        %826 = vmatprep.mubr.f32.mxu0 0.0
        %827 = vmatmul.mubr.f32.gmra.mrb[0].mxu0 %v235
        %v828 = vpop.f32.mrb[0].mxu0
        %v829 = vadd.f32 %v342, %v828
        %v830 = vpop.f32.mrb[0].mxu0
        %831 = vmatprep.mubr.f32.mxu0 0.0
        %832 = vmatmul.mubr.f32.gmra.mrb[0].mxu0 %v236
        %v833 = vpop.f32.mrb[0].mxu0
        %v834 = vadd.f32 %v347, %v833
        %v835 = vpop.f32.mrb[0].mxu0
        %836 = vmatprep.mubr.f32.mxu0 0.0
        %837 = vmatmul.mubr.f32.gmra.mrb[0].mxu0 %v237
        %v838 = vpop.f32.mrb[0].mxu0
        %v839 = vadd.f32 %v352, %v838
        %v840 = vpop.f32.mrb[0].mxu0
        %841 = vmatprep.mubr.f32.mxu0 0.0
        %842 = vmatmul.mubr.f32.gmra.mrb[0].mxu0 %v238
        %v843 = vpop.f32.mrb[0].mxu0
        %v844 = vadd.f32 %v357, %v843
        %v845 = vpop.f32.mrb[0].mxu0
        %846 = vmatprep.mubr.f32.mxu0 0.0
        %847 = vmatmul.mubr.f32.gmra.mrb[0].mxu0 %v239
        %v848 = vpop.f32.mrb[0].mxu0
        %v849 = vadd.f32 %v362, %v848
        %v850 = vpop.f32.mrb[0].mxu0
        %851 = vmatprep.mubr.f32.mxu0 0.0
        %852 = vmatmul.mubr.f32.gmra.mrb[0].mxu0 %v240
        %v853 = vpop.f32.mrb[0].mxu0
        %v854 = vadd.f32 %v367, %v853
        %v855 = vpop.f32.mrb[0].mxu0
        %856 = vmatprep.mubr.f32.mxu0 0.0
        %857 = vmatmul.mubr.f32.gmra.mrb[0].mxu0 %v241
        %v858 = vpop.f32.mrb[0].mxu0
        %v859 = vadd.f32 %v372, %v858
        %v860 = vpop.f32.mrb[0].mxu0
        %861 = vmatprep.mubr.f32.mxu0 0.0
        %862 = vmatmul.mubr.f32.gmra.mrb[0].mxu0 %v242
        %v863 = vpop.f32.mrb[0].mxu0
        %v864 = vadd.f32 %v377, %v863
        %v865 = vpop.f32.mrb[0].mxu0
        %866 = vmatprep.mubr.f32.mxu0 0.0
        %867 = vmatmul.mubr.f32.gmra.mrb[0].mxu0 %v243
        %v868 = vpop.f32.mrb[0].mxu0
        %v869 = vadd.f32 %v382, %v868
        %v870 = vpop.f32.mrb[0].mxu0
        %871 = vmatprep.mubr.f32.mxu0 0.0
        %872 = vmatmul.mubr.f32.gmra.mrb[0].mxu0 %v244
        %v873 = vpop.f32.mrb[0].mxu0
        %v874 = vadd.f32 %v387, %v873
        %v875 = vpop.f32.mrb[0].mxu0
        %876 = vmatprep.mubr.f32.mxu0 0.0
        %877 = vmatmul.mubr.f32.gmra.mrb[0].mxu0 %v245
        %v878 = vpop.f32.mrb[0].mxu0
        %v879 = vadd.f32 %v392, %v878
        %v880 = vpop.f32.mrb[0].mxu0
        %881 = vmatprep.mubr.f32.mxu0 0.0
        %882 = vmatmul.mubr.f32.gmra.mrb[0].mxu0 %v246
        %v883 = vpop.f32.mrb[0].mxu0
        %v884 = vadd.f32 %v397, %v883
        %v885 = vpop.f32.mrb[0].mxu0
        %886 = vmatprep.mubr.f32.mxu0 0.0
        %887 = vmatmul.mubr.f32.gmra.mrb[0].mxu0 %v247
        %v888 = vpop.f32.mrb[0].mxu0
        %v889 = vadd.f32 %v402, %v888
        %v890 = vpop.f32.mrb[0].mxu0
        %891 = vmatprep.mubr.f32.mxu0 0.0
        %892 = vmatmul.mubr.f32.gmra.mrb[0].mxu0 %v248
        %v893 = vpop.f32.mrb[0].mxu0
        %v894 = vadd.f32 %v407, %v893
        %v895 = vpop.f32.mrb[0].mxu0
        %896 = vmatprep.mubr.f32.mxu0 0.0
        %897 = vmatmul.mubr.f32.gmra.mrb[0].mxu0 %v249
        %v898 = vpop.f32.mrb[0].mxu0
        %v899 = vadd.f32 %v412, %v898
        %v900 = vpop.f32.mrb[0].mxu0
        %901 = vmatprep.mubr.f32.mxu0 0.0
        %902 = vmatmul.mubr.f32.gmra.mrb[0].mxu0 %v250
        %v903 = vpop.f32.mrb[0].mxu0
        %v904 = vadd.f32 %v417, %v903
        %v905 = vpop.f32.mrb[0].mxu0
        %906 = vmatprep.mubr.f32.mxu0 0.0
        %907 = vmatmul.mubr.f32.gmra.mrb[0].mxu0 %v251
        %v908 = vpop.f32.mrb[0].mxu0
        %v909 = vadd.f32 %v422, %v908
        %v910 = vpop.f32.mrb[0].mxu0
        %911 = vmatprep.mubr.f32.mxu0 0.0
        %912 = vmatmul.mubr.f32.gmra.mrb[0].mxu0 %v252
        %v913 = vpop.f32.mrb[0].mxu0
        %v914 = vadd.f32 %v427, %v913
        %v915 = vpop.f32.mrb[0].mxu0
        %916 = vmatprep.mubr.f32.mxu0 0.0
        %917 = vmatmul.mubr.f32.gmra.mrb[0].mxu0 %v253
        %v918 = vpop.f32.mrb[0].mxu0
        %v919 = vadd.f32 %v432, %v918
        %v920 = vpop.f32.mrb[0].mxu0
        %921 = vmatprep.mubr.f32.mxu0 0.0
        %922 = vmatmul.mubr.f32.gmra.mrb[0].mxu0 %v254
        %v923 = vpop.f32.mrb[0].mxu0
        %v924 = vadd.f32 %v437, %v923
        %v925 = vpop.f32.mrb[0].mxu0
        %926 = vmatprep.mubr.f32.mxu0 0.0
        %927 = vmatmul.mubr.f32.gmra.mrb[0].mxu0 %v255
        %v928 = vpop.f32.mrb[0].mxu0
        %v929 = vadd.f32 %v442, %v928
        %v930 = vpop.f32.mrb[0].mxu0
        %931 = vmatprep.mubr.f32.mxu0 0.0
        %932 = vmatmul.mubr.f32.gmra.mrb[0].mxu0 %v256
        %v933 = vpop.f32.mrb[0].mxu0
        %v934 = vadd.f32 %v447, %v933
        %v935 = vpop.f32.mrb[0].mxu0
        %936 = vmatprep.mubr.f32.mxu0 0.0
        %937 = vmatmul.mubr.f32.gmra.mrb[0].mxu0 %v257
        %v938 = vpop.f32.mrb[0].mxu0
        %v939 = vadd.f32 %v452, %v938
        %v940 = vpop.f32.mrb[0].mxu0
        %941 = vdwg.mxu0
        %s942 = scalar_lea.vmem %s206, 256 [#allocation2]
        %943 = vst.msk [vmem:[%s942] sm:$0xff] %vm679, %v784
        %944 = vst.msk [vmem:[%s942 + $0x8] sm:$0xff] %vm679, %v789
        %945 = vst.msk [vmem:[%s942 + $0x10] sm:$0xff] %vm679, %v794
        %946 = vst.msk [vmem:[%s942 + $0x18] sm:$0xff] %vm679, %v799
        %947 = vst.msk [vmem:[%s942 + $0x20] sm:$0xff] %vm679, %v804
        %948 = vst.msk [vmem:[%s942 + $0x28] sm:$0xff] %vm679, %v809
        %949 = vst.msk [vmem:[%s942 + $0x30] sm:$0xff] %vm679, %v814
        %950 = vst.msk [vmem:[%s942 + $0x38] sm:$0xff] %vm679, %v819
        %951 = vst.msk [vmem:[%s942 + $0x40] sm:$0xff] %vm679, %v824
        %952 = vst.msk [vmem:[%s942 + $0x48] sm:$0xff] %vm679, %v829
        %953 = vst.msk [vmem:[%s942 + $0x50] sm:$0xff] %vm679, %v834
        %954 = vst.msk [vmem:[%s942 + $0x58] sm:$0xff] %vm679, %v839
        %955 = vst.msk [vmem:[%s942 + $0x60] sm:$0xff] %vm679, %v844
        %956 = vst.msk [vmem:[%s942 + $0x68] sm:$0xff] %vm679, %v849
        %957 = vst.msk [vmem:[%s942 + $0x70] sm:$0xff] %vm679, %v854
        %958 = vst.msk [vmem:[%s942 + $0x78] sm:$0xff] %vm679, %v859
        %959 = vst.msk [vmem:[%s942 + $0x80] sm:$0xff] %vm679, %v864
        %960 = vst.msk [vmem:[%s942 + $0x88] sm:$0xff] %vm679, %v869
        %961 = vst.msk [vmem:[%s942 + $0x90] sm:$0xff] %vm679, %v874
        %962 = vst.msk [vmem:[%s942 + $0x98] sm:$0xff] %vm679, %v879
        %963 = vst.msk [vmem:[%s942 + $0xa0] sm:$0xff] %vm679, %v884
        %964 = vst.msk [vmem:[%s942 + $0xa8] sm:$0xff] %vm679, %v889
        %965 = vst.msk [vmem:[%s942 + $0xb0] sm:$0xff] %vm679, %v894
        %966 = vst.msk [vmem:[%s942 + $0xb8] sm:$0xff] %vm679, %v899
        %967 = vst.msk [vmem:[%s942 + $0xc0] sm:$0xff] %vm679, %v904
        %968 = vst.msk [vmem:[%s942 + $0xc8] sm:$0xff] %vm679, %v909
        %969 = vst.msk [vmem:[%s942 + $0xd0] sm:$0xff] %vm679, %v914
        %970 = vst.msk [vmem:[%s942 + $0xd8] sm:$0xff] %vm679, %v919
        %971 = vst.msk [vmem:[%s942 + $0xe0] sm:$0xff] %vm679, %v924
        %972 = vst.msk [vmem:[%s942 + $0xe8] sm:$0xff] %vm679, %v929
        %973 = vst.msk [vmem:[%s942 + $0xf0] sm:$0xff] %vm679, %v934
        %974 = vst.msk [vmem:[%s942 + $0xf8] sm:$0xff] %vm679, %v939
        %s975 = scalar_lea.vmem %s211, 64
        %v976 = vld [vmem:[%s975] sm:$0xff]
        %v977 = vld [vmem:[%s975 + $0x8] sm:$0xff]
        %v978 = vld [vmem:[%s975 + $0x10] sm:$0xff]
        %v979 = vld [vmem:[%s975 + $0x18] sm:$0xff]
        %980 = vmatprep.subr.mxu0 0.0
        %981 = vmatpush1.xpose.msra.mxu0 %v976
        %982 = vmatprep.subr.mxu0 0.0
        %983 = vmatpush1.xpose.msra.mxu0 %v977
        %984 = vmatprep.subr.mxu0 0.0
        %985 = vmatpush1.xpose.msra.mxu0 %v978
        %986 = vmatprep.subr.mxu0 0.0
        %987 = vmatpush1.xpose.msra.mxu0 %v979
        %988 = vmatprep.subr.mxu0 0.0
        %989 = vmatpush1.xpose.msra.mxu0 0.0
        %990 = vmatprep.subr.mxu0 0.0
        %991 = vmatpush1.xpose.msra.mxu0 0.0
        %992 = vmatprep.subr.mxu0 0.0
        %993 = vmatpush1.xpose.msra.mxu0 0.0
        %994 = vmatprep.subr.mxu0 0.0
        %995 = vmatpush1.xpose.msra.mxu0 0.0
        %996 = vmatprep.subr.mxu0 0.0
        %997 = vmatpush1.xpose.msra.mxu0 0.0
        %998 = vmatprep.subr.mxu0 0.0
        %999 = vmatpush1.xpose.msra.mxu0 0.0
        %1000 = vmatprep.subr.mxu0 0.0
        %1001 = vmatpush1.xpose.msra.mxu0 0.0
        %1002 = vmatprep.subr.mxu0 0.0
        %1003 = vmatpush1.xpose.msra.mxu0 0.0
        %1004 = vmatprep.subr.mxu0 0.0
        %1005 = vmatpush1.xpose.msra.mxu0 0.0
        %1006 = vmatprep.subr.mxu0 0.0
        %1007 = vmatpush1.xpose.msra.mxu0 0.0
        %1008 = vmatprep.subr.mxu0 0.0
        %1009 = vmatpush1.xpose.msra.mxu0 0.0
        %1010 = vmatprep.subr.mxu0 0.0
        %1011 = vmatpush1.xpose.msra.mxu0 0.0
        %1012 = vmatprep.subr.mxu0 0.0
        %1013 = vmatpush1.xpose.msra.mxu0 0.0
        %1014 = vmatprep.subr.mxu0 0.0
        %1015 = vmatpush1.xpose.msra.mxu0 0.0
        %1016 = vmatprep.subr.mxu0 0.0
        %1017 = vmatpush1.xpose.msra.mxu0 0.0
        %1018 = vmatprep.subr.mxu0 0.0
        %1019 = vmatpush1.xpose.msra.mxu0 0.0
        %1020 = vmatprep.subr.mxu0 0.0
        %1021 = vmatpush1.xpose.msra.mxu0 0.0
        %1022 = vmatprep.subr.mxu0 0.0
        %1023 = vmatpush1.xpose.msra.mxu0 0.0
        %1024 = vmatprep.subr.mxu0 0.0
        %1025 = vmatpush1.xpose.msra.mxu0 0.0
        %1026 = vmatprep.subr.mxu0 0.0
        %1027 = vmatpush1.xpose.msra.mxu0 0.0
        %1028 = vmatprep.subr.mxu0 0.0
        %1029 = vmatpush1.xpose.msra.mxu0 0.0
        %1030 = vmatprep.subr.mxu0 0.0
        %1031 = vmatpush1.xpose.msra.mxu0 0.0
        %1032 = vmatprep.subr.mxu0 0.0
        %1033 = vmatpush1.xpose.msra.mxu0 0.0
        %1034 = vmatprep.subr.mxu0 0.0
        %1035 = vmatpush1.xpose.msra.mxu0 0.0
        %1036 = vmatprep.subr.mxu0 0.0
        %1037 = vmatpush1.xpose.msra.mxu0 0.0
        %1038 = vmatprep.subr.mxu0 0.0
        %1039 = vmatpush1.xpose.msra.mxu0 0.0
        %1040 = vmatprep.subr.mxu0 0.0
        %1041 = vmatpush1.xpose.msra.mxu0 0.0
        %1042 = vmatprep.subr.mxu0 0.0
        %1043 = vmatpush1.xpose.msra.mxu0 0.0
        %1044 = vmatprep.mubr.f32.mxu0 0.0
        %1045 = vmatmul.mubr.f32.gmra.mrb[0].mxu0 %v226
        %v1046 = vpop.f32.mrb[0].mxu0
        %v1047 = vadd.f32 %v297, %v1046
        %v1048 = vpop.f32.mrb[0].mxu0
        %1049 = vmatprep.mubr.f32.mxu0 0.0
        %1050 = vmatmul.mubr.f32.gmra.mrb[0].mxu0 %v227
        %v1051 = vpop.f32.mrb[0].mxu0
        %v1052 = vadd.f32 %v302, %v1051
        %v1053 = vpop.f32.mrb[0].mxu0
        %1054 = vmatprep.mubr.f32.mxu0 0.0
        %1055 = vmatmul.mubr.f32.gmra.mrb[0].mxu0 %v228
        %v1056 = vpop.f32.mrb[0].mxu0
        %v1057 = vadd.f32 %v307, %v1056
        %v1058 = vpop.f32.mrb[0].mxu0
        %1059 = vmatprep.mubr.f32.mxu0 0.0
        %1060 = vmatmul.mubr.f32.gmra.mrb[0].mxu0 %v229
        %v1061 = vpop.f32.mrb[0].mxu0
        %v1062 = vadd.f32 %v312, %v1061
        %v1063 = vpop.f32.mrb[0].mxu0
        %1064 = vmatprep.mubr.f32.mxu0 0.0
        %1065 = vmatmul.mubr.f32.gmra.mrb[0].mxu0 %v230
        %v1066 = vpop.f32.mrb[0].mxu0
        %v1067 = vadd.f32 %v317, %v1066
        %v1068 = vpop.f32.mrb[0].mxu0
        %1069 = vmatprep.mubr.f32.mxu0 0.0
        %1070 = vmatmul.mubr.f32.gmra.mrb[0].mxu0 %v231
        %v1071 = vpop.f32.mrb[0].mxu0
        %v1072 = vadd.f32 %v322, %v1071
        %v1073 = vpop.f32.mrb[0].mxu0
        %1074 = vmatprep.mubr.f32.mxu0 0.0
        %1075 = vmatmul.mubr.f32.gmra.mrb[0].mxu0 %v232
        %v1076 = vpop.f32.mrb[0].mxu0
        %v1077 = vadd.f32 %v327, %v1076
        %v1078 = vpop.f32.mrb[0].mxu0
        %1079 = vmatprep.mubr.f32.mxu0 0.0
        %1080 = vmatmul.mubr.f32.gmra.mrb[0].mxu0 %v233
        %v1081 = vpop.f32.mrb[0].mxu0
        %v1082 = vadd.f32 %v332, %v1081
        %v1083 = vpop.f32.mrb[0].mxu0
        %1084 = vmatprep.mubr.f32.mxu0 0.0
        %1085 = vmatmul.mubr.f32.gmra.mrb[0].mxu0 %v234
        %v1086 = vpop.f32.mrb[0].mxu0
        %v1087 = vadd.f32 %v337, %v1086
        %v1088 = vpop.f32.mrb[0].mxu0
        %1089 = vmatprep.mubr.f32.mxu0 0.0
        %1090 = vmatmul.mubr.f32.gmra.mrb[0].mxu0 %v235
        %v1091 = vpop.f32.mrb[0].mxu0
        %v1092 = vadd.f32 %v342, %v1091
        %v1093 = vpop.f32.mrb[0].mxu0
        %1094 = vmatprep.mubr.f32.mxu0 0.0
        %1095 = vmatmul.mubr.f32.gmra.mrb[0].mxu0 %v236
        %v1096 = vpop.f32.mrb[0].mxu0
        %v1097 = vadd.f32 %v347, %v1096
        %v1098 = vpop.f32.mrb[0].mxu0
        %1099 = vmatprep.mubr.f32.mxu0 0.0
        %1100 = vmatmul.mubr.f32.gmra.mrb[0].mxu0 %v237
        %v1101 = vpop.f32.mrb[0].mxu0
        %v1102 = vadd.f32 %v352, %v1101
        %v1103 = vpop.f32.mrb[0].mxu0
        %1104 = vmatprep.mubr.f32.mxu0 0.0
        %1105 = vmatmul.mubr.f32.gmra.mrb[0].mxu0 %v238
        %v1106 = vpop.f32.mrb[0].mxu0
        %v1107 = vadd.f32 %v357, %v1106
        %v1108 = vpop.f32.mrb[0].mxu0
        %1109 = vmatprep.mubr.f32.mxu0 0.0
        %1110 = vmatmul.mubr.f32.gmra.mrb[0].mxu0 %v239
        %v1111 = vpop.f32.mrb[0].mxu0
        %v1112 = vadd.f32 %v362, %v1111
        %v1113 = vpop.f32.mrb[0].mxu0
        %1114 = vmatprep.mubr.f32.mxu0 0.0
        %1115 = vmatmul.mubr.f32.gmra.mrb[0].mxu0 %v240
        %v1116 = vpop.f32.mrb[0].mxu0
        %v1117 = vadd.f32 %v367, %v1116
        %v1118 = vpop.f32.mrb[0].mxu0
        %1119 = vmatprep.mubr.f32.mxu0 0.0
        %1120 = vmatmul.mubr.f32.gmra.mrb[0].mxu0 %v241
        %v1121 = vpop.f32.mrb[0].mxu0
        %v1122 = vadd.f32 %v372, %v1121
        %v1123 = vpop.f32.mrb[0].mxu0
        %1124 = vmatprep.mubr.f32.mxu0 0.0
        %1125 = vmatmul.mubr.f32.gmra.mrb[0].mxu0 %v242
        %v1126 = vpop.f32.mrb[0].mxu0
        %v1127 = vadd.f32 %v377, %v1126
        %v1128 = vpop.f32.mrb[0].mxu0
        %1129 = vmatprep.mubr.f32.mxu0 0.0
        %1130 = vmatmul.mubr.f32.gmra.mrb[0].mxu0 %v243
        %v1131 = vpop.f32.mrb[0].mxu0
        %v1132 = vadd.f32 %v382, %v1131
        %v1133 = vpop.f32.mrb[0].mxu0
        %1134 = vmatprep.mubr.f32.mxu0 0.0
        %1135 = vmatmul.mubr.f32.gmra.mrb[0].mxu0 %v244
        %v1136 = vpop.f32.mrb[0].mxu0
        %v1137 = vadd.f32 %v387, %v1136
        %v1138 = vpop.f32.mrb[0].mxu0
        %1139 = vmatprep.mubr.f32.mxu0 0.0
        %1140 = vmatmul.mubr.f32.gmra.mrb[0].mxu0 %v245
        %v1141 = vpop.f32.mrb[0].mxu0
        %v1142 = vadd.f32 %v392, %v1141
        %v1143 = vpop.f32.mrb[0].mxu0
        %1144 = vmatprep.mubr.f32.mxu0 0.0
        %1145 = vmatmul.mubr.f32.gmra.mrb[0].mxu0 %v246
        %v1146 = vpop.f32.mrb[0].mxu0
        %v1147 = vadd.f32 %v397, %v1146
        %v1148 = vpop.f32.mrb[0].mxu0
        %1149 = vmatprep.mubr.f32.mxu0 0.0
        %1150 = vmatmul.mubr.f32.gmra.mrb[0].mxu0 %v247
        %v1151 = vpop.f32.mrb[0].mxu0
        %v1152 = vadd.f32 %v402, %v1151
        %v1153 = vpop.f32.mrb[0].mxu0
        %1154 = vmatprep.mubr.f32.mxu0 0.0
        %1155 = vmatmul.mubr.f32.gmra.mrb[0].mxu0 %v248
        %v1156 = vpop.f32.mrb[0].mxu0
        %v1157 = vadd.f32 %v407, %v1156
        %v1158 = vpop.f32.mrb[0].mxu0
        %1159 = vmatprep.mubr.f32.mxu0 0.0
        %1160 = vmatmul.mubr.f32.gmra.mrb[0].mxu0 %v249
        %v1161 = vpop.f32.mrb[0].mxu0
        %v1162 = vadd.f32 %v412, %v1161
        %v1163 = vpop.f32.mrb[0].mxu0
        %1164 = vmatprep.mubr.f32.mxu0 0.0
        %1165 = vmatmul.mubr.f32.gmra.mrb[0].mxu0 %v250
        %v1166 = vpop.f32.mrb[0].mxu0
        %v1167 = vadd.f32 %v417, %v1166
        %v1168 = vpop.f32.mrb[0].mxu0
        %1169 = vmatprep.mubr.f32.mxu0 0.0
        %1170 = vmatmul.mubr.f32.gmra.mrb[0].mxu0 %v251
        %v1171 = vpop.f32.mrb[0].mxu0
        %v1172 = vadd.f32 %v422, %v1171
        %v1173 = vpop.f32.mrb[0].mxu0
        %1174 = vmatprep.mubr.f32.mxu0 0.0
        %1175 = vmatmul.mubr.f32.gmra.mrb[0].mxu0 %v252
        %v1176 = vpop.f32.mrb[0].mxu0
        %v1177 = vadd.f32 %v427, %v1176
        %v1178 = vpop.f32.mrb[0].mxu0
        %1179 = vmatprep.mubr.f32.mxu0 0.0
        %1180 = vmatmul.mubr.f32.gmra.mrb[0].mxu0 %v253
        %v1181 = vpop.f32.mrb[0].mxu0
        %v1182 = vadd.f32 %v432, %v1181
        %v1183 = vpop.f32.mrb[0].mxu0
        %1184 = vmatprep.mubr.f32.mxu0 0.0
        %1185 = vmatmul.mubr.f32.gmra.mrb[0].mxu0 %v254
        %v1186 = vpop.f32.mrb[0].mxu0
        %v1187 = vadd.f32 %v437, %v1186
        %v1188 = vpop.f32.mrb[0].mxu0
        %1189 = vmatprep.mubr.f32.mxu0 0.0
        %1190 = vmatmul.mubr.f32.gmra.mrb[0].mxu0 %v255
        %v1191 = vpop.f32.mrb[0].mxu0
        %v1192 = vadd.f32 %v442, %v1191
        %v1193 = vpop.f32.mrb[0].mxu0
        %1194 = vmatprep.mubr.f32.mxu0 0.0
        %1195 = vmatmul.mubr.f32.gmra.mrb[0].mxu0 %v256
        %v1196 = vpop.f32.mrb[0].mxu0
        %v1197 = vadd.f32 %v447, %v1196
        %v1198 = vpop.f32.mrb[0].mxu0
        %1199 = vmatprep.mubr.f32.mxu0 0.0
        %1200 = vmatmul.mubr.f32.gmra.mrb[0].mxu0 %v257
        %v1201 = vpop.f32.mrb[0].mxu0
        %v1202 = vadd.f32 %v452, %v1201
        %v1203 = vpop.f32.mrb[0].mxu0
        %1204 = vdwg.mxu0
        %s1205 = scalar_lea.vmem %s206, 512 [#allocation2]
        %1206 = vst.msk [vmem:[%s1205] sm:$0xff] %vm679, %v1047
        %1207 = vst.msk [vmem:[%s1205 + $0x8] sm:$0xff] %vm679, %v1052
        %1208 = vst.msk [vmem:[%s1205 + $0x10] sm:$0xff] %vm679, %v1057
        %1209 = vst.msk [vmem:[%s1205 + $0x18] sm:$0xff] %vm679, %v1062
        %1210 = vst.msk [vmem:[%s1205 + $0x20] sm:$0xff] %vm679, %v1067
        %1211 = vst.msk [vmem:[%s1205 + $0x28] sm:$0xff] %vm679, %v1072
        %1212 = vst.msk [vmem:[%s1205 + $0x30] sm:$0xff] %vm679, %v1077
        %1213 = vst.msk [vmem:[%s1205 + $0x38] sm:$0xff] %vm679, %v1082
        %1214 = vst.msk [vmem:[%s1205 + $0x40] sm:$0xff] %vm679, %v1087
        %1215 = vst.msk [vmem:[%s1205 + $0x48] sm:$0xff] %vm679, %v1092
        %1216 = vst.msk [vmem:[%s1205 + $0x50] sm:$0xff] %vm679, %v1097
        %1217 = vst.msk [vmem:[%s1205 + $0x58] sm:$0xff] %vm679, %v1102
        %1218 = vst.msk [vmem:[%s1205 + $0x60] sm:$0xff] %vm679, %v1107
        %1219 = vst.msk [vmem:[%s1205 + $0x68] sm:$0xff] %vm679, %v1112
        %1220 = vst.msk [vmem:[%s1205 + $0x70] sm:$0xff] %vm679, %v1117
        %1221 = vst.msk [vmem:[%s1205 + $0x78] sm:$0xff] %vm679, %v1122
        %1222 = vst.msk [vmem:[%s1205 + $0x80] sm:$0xff] %vm679, %v1127
        %1223 = vst.msk [vmem:[%s1205 + $0x88] sm:$0xff] %vm679, %v1132
        %1224 = vst.msk [vmem:[%s1205 + $0x90] sm:$0xff] %vm679, %v1137
        %1225 = vst.msk [vmem:[%s1205 + $0x98] sm:$0xff] %vm679, %v1142
        %1226 = vst.msk [vmem:[%s1205 + $0xa0] sm:$0xff] %vm679, %v1147
        %1227 = vst.msk [vmem:[%s1205 + $0xa8] sm:$0xff] %vm679, %v1152
        %1228 = vst.msk [vmem:[%s1205 + $0xb0] sm:$0xff] %vm679, %v1157
        %1229 = vst.msk [vmem:[%s1205 + $0xb8] sm:$0xff] %vm679, %v1162
        %1230 = vst.msk [vmem:[%s1205 + $0xc0] sm:$0xff] %vm679, %v1167
        %1231 = vst.msk [vmem:[%s1205 + $0xc8] sm:$0xff] %vm679, %v1172
        %1232 = vst.msk [vmem:[%s1205 + $0xd0] sm:$0xff] %vm679, %v1177
        %1233 = vst.msk [vmem:[%s1205 + $0xd8] sm:$0xff] %vm679, %v1182
        %1234 = vst.msk [vmem:[%s1205 + $0xe0] sm:$0xff] %vm679, %v1187
        %1235 = vst.msk [vmem:[%s1205 + $0xe8] sm:$0xff] %vm679, %v1192
        %1236 = vst.msk [vmem:[%s1205 + $0xf0] sm:$0xff] %vm679, %v1197
        %1237 = vst.msk [vmem:[%s1205 + $0xf8] sm:$0xff] %vm679, %v1202
        %s1238 = scalar_lea.vmem %s211, 96
        %v1239 = vld [vmem:[%s1238] sm:$0xff]
        %v1240 = vld [vmem:[%s1238 + $0x8] sm:$0xff]
        %v1241 = vld [vmem:[%s1238 + $0x10] sm:$0xff]
        %v1242 = vld [vmem:[%s1238 + $0x18] sm:$0xff]
        %1243 = vmatprep.subr.mxu0 0.0
        %1244 = vmatpush1.xpose.msra.mxu0 %v1239
        %1245 = vmatprep.subr.mxu0 0.0
        %1246 = vmatpush1.xpose.msra.mxu0 %v1240
        %1247 = vmatprep.subr.mxu0 0.0
        %1248 = vmatpush1.xpose.msra.mxu0 %v1241
        %1249 = vmatprep.subr.mxu0 0.0
        %1250 = vmatpush1.xpose.msra.mxu0 %v1242
        %1251 = vmatprep.subr.mxu0 0.0
        %1252 = vmatpush1.xpose.msra.mxu0 0.0
        %1253 = vmatprep.subr.mxu0 0.0
        %1254 = vmatpush1.xpose.msra.mxu0 0.0
        %1255 = vmatprep.subr.mxu0 0.0
        %1256 = vmatpush1.xpose.msra.mxu0 0.0
        %1257 = vmatprep.subr.mxu0 0.0
        %1258 = vmatpush1.xpose.msra.mxu0 0.0
        %1259 = vmatprep.subr.mxu0 0.0
        %1260 = vmatpush1.xpose.msra.mxu0 0.0
        %1261 = vmatprep.subr.mxu0 0.0
        %1262 = vmatpush1.xpose.msra.mxu0 0.0
        %1263 = vmatprep.subr.mxu0 0.0
        %1264 = vmatpush1.xpose.msra.mxu0 0.0
        %1265 = vmatprep.subr.mxu0 0.0
        %1266 = vmatpush1.xpose.msra.mxu0 0.0
        %1267 = vmatprep.subr.mxu0 0.0
        %1268 = vmatpush1.xpose.msra.mxu0 0.0
        %1269 = vmatprep.subr.mxu0 0.0
        %1270 = vmatpush1.xpose.msra.mxu0 0.0
        %1271 = vmatprep.subr.mxu0 0.0
        %1272 = vmatpush1.xpose.msra.mxu0 0.0
        %1273 = vmatprep.subr.mxu0 0.0
        %1274 = vmatpush1.xpose.msra.mxu0 0.0
        %1275 = vmatprep.subr.mxu0 0.0
        %1276 = vmatpush1.xpose.msra.mxu0 0.0
        %1277 = vmatprep.subr.mxu0 0.0
        %1278 = vmatpush1.xpose.msra.mxu0 0.0
        %1279 = vmatprep.subr.mxu0 0.0
        %1280 = vmatpush1.xpose.msra.mxu0 0.0
        %1281 = vmatprep.subr.mxu0 0.0
        %1282 = vmatpush1.xpose.msra.mxu0 0.0
        %1283 = vmatprep.subr.mxu0 0.0
        %1284 = vmatpush1.xpose.msra.mxu0 0.0
        %1285 = vmatprep.subr.mxu0 0.0
        %1286 = vmatpush1.xpose.msra.mxu0 0.0
        %1287 = vmatprep.subr.mxu0 0.0
        %1288 = vmatpush1.xpose.msra.mxu0 0.0
        %1289 = vmatprep.subr.mxu0 0.0
        %1290 = vmatpush1.xpose.msra.mxu0 0.0
        %1291 = vmatprep.subr.mxu0 0.0
        %1292 = vmatpush1.xpose.msra.mxu0 0.0
        %1293 = vmatprep.subr.mxu0 0.0
        %1294 = vmatpush1.xpose.msra.mxu0 0.0
        %1295 = vmatprep.subr.mxu0 0.0
        %1296 = vmatpush1.xpose.msra.mxu0 0.0
        %1297 = vmatprep.subr.mxu0 0.0
        %1298 = vmatpush1.xpose.msra.mxu0 0.0
        %1299 = vmatprep.subr.mxu0 0.0
        %1300 = vmatpush1.xpose.msra.mxu0 0.0
        %1301 = vmatprep.subr.mxu0 0.0
        %1302 = vmatpush1.xpose.msra.mxu0 0.0
        %1303 = vmatprep.subr.mxu0 0.0
        %1304 = vmatpush1.xpose.msra.mxu0 0.0
        %1305 = vmatprep.subr.mxu0 0.0
        %1306 = vmatpush1.xpose.msra.mxu0 0.0
        %1307 = vmatprep.mubr.f32.mxu0 0.0
        %1308 = vmatmul.mubr.f32.gmra.mrb[0].mxu0 %v226
        %v1309 = vpop.f32.mrb[0].mxu0
        %v1310 = vadd.f32 %v297, %v1309
        %v1311 = vpop.f32.mrb[0].mxu0
        %1312 = vmatprep.mubr.f32.mxu0 0.0
        %1313 = vmatmul.mubr.f32.gmra.mrb[0].mxu0 %v227
        %v1314 = vpop.f32.mrb[0].mxu0
        %v1315 = vadd.f32 %v302, %v1314
        %v1316 = vpop.f32.mrb[0].mxu0
        %1317 = vmatprep.mubr.f32.mxu0 0.0
        %1318 = vmatmul.mubr.f32.gmra.mrb[0].mxu0 %v228
        %v1319 = vpop.f32.mrb[0].mxu0
        %v1320 = vadd.f32 %v307, %v1319
        %v1321 = vpop.f32.mrb[0].mxu0
        %1322 = vmatprep.mubr.f32.mxu0 0.0
        %1323 = vmatmul.mubr.f32.gmra.mrb[0].mxu0 %v229
        %v1324 = vpop.f32.mrb[0].mxu0
        %v1325 = vadd.f32 %v312, %v1324
        %v1326 = vpop.f32.mrb[0].mxu0
        %1327 = vmatprep.mubr.f32.mxu0 0.0
        %1328 = vmatmul.mubr.f32.gmra.mrb[0].mxu0 %v230
        %v1329 = vpop.f32.mrb[0].mxu0
        %v1330 = vadd.f32 %v317, %v1329
        %v1331 = vpop.f32.mrb[0].mxu0
        %1332 = vmatprep.mubr.f32.mxu0 0.0
        %1333 = vmatmul.mubr.f32.gmra.mrb[0].mxu0 %v231
        %v1334 = vpop.f32.mrb[0].mxu0
        %v1335 = vadd.f32 %v322, %v1334
        %v1336 = vpop.f32.mrb[0].mxu0
        %1337 = vmatprep.mubr.f32.mxu0 0.0
        %1338 = vmatmul.mubr.f32.gmra.mrb[0].mxu0 %v232
        %v1339 = vpop.f32.mrb[0].mxu0
        %v1340 = vadd.f32 %v327, %v1339
        %v1341 = vpop.f32.mrb[0].mxu0
        %1342 = vmatprep.mubr.f32.mxu0 0.0
        %1343 = vmatmul.mubr.f32.gmra.mrb[0].mxu0 %v233
        %v1344 = vpop.f32.mrb[0].mxu0
        %v1345 = vadd.f32 %v332, %v1344
        %v1346 = vpop.f32.mrb[0].mxu0
        %1347 = vmatprep.mubr.f32.mxu0 0.0
        %1348 = vmatmul.mubr.f32.gmra.mrb[0].mxu0 %v234
        %v1349 = vpop.f32.mrb[0].mxu0
        %v1350 = vadd.f32 %v337, %v1349
        %v1351 = vpop.f32.mrb[0].mxu0
        %1352 = vmatprep.mubr.f32.mxu0 0.0
        %1353 = vmatmul.mubr.f32.gmra.mrb[0].mxu0 %v235
        %v1354 = vpop.f32.mrb[0].mxu0
        %v1355 = vadd.f32 %v342, %v1354
        %v1356 = vpop.f32.mrb[0].mxu0
        %1357 = vmatprep.mubr.f32.mxu0 0.0
        %1358 = vmatmul.mubr.f32.gmra.mrb[0].mxu0 %v236
        %v1359 = vpop.f32.mrb[0].mxu0
        %v1360 = vadd.f32 %v347, %v1359
        %v1361 = vpop.f32.mrb[0].mxu0
        %1362 = vmatprep.mubr.f32.mxu0 0.0
        %1363 = vmatmul.mubr.f32.gmra.mrb[0].mxu0 %v237
        %v1364 = vpop.f32.mrb[0].mxu0
        %v1365 = vadd.f32 %v352, %v1364
        %v1366 = vpop.f32.mrb[0].mxu0
        %1367 = vmatprep.mubr.f32.mxu0 0.0
        %1368 = vmatmul.mubr.f32.gmra.mrb[0].mxu0 %v238
        %v1369 = vpop.f32.mrb[0].mxu0
        %v1370 = vadd.f32 %v357, %v1369
        %v1371 = vpop.f32.mrb[0].mxu0
        %1372 = vmatprep.mubr.f32.mxu0 0.0
        %1373 = vmatmul.mubr.f32.gmra.mrb[0].mxu0 %v239
        %v1374 = vpop.f32.mrb[0].mxu0
        %v1375 = vadd.f32 %v362, %v1374
        %v1376 = vpop.f32.mrb[0].mxu0
        %1377 = vmatprep.mubr.f32.mxu0 0.0
        %1378 = vmatmul.mubr.f32.gmra.mrb[0].mxu0 %v240
        %v1379 = vpop.f32.mrb[0].mxu0
        %v1380 = vadd.f32 %v367, %v1379
        %v1381 = vpop.f32.mrb[0].mxu0
        %1382 = vmatprep.mubr.f32.mxu0 0.0
        %1383 = vmatmul.mubr.f32.gmra.mrb[0].mxu0 %v241
        %v1384 = vpop.f32.mrb[0].mxu0
        %v1385 = vadd.f32 %v372, %v1384
        %v1386 = vpop.f32.mrb[0].mxu0
        %1387 = vmatprep.mubr.f32.mxu0 0.0
        %1388 = vmatmul.mubr.f32.gmra.mrb[0].mxu0 %v242
        %v1389 = vpop.f32.mrb[0].mxu0
        %v1390 = vadd.f32 %v377, %v1389
        %v1391 = vpop.f32.mrb[0].mxu0
        %1392 = vmatprep.mubr.f32.mxu0 0.0
        %1393 = vmatmul.mubr.f32.gmra.mrb[0].mxu0 %v243
        %v1394 = vpop.f32.mrb[0].mxu0
        %v1395 = vadd.f32 %v382, %v1394
        %v1396 = vpop.f32.mrb[0].mxu0
        %1397 = vmatprep.mubr.f32.mxu0 0.0
        %1398 = vmatmul.mubr.f32.gmra.mrb[0].mxu0 %v244
        %v1399 = vpop.f32.mrb[0].mxu0
        %v1400 = vadd.f32 %v387, %v1399
        %v1401 = vpop.f32.mrb[0].mxu0
        %1402 = vmatprep.mubr.f32.mxu0 0.0
        %1403 = vmatmul.mubr.f32.gmra.mrb[0].mxu0 %v245
        %v1404 = vpop.f32.mrb[0].mxu0
        %v1405 = vadd.f32 %v392, %v1404
        %v1406 = vpop.f32.mrb[0].mxu0
        %1407 = vmatprep.mubr.f32.mxu0 0.0
        %1408 = vmatmul.mubr.f32.gmra.mrb[0].mxu0 %v246
        %v1409 = vpop.f32.mrb[0].mxu0
        %v1410 = vadd.f32 %v397, %v1409
        %v1411 = vpop.f32.mrb[0].mxu0
        %1412 = vmatprep.mubr.f32.mxu0 0.0
        %1413 = vmatmul.mubr.f32.gmra.mrb[0].mxu0 %v247
        %v1414 = vpop.f32.mrb[0].mxu0
        %v1415 = vadd.f32 %v402, %v1414
        %v1416 = vpop.f32.mrb[0].mxu0
        %1417 = vmatprep.mubr.f32.mxu0 0.0
        %1418 = vmatmul.mubr.f32.gmra.mrb[0].mxu0 %v248
        %v1419 = vpop.f32.mrb[0].mxu0
        %v1420 = vadd.f32 %v407, %v1419
        %v1421 = vpop.f32.mrb[0].mxu0
        %1422 = vmatprep.mubr.f32.mxu0 0.0
        %1423 = vmatmul.mubr.f32.gmra.mrb[0].mxu0 %v249
        %v1424 = vpop.f32.mrb[0].mxu0
        %v1425 = vadd.f32 %v412, %v1424
        %v1426 = vpop.f32.mrb[0].mxu0
        %1427 = vmatprep.mubr.f32.mxu0 0.0
        %1428 = vmatmul.mubr.f32.gmra.mrb[0].mxu0 %v250
        %v1429 = vpop.f32.mrb[0].mxu0
        %v1430 = vadd.f32 %v417, %v1429
        %v1431 = vpop.f32.mrb[0].mxu0
        %1432 = vmatprep.mubr.f32.mxu0 0.0
        %1433 = vmatmul.mubr.f32.gmra.mrb[0].mxu0 %v251
        %v1434 = vpop.f32.mrb[0].mxu0
        %v1435 = vadd.f32 %v422, %v1434
        %v1436 = vpop.f32.mrb[0].mxu0
        %1437 = vmatprep.mubr.f32.mxu0 0.0
        %1438 = vmatmul.mubr.f32.gmra.mrb[0].mxu0 %v252
        %v1439 = vpop.f32.mrb[0].mxu0
        %v1440 = vadd.f32 %v427, %v1439
        %v1441 = vpop.f32.mrb[0].mxu0
        %1442 = vmatprep.mubr.f32.mxu0 0.0
        %1443 = vmatmul.mubr.f32.gmra.mrb[0].mxu0 %v253
        %v1444 = vpop.f32.mrb[0].mxu0
        %v1445 = vadd.f32 %v432, %v1444
        %v1446 = vpop.f32.mrb[0].mxu0
        %1447 = vmatprep.mubr.f32.mxu0 0.0
        %1448 = vmatmul.mubr.f32.gmra.mrb[0].mxu0 %v254
        %v1449 = vpop.f32.mrb[0].mxu0
        %v1450 = vadd.f32 %v437, %v1449
        %v1451 = vpop.f32.mrb[0].mxu0
        %1452 = vmatprep.mubr.f32.mxu0 0.0
        %1453 = vmatmul.mubr.f32.gmra.mrb[0].mxu0 %v255
        %v1454 = vpop.f32.mrb[0].mxu0
        %v1455 = vadd.f32 %v442, %v1454
        %v1456 = vpop.f32.mrb[0].mxu0
        %1457 = vmatprep.mubr.f32.mxu0 0.0
        %1458 = vmatmul.mubr.f32.gmra.mrb[0].mxu0 %v256
        %v1459 = vpop.f32.mrb[0].mxu0
        %v1460 = vadd.f32 %v447, %v1459
        %v1461 = vpop.f32.mrb[0].mxu0
        %1462 = vmatprep.mubr.f32.mxu0 0.0
        %1463 = vmatmul.mubr.f32.gmra.mrb[0].mxu0 %v257
        %v1464 = vpop.f32.mrb[0].mxu0
        %v1465 = vadd.f32 %v452, %v1464
        %v1466 = vpop.f32.mrb[0].mxu0
        %1467 = vdwg.mxu0
        %s1468 = scalar_lea.vmem %s206, 768 [#allocation2]
        %1469 = vst.msk [vmem:[%s1468] sm:$0xff] %vm679, %v1310
        %1470 = vst.msk [vmem:[%s1468 + $0x8] sm:$0xff] %vm679, %v1315
        %1471 = vst.msk [vmem:[%s1468 + $0x10] sm:$0xff] %vm679, %v1320
        %1472 = vst.msk [vmem:[%s1468 + $0x18] sm:$0xff] %vm679, %v1325
        %1473 = vst.msk [vmem:[%s1468 + $0x20] sm:$0xff] %vm679, %v1330
        %1474 = vst.msk [vmem:[%s1468 + $0x28] sm:$0xff] %vm679, %v1335
        %1475 = vst.msk [vmem:[%s1468 + $0x30] sm:$0xff] %vm679, %v1340
        %1476 = vst.msk [vmem:[%s1468 + $0x38] sm:$0xff] %vm679, %v1345
        %1477 = vst.msk [vmem:[%s1468 + $0x40] sm:$0xff] %vm679, %v1350
        %1478 = vst.msk [vmem:[%s1468 + $0x48] sm:$0xff] %vm679, %v1355
        %1479 = vst.msk [vmem:[%s1468 + $0x50] sm:$0xff] %vm679, %v1360
        %1480 = vst.msk [vmem:[%s1468 + $0x58] sm:$0xff] %vm679, %v1365
        %1481 = vst.msk [vmem:[%s1468 + $0x60] sm:$0xff] %vm679, %v1370
        %1482 = vst.msk [vmem:[%s1468 + $0x68] sm:$0xff] %vm679, %v1375
        %1483 = vst.msk [vmem:[%s1468 + $0x70] sm:$0xff] %vm679, %v1380
        %1484 = vst.msk [vmem:[%s1468 + $0x78] sm:$0xff] %vm679, %v1385
        %1485 = vst.msk [vmem:[%s1468 + $0x80] sm:$0xff] %vm679, %v1390
        %1486 = vst.msk [vmem:[%s1468 + $0x88] sm:$0xff] %vm679, %v1395
        %1487 = vst.msk [vmem:[%s1468 + $0x90] sm:$0xff] %vm679, %v1400
        %1488 = vst.msk [vmem:[%s1468 + $0x98] sm:$0xff] %vm679, %v1405
        %1489 = vst.msk [vmem:[%s1468 + $0xa0] sm:$0xff] %vm679, %v1410
        %1490 = vst.msk [vmem:[%s1468 + $0xa8] sm:$0xff] %vm679, %v1415
        %1491 = vst.msk [vmem:[%s1468 + $0xb0] sm:$0xff] %vm679, %v1420
        %1492 = vst.msk [vmem:[%s1468 + $0xb8] sm:$0xff] %vm679, %v1425
        %1493 = vst.msk [vmem:[%s1468 + $0xc0] sm:$0xff] %vm679, %v1430
        %1494 = vst.msk [vmem:[%s1468 + $0xc8] sm:$0xff] %vm679, %v1435
        %1495 = vst.msk [vmem:[%s1468 + $0xd0] sm:$0xff] %vm679, %v1440
        %1496 = vst.msk [vmem:[%s1468 + $0xd8] sm:$0xff] %vm679, %v1445
        %1497 = vst.msk [vmem:[%s1468 + $0xe0] sm:$0xff] %vm679, %v1450
        %1498 = vst.msk [vmem:[%s1468 + $0xe8] sm:$0xff] %vm679, %v1455
        %1499 = vst.msk [vmem:[%s1468 + $0xf0] sm:$0xff] %vm679, %v1460
        %1500 = vst.msk [vmem:[%s1468 + $0xf8] sm:$0xff] %vm679, %v1465
        %s1501 = scalar_lea.vmem %s211, 128
        %v1502 = vld [vmem:[%s1501] sm:$0xff]
        %v1503 = vld [vmem:[%s1501 + $0x8] sm:$0xff]
        %v1504 = vld [vmem:[%s1501 + $0x10] sm:$0xff]
        %v1505 = vld [vmem:[%s1501 + $0x18] sm:$0xff]
        %1506 = vmatprep.subr.mxu0 0.0
        %1507 = vmatpush1.xpose.msra.mxu0 %v1502
        %1508 = vmatprep.subr.mxu0 0.0
        %1509 = vmatpush1.xpose.msra.mxu0 %v1503
        %1510 = vmatprep.subr.mxu0 0.0
        %1511 = vmatpush1.xpose.msra.mxu0 %v1504
        %1512 = vmatprep.subr.mxu0 0.0
        %1513 = vmatpush1.xpose.msra.mxu0 %v1505
        %1514 = vmatprep.subr.mxu0 0.0
        %1515 = vmatpush1.xpose.msra.mxu0 0.0
        %1516 = vmatprep.subr.mxu0 0.0
        %1517 = vmatpush1.xpose.msra.mxu0 0.0
        %1518 = vmatprep.subr.mxu0 0.0
        %1519 = vmatpush1.xpose.msra.mxu0 0.0
        %1520 = vmatprep.subr.mxu0 0.0
        %1521 = vmatpush1.xpose.msra.mxu0 0.0
        %1522 = vmatprep.subr.mxu0 0.0
        %1523 = vmatpush1.xpose.msra.mxu0 0.0
        %1524 = vmatprep.subr.mxu0 0.0
        %1525 = vmatpush1.xpose.msra.mxu0 0.0
        %1526 = vmatprep.subr.mxu0 0.0
        %1527 = vmatpush1.xpose.msra.mxu0 0.0
        %1528 = vmatprep.subr.mxu0 0.0
        %1529 = vmatpush1.xpose.msra.mxu0 0.0
        %1530 = vmatprep.subr.mxu0 0.0
        %1531 = vmatpush1.xpose.msra.mxu0 0.0
        %1532 = vmatprep.subr.mxu0 0.0
        %1533 = vmatpush1.xpose.msra.mxu0 0.0
        %1534 = vmatprep.subr.mxu0 0.0
        %1535 = vmatpush1.xpose.msra.mxu0 0.0
        %1536 = vmatprep.subr.mxu0 0.0
        %1537 = vmatpush1.xpose.msra.mxu0 0.0
        %1538 = vmatprep.subr.mxu0 0.0
        %1539 = vmatpush1.xpose.msra.mxu0 0.0
        %1540 = vmatprep.subr.mxu0 0.0
        %1541 = vmatpush1.xpose.msra.mxu0 0.0
        %1542 = vmatprep.subr.mxu0 0.0
        %1543 = vmatpush1.xpose.msra.mxu0 0.0
        %1544 = vmatprep.subr.mxu0 0.0
        %1545 = vmatpush1.xpose.msra.mxu0 0.0
        %1546 = vmatprep.subr.mxu0 0.0
        %1547 = vmatpush1.xpose.msra.mxu0 0.0
        %1548 = vmatprep.subr.mxu0 0.0
        %1549 = vmatpush1.xpose.msra.mxu0 0.0
        %1550 = vmatprep.subr.mxu0 0.0
        %1551 = vmatpush1.xpose.msra.mxu0 0.0
        %1552 = vmatprep.subr.mxu0 0.0
        %1553 = vmatpush1.xpose.msra.mxu0 0.0
        %1554 = vmatprep.subr.mxu0 0.0
        %1555 = vmatpush1.xpose.msra.mxu0 0.0
        %1556 = vmatprep.subr.mxu0 0.0
        %1557 = vmatpush1.xpose.msra.mxu0 0.0
        %1558 = vmatprep.subr.mxu0 0.0
        %1559 = vmatpush1.xpose.msra.mxu0 0.0
        %1560 = vmatprep.subr.mxu0 0.0
        %1561 = vmatpush1.xpose.msra.mxu0 0.0
        %1562 = vmatprep.subr.mxu0 0.0
        %1563 = vmatpush1.xpose.msra.mxu0 0.0
        %1564 = vmatprep.subr.mxu0 0.0
        %1565 = vmatpush1.xpose.msra.mxu0 0.0
        %1566 = vmatprep.subr.mxu0 0.0
        %1567 = vmatpush1.xpose.msra.mxu0 0.0
        %1568 = vmatprep.subr.mxu0 0.0
        %1569 = vmatpush1.xpose.msra.mxu0 0.0
        %1570 = vmatprep.mubr.f32.mxu0 0.0
        %1571 = vmatmul.mubr.f32.gmra.mrb[0].mxu0 %v226
        %v1572 = vpop.f32.mrb[0].mxu0
        %v1573 = vadd.f32 %v297, %v1572
        %v1574 = vpop.f32.mrb[0].mxu0
        %1575 = vmatprep.mubr.f32.mxu0 0.0
        %1576 = vmatmul.mubr.f32.gmra.mrb[0].mxu0 %v227
        %v1577 = vpop.f32.mrb[0].mxu0
        %v1578 = vadd.f32 %v302, %v1577
        %v1579 = vpop.f32.mrb[0].mxu0
        %1580 = vmatprep.mubr.f32.mxu0 0.0
        %1581 = vmatmul.mubr.f32.gmra.mrb[0].mxu0 %v228
        %v1582 = vpop.f32.mrb[0].mxu0
        %v1583 = vadd.f32 %v307, %v1582
        %v1584 = vpop.f32.mrb[0].mxu0
        %1585 = vmatprep.mubr.f32.mxu0 0.0
        %1586 = vmatmul.mubr.f32.gmra.mrb[0].mxu0 %v229
        %v1587 = vpop.f32.mrb[0].mxu0
        %v1588 = vadd.f32 %v312, %v1587
        %v1589 = vpop.f32.mrb[0].mxu0
        %1590 = vmatprep.mubr.f32.mxu0 0.0
        %1591 = vmatmul.mubr.f32.gmra.mrb[0].mxu0 %v230
        %v1592 = vpop.f32.mrb[0].mxu0
        %v1593 = vadd.f32 %v317, %v1592
        %v1594 = vpop.f32.mrb[0].mxu0
        %1595 = vmatprep.mubr.f32.mxu0 0.0
        %1596 = vmatmul.mubr.f32.gmra.mrb[0].mxu0 %v231
        %v1597 = vpop.f32.mrb[0].mxu0
        %v1598 = vadd.f32 %v322, %v1597
        %v1599 = vpop.f32.mrb[0].mxu0
        %1600 = vmatprep.mubr.f32.mxu0 0.0
        %1601 = vmatmul.mubr.f32.gmra.mrb[0].mxu0 %v232
        %v1602 = vpop.f32.mrb[0].mxu0
        %v1603 = vadd.f32 %v327, %v1602
        %v1604 = vpop.f32.mrb[0].mxu0
        %1605 = vmatprep.mubr.f32.mxu0 0.0
        %1606 = vmatmul.mubr.f32.gmra.mrb[0].mxu0 %v233
        %v1607 = vpop.f32.mrb[0].mxu0
        %v1608 = vadd.f32 %v332, %v1607
        %v1609 = vpop.f32.mrb[0].mxu0
        %1610 = vmatprep.mubr.f32.mxu0 0.0
        %1611 = vmatmul.mubr.f32.gmra.mrb[0].mxu0 %v234
        %v1612 = vpop.f32.mrb[0].mxu0
        %v1613 = vadd.f32 %v337, %v1612
        %v1614 = vpop.f32.mrb[0].mxu0
        %1615 = vmatprep.mubr.f32.mxu0 0.0
        %1616 = vmatmul.mubr.f32.gmra.mrb[0].mxu0 %v235
        %v1617 = vpop.f32.mrb[0].mxu0
        %v1618 = vadd.f32 %v342, %v1617
        %v1619 = vpop.f32.mrb[0].mxu0
        %1620 = vmatprep.mubr.f32.mxu0 0.0
        %1621 = vmatmul.mubr.f32.gmra.mrb[0].mxu0 %v236
        %v1622 = vpop.f32.mrb[0].mxu0
        %v1623 = vadd.f32 %v347, %v1622
        %v1624 = vpop.f32.mrb[0].mxu0
        %1625 = vmatprep.mubr.f32.mxu0 0.0
        %1626 = vmatmul.mubr.f32.gmra.mrb[0].mxu0 %v237
        %v1627 = vpop.f32.mrb[0].mxu0
        %v1628 = vadd.f32 %v352, %v1627
        %v1629 = vpop.f32.mrb[0].mxu0
        %1630 = vmatprep.mubr.f32.mxu0 0.0
        %1631 = vmatmul.mubr.f32.gmra.mrb[0].mxu0 %v238
        %v1632 = vpop.f32.mrb[0].mxu0
        %v1633 = vadd.f32 %v357, %v1632
        %v1634 = vpop.f32.mrb[0].mxu0
        %1635 = vmatprep.mubr.f32.mxu0 0.0
        %1636 = vmatmul.mubr.f32.gmra.mrb[0].mxu0 %v239
        %v1637 = vpop.f32.mrb[0].mxu0
        %v1638 = vadd.f32 %v362, %v1637
        %v1639 = vpop.f32.mrb[0].mxu0
        %1640 = vmatprep.mubr.f32.mxu0 0.0
        %1641 = vmatmul.mubr.f32.gmra.mrb[0].mxu0 %v240
        %v1642 = vpop.f32.mrb[0].mxu0
        %v1643 = vadd.f32 %v367, %v1642
        %v1644 = vpop.f32.mrb[0].mxu0
        %1645 = vmatprep.mubr.f32.mxu0 0.0
        %1646 = vmatmul.mubr.f32.gmra.mrb[0].mxu0 %v241
        %v1647 = vpop.f32.mrb[0].mxu0
        %v1648 = vadd.f32 %v372, %v1647
        %v1649 = vpop.f32.mrb[0].mxu0
        %1650 = vmatprep.mubr.f32.mxu0 0.0
        %1651 = vmatmul.mubr.f32.gmra.mrb[0].mxu0 %v242
        %v1652 = vpop.f32.mrb[0].mxu0
        %v1653 = vadd.f32 %v377, %v1652
        %v1654 = vpop.f32.mrb[0].mxu0
        %1655 = vmatprep.mubr.f32.mxu0 0.0
        %1656 = vmatmul.mubr.f32.gmra.mrb[0].mxu0 %v243
        %v1657 = vpop.f32.mrb[0].mxu0
        %v1658 = vadd.f32 %v382, %v1657
        %v1659 = vpop.f32.mrb[0].mxu0
        %1660 = vmatprep.mubr.f32.mxu0 0.0
        %1661 = vmatmul.mubr.f32.gmra.mrb[0].mxu0 %v244
        %v1662 = vpop.f32.mrb[0].mxu0
        %v1663 = vadd.f32 %v387, %v1662
        %v1664 = vpop.f32.mrb[0].mxu0
        %1665 = vmatprep.mubr.f32.mxu0 0.0
        %1666 = vmatmul.mubr.f32.gmra.mrb[0].mxu0 %v245
        %v1667 = vpop.f32.mrb[0].mxu0
        %v1668 = vadd.f32 %v392, %v1667
        %v1669 = vpop.f32.mrb[0].mxu0
        %1670 = vmatprep.mubr.f32.mxu0 0.0
        %1671 = vmatmul.mubr.f32.gmra.mrb[0].mxu0 %v246
        %v1672 = vpop.f32.mrb[0].mxu0
        %v1673 = vadd.f32 %v397, %v1672
        %v1674 = vpop.f32.mrb[0].mxu0
        %1675 = vmatprep.mubr.f32.mxu0 0.0
        %1676 = vmatmul.mubr.f32.gmra.mrb[0].mxu0 %v247
        %v1677 = vpop.f32.mrb[0].mxu0
        %v1678 = vadd.f32 %v402, %v1677
        %v1679 = vpop.f32.mrb[0].mxu0
        %1680 = vmatprep.mubr.f32.mxu0 0.0
        %1681 = vmatmul.mubr.f32.gmra.mrb[0].mxu0 %v248
        %v1682 = vpop.f32.mrb[0].mxu0
        %v1683 = vadd.f32 %v407, %v1682
        %v1684 = vpop.f32.mrb[0].mxu0
        %1685 = vmatprep.mubr.f32.mxu0 0.0
        %1686 = vmatmul.mubr.f32.gmra.mrb[0].mxu0 %v249
        %v1687 = vpop.f32.mrb[0].mxu0
        %v1688 = vadd.f32 %v412, %v1687
        %v1689 = vpop.f32.mrb[0].mxu0
        %1690 = vmatprep.mubr.f32.mxu0 0.0
        %1691 = vmatmul.mubr.f32.gmra.mrb[0].mxu0 %v250
        %v1692 = vpop.f32.mrb[0].mxu0
        %v1693 = vadd.f32 %v417, %v1692
        %v1694 = vpop.f32.mrb[0].mxu0
        %1695 = vmatprep.mubr.f32.mxu0 0.0
        %1696 = vmatmul.mubr.f32.gmra.mrb[0].mxu0 %v251
        %v1697 = vpop.f32.mrb[0].mxu0
        %v1698 = vadd.f32 %v422, %v1697
        %v1699 = vpop.f32.mrb[0].mxu0
        %1700 = vmatprep.mubr.f32.mxu0 0.0
        %1701 = vmatmul.mubr.f32.gmra.mrb[0].mxu0 %v252
        %v1702 = vpop.f32.mrb[0].mxu0
        %v1703 = vadd.f32 %v427, %v1702
        %v1704 = vpop.f32.mrb[0].mxu0
        %1705 = vmatprep.mubr.f32.mxu0 0.0
        %1706 = vmatmul.mubr.f32.gmra.mrb[0].mxu0 %v253
        %v1707 = vpop.f32.mrb[0].mxu0
        %v1708 = vadd.f32 %v432, %v1707
        %v1709 = vpop.f32.mrb[0].mxu0
        %1710 = vmatprep.mubr.f32.mxu0 0.0
        %1711 = vmatmul.mubr.f32.gmra.mrb[0].mxu0 %v254
        %v1712 = vpop.f32.mrb[0].mxu0
        %v1713 = vadd.f32 %v437, %v1712
        %v1714 = vpop.f32.mrb[0].mxu0
        %1715 = vmatprep.mubr.f32.mxu0 0.0
        %1716 = vmatmul.mubr.f32.gmra.mrb[0].mxu0 %v255
        %v1717 = vpop.f32.mrb[0].mxu0
        %v1718 = vadd.f32 %v442, %v1717
        %v1719 = vpop.f32.mrb[0].mxu0
        %1720 = vmatprep.mubr.f32.mxu0 0.0
        %1721 = vmatmul.mubr.f32.gmra.mrb[0].mxu0 %v256
        %v1722 = vpop.f32.mrb[0].mxu0
        %v1723 = vadd.f32 %v447, %v1722
        %v1724 = vpop.f32.mrb[0].mxu0
        %1725 = vmatprep.mubr.f32.mxu0 0.0
        %1726 = vmatmul.mubr.f32.gmra.mrb[0].mxu0 %v257
        %v1727 = vpop.f32.mrb[0].mxu0
        %v1728 = vadd.f32 %v452, %v1727
        %v1729 = vpop.f32.mrb[0].mxu0
        %1730 = vdwg.mxu0
        %s1731 = scalar_lea.vmem %s206, 1024 [#allocation2]
        %1732 = vst.msk [vmem:[%s1731] sm:$0xff] %vm679, %v1573
        %1733 = vst.msk [vmem:[%s1731 + $0x8] sm:$0xff] %vm679, %v1578
        %1734 = vst.msk [vmem:[%s1731 + $0x10] sm:$0xff] %vm679, %v1583
        %1735 = vst.msk [vmem:[%s1731 + $0x18] sm:$0xff] %vm679, %v1588
        %1736 = vst.msk [vmem:[%s1731 + $0x20] sm:$0xff] %vm679, %v1593
        %1737 = vst.msk [vmem:[%s1731 + $0x28] sm:$0xff] %vm679, %v1598
        %1738 = vst.msk [vmem:[%s1731 + $0x30] sm:$0xff] %vm679, %v1603
        %1739 = vst.msk [vmem:[%s1731 + $0x38] sm:$0xff] %vm679, %v1608
        %1740 = vst.msk [vmem:[%s1731 + $0x40] sm:$0xff] %vm679, %v1613
        %1741 = vst.msk [vmem:[%s1731 + $0x48] sm:$0xff] %vm679, %v1618
        %1742 = vst.msk [vmem:[%s1731 + $0x50] sm:$0xff] %vm679, %v1623
        %1743 = vst.msk [vmem:[%s1731 + $0x58] sm:$0xff] %vm679, %v1628
        %1744 = vst.msk [vmem:[%s1731 + $0x60] sm:$0xff] %vm679, %v1633
        %1745 = vst.msk [vmem:[%s1731 + $0x68] sm:$0xff] %vm679, %v1638
        %1746 = vst.msk [vmem:[%s1731 + $0x70] sm:$0xff] %vm679, %v1643
        %1747 = vst.msk [vmem:[%s1731 + $0x78] sm:$0xff] %vm679, %v1648
        %1748 = vst.msk [vmem:[%s1731 + $0x80] sm:$0xff] %vm679, %v1653
        %1749 = vst.msk [vmem:[%s1731 + $0x88] sm:$0xff] %vm679, %v1658
        %1750 = vst.msk [vmem:[%s1731 + $0x90] sm:$0xff] %vm679, %v1663
        %1751 = vst.msk [vmem:[%s1731 + $0x98] sm:$0xff] %vm679, %v1668
        %1752 = vst.msk [vmem:[%s1731 + $0xa0] sm:$0xff] %vm679, %v1673
        %1753 = vst.msk [vmem:[%s1731 + $0xa8] sm:$0xff] %vm679, %v1678
        %1754 = vst.msk [vmem:[%s1731 + $0xb0] sm:$0xff] %vm679, %v1683
        %1755 = vst.msk [vmem:[%s1731 + $0xb8] sm:$0xff] %vm679, %v1688
        %1756 = vst.msk [vmem:[%s1731 + $0xc0] sm:$0xff] %vm679, %v1693
        %1757 = vst.msk [vmem:[%s1731 + $0xc8] sm:$0xff] %vm679, %v1698
        %1758 = vst.msk [vmem:[%s1731 + $0xd0] sm:$0xff] %vm679, %v1703
        %1759 = vst.msk [vmem:[%s1731 + $0xd8] sm:$0xff] %vm679, %v1708
        %1760 = vst.msk [vmem:[%s1731 + $0xe0] sm:$0xff] %vm679, %v1713
        %1761 = vst.msk [vmem:[%s1731 + $0xe8] sm:$0xff] %vm679, %v1718
        %1762 = vst.msk [vmem:[%s1731 + $0xf0] sm:$0xff] %vm679, %v1723
        %1763 = vst.msk [vmem:[%s1731 + $0xf8] sm:$0xff] %vm679, %v1728
        %s1764 = scalar_lea.vmem %s211, 160
        %v1765 = vld [vmem:[%s1764] sm:$0xff]
        %v1766 = vld [vmem:[%s1764 + $0x8] sm:$0xff]
        %v1767 = vld [vmem:[%s1764 + $0x10] sm:$0xff]
        %v1768 = vld [vmem:[%s1764 + $0x18] sm:$0xff]
        %1769 = vmatprep.subr.mxu0 0.0
        %1770 = vmatpush1.xpose.msra.mxu0 %v1765
        %1771 = vmatprep.subr.mxu0 0.0
        %1772 = vmatpush1.xpose.msra.mxu0 %v1766
        %1773 = vmatprep.subr.mxu0 0.0
        %1774 = vmatpush1.xpose.msra.mxu0 %v1767
        %1775 = vmatprep.subr.mxu0 0.0
        %1776 = vmatpush1.xpose.msra.mxu0 %v1768
        %1777 = vmatprep.subr.mxu0 0.0
        %1778 = vmatpush1.xpose.msra.mxu0 0.0
        %1779 = vmatprep.subr.mxu0 0.0
        %1780 = vmatpush1.xpose.msra.mxu0 0.0
        %1781 = vmatprep.subr.mxu0 0.0
        %1782 = vmatpush1.xpose.msra.mxu0 0.0
        %1783 = vmatprep.subr.mxu0 0.0
        %1784 = vmatpush1.xpose.msra.mxu0 0.0
        %1785 = vmatprep.subr.mxu0 0.0
        %1786 = vmatpush1.xpose.msra.mxu0 0.0
        %1787 = vmatprep.subr.mxu0 0.0
        %1788 = vmatpush1.xpose.msra.mxu0 0.0
        %1789 = vmatprep.subr.mxu0 0.0
        %1790 = vmatpush1.xpose.msra.mxu0 0.0
        %1791 = vmatprep.subr.mxu0 0.0
        %1792 = vmatpush1.xpose.msra.mxu0 0.0
        %1793 = vmatprep.subr.mxu0 0.0
        %1794 = vmatpush1.xpose.msra.mxu0 0.0
        %1795 = vmatprep.subr.mxu0 0.0
        %1796 = vmatpush1.xpose.msra.mxu0 0.0
        %1797 = vmatprep.subr.mxu0 0.0
        %1798 = vmatpush1.xpose.msra.mxu0 0.0
        %1799 = vmatprep.subr.mxu0 0.0
        %1800 = vmatpush1.xpose.msra.mxu0 0.0
        %1801 = vmatprep.subr.mxu0 0.0
        %1802 = vmatpush1.xpose.msra.mxu0 0.0
        %1803 = vmatprep.subr.mxu0 0.0
        %1804 = vmatpush1.xpose.msra.mxu0 0.0
        %1805 = vmatprep.subr.mxu0 0.0
        %1806 = vmatpush1.xpose.msra.mxu0 0.0
        %1807 = vmatprep.subr.mxu0 0.0
        %1808 = vmatpush1.xpose.msra.mxu0 0.0
        %1809 = vmatprep.subr.mxu0 0.0
        %1810 = vmatpush1.xpose.msra.mxu0 0.0
        %1811 = vmatprep.subr.mxu0 0.0
        %1812 = vmatpush1.xpose.msra.mxu0 0.0
        %1813 = vmatprep.subr.mxu0 0.0
        %1814 = vmatpush1.xpose.msra.mxu0 0.0
        %1815 = vmatprep.subr.mxu0 0.0
        %1816 = vmatpush1.xpose.msra.mxu0 0.0
        %1817 = vmatprep.subr.mxu0 0.0
        %1818 = vmatpush1.xpose.msra.mxu0 0.0
        %1819 = vmatprep.subr.mxu0 0.0
        %1820 = vmatpush1.xpose.msra.mxu0 0.0
        %1821 = vmatprep.subr.mxu0 0.0
        %1822 = vmatpush1.xpose.msra.mxu0 0.0
        %1823 = vmatprep.subr.mxu0 0.0
        %1824 = vmatpush1.xpose.msra.mxu0 0.0
        %1825 = vmatprep.subr.mxu0 0.0
        %1826 = vmatpush1.xpose.msra.mxu0 0.0
        %1827 = vmatprep.subr.mxu0 0.0
        %1828 = vmatpush1.xpose.msra.mxu0 0.0
        %1829 = vmatprep.subr.mxu0 0.0
        %1830 = vmatpush1.xpose.msra.mxu0 0.0
        %1831 = vmatprep.subr.mxu0 0.0
        %1832 = vmatpush1.xpose.msra.mxu0 0.0
        %1833 = vmatprep.mubr.f32.mxu0 0.0
        %1834 = vmatmul.mubr.f32.gmra.mrb[0].mxu0 %v226
        %v1835 = vpop.f32.mrb[0].mxu0
        %v1836 = vadd.f32 %v297, %v1835
        %v1837 = vpop.f32.mrb[0].mxu0
        %1838 = vmatprep.mubr.f32.mxu0 0.0
        %1839 = vmatmul.mubr.f32.gmra.mrb[0].mxu0 %v227
        %v1840 = vpop.f32.mrb[0].mxu0
        %v1841 = vadd.f32 %v302, %v1840
        %v1842 = vpop.f32.mrb[0].mxu0
        %1843 = vmatprep.mubr.f32.mxu0 0.0
        %1844 = vmatmul.mubr.f32.gmra.mrb[0].mxu0 %v228
        %v1845 = vpop.f32.mrb[0].mxu0
        %v1846 = vadd.f32 %v307, %v1845
        %v1847 = vpop.f32.mrb[0].mxu0
        %1848 = vmatprep.mubr.f32.mxu0 0.0
        %1849 = vmatmul.mubr.f32.gmra.mrb[0].mxu0 %v229
        %v1850 = vpop.f32.mrb[0].mxu0
        %v1851 = vadd.f32 %v312, %v1850
        %v1852 = vpop.f32.mrb[0].mxu0
        %1853 = vmatprep.mubr.f32.mxu0 0.0
        %1854 = vmatmul.mubr.f32.gmra.mrb[0].mxu0 %v230
        %v1855 = vpop.f32.mrb[0].mxu0
        %v1856 = vadd.f32 %v317, %v1855
        %v1857 = vpop.f32.mrb[0].mxu0
        %1858 = vmatprep.mubr.f32.mxu0 0.0
        %1859 = vmatmul.mubr.f32.gmra.mrb[0].mxu0 %v231
        %v1860 = vpop.f32.mrb[0].mxu0
        %v1861 = vadd.f32 %v322, %v1860
        %v1862 = vpop.f32.mrb[0].mxu0
        %1863 = vmatprep.mubr.f32.mxu0 0.0
        %1864 = vmatmul.mubr.f32.gmra.mrb[0].mxu0 %v232
        %v1865 = vpop.f32.mrb[0].mxu0
        %v1866 = vadd.f32 %v327, %v1865
        %v1867 = vpop.f32.mrb[0].mxu0
        %1868 = vmatprep.mubr.f32.mxu0 0.0
        %1869 = vmatmul.mubr.f32.gmra.mrb[0].mxu0 %v233
        %v1870 = vpop.f32.mrb[0].mxu0
        %v1871 = vadd.f32 %v332, %v1870
        %v1872 = vpop.f32.mrb[0].mxu0
        %1873 = vmatprep.mubr.f32.mxu0 0.0
        %1874 = vmatmul.mubr.f32.gmra.mrb[0].mxu0 %v234
        %v1875 = vpop.f32.mrb[0].mxu0
        %v1876 = vadd.f32 %v337, %v1875
        %v1877 = vpop.f32.mrb[0].mxu0
        %1878 = vmatprep.mubr.f32.mxu0 0.0
        %1879 = vmatmul.mubr.f32.gmra.mrb[0].mxu0 %v235
        %v1880 = vpop.f32.mrb[0].mxu0
        %v1881 = vadd.f32 %v342, %v1880
        %v1882 = vpop.f32.mrb[0].mxu0
        %1883 = vmatprep.mubr.f32.mxu0 0.0
        %1884 = vmatmul.mubr.f32.gmra.mrb[0].mxu0 %v236
        %v1885 = vpop.f32.mrb[0].mxu0
        %v1886 = vadd.f32 %v347, %v1885
        %v1887 = vpop.f32.mrb[0].mxu0
        %1888 = vmatprep.mubr.f32.mxu0 0.0
        %1889 = vmatmul.mubr.f32.gmra.mrb[0].mxu0 %v237
        %v1890 = vpop.f32.mrb[0].mxu0
        %v1891 = vadd.f32 %v352, %v1890
        %v1892 = vpop.f32.mrb[0].mxu0
        %1893 = vmatprep.mubr.f32.mxu0 0.0
        %1894 = vmatmul.mubr.f32.gmra.mrb[0].mxu0 %v238
        %v1895 = vpop.f32.mrb[0].mxu0
        %v1896 = vadd.f32 %v357, %v1895
        %v1897 = vpop.f32.mrb[0].mxu0
        %1898 = vmatprep.mubr.f32.mxu0 0.0
        %1899 = vmatmul.mubr.f32.gmra.mrb[0].mxu0 %v239
        %v1900 = vpop.f32.mrb[0].mxu0
        %v1901 = vadd.f32 %v362, %v1900
        %v1902 = vpop.f32.mrb[0].mxu0
        %1903 = vmatprep.mubr.f32.mxu0 0.0
        %1904 = vmatmul.mubr.f32.gmra.mrb[0].mxu0 %v240
        %v1905 = vpop.f32.mrb[0].mxu0
        %v1906 = vadd.f32 %v367, %v1905
        %v1907 = vpop.f32.mrb[0].mxu0
        %1908 = vmatprep.mubr.f32.mxu0 0.0
        %1909 = vmatmul.mubr.f32.gmra.mrb[0].mxu0 %v241
        %v1910 = vpop.f32.mrb[0].mxu0
        %v1911 = vadd.f32 %v372, %v1910
        %v1912 = vpop.f32.mrb[0].mxu0
        %1913 = vmatprep.mubr.f32.mxu0 0.0
        %1914 = vmatmul.mubr.f32.gmra.mrb[0].mxu0 %v242
        %v1915 = vpop.f32.mrb[0].mxu0
        %v1916 = vadd.f32 %v377, %v1915
        %v1917 = vpop.f32.mrb[0].mxu0
        %1918 = vmatprep.mubr.f32.mxu0 0.0
        %1919 = vmatmul.mubr.f32.gmra.mrb[0].mxu0 %v243
        %v1920 = vpop.f32.mrb[0].mxu0
        %v1921 = vadd.f32 %v382, %v1920
        %v1922 = vpop.f32.mrb[0].mxu0
        %1923 = vmatprep.mubr.f32.mxu0 0.0
        %1924 = vmatmul.mubr.f32.gmra.mrb[0].mxu0 %v244
        %v1925 = vpop.f32.mrb[0].mxu0
        %v1926 = vadd.f32 %v387, %v1925
        %v1927 = vpop.f32.mrb[0].mxu0
        %1928 = vmatprep.mubr.f32.mxu0 0.0
        %1929 = vmatmul.mubr.f32.gmra.mrb[0].mxu0 %v245
        %v1930 = vpop.f32.mrb[0].mxu0
        %v1931 = vadd.f32 %v392, %v1930
        %v1932 = vpop.f32.mrb[0].mxu0
        %1933 = vmatprep.mubr.f32.mxu0 0.0
        %1934 = vmatmul.mubr.f32.gmra.mrb[0].mxu0 %v246
        %v1935 = vpop.f32.mrb[0].mxu0
        %v1936 = vadd.f32 %v397, %v1935
        %v1937 = vpop.f32.mrb[0].mxu0
        %1938 = vmatprep.mubr.f32.mxu0 0.0
        %1939 = vmatmul.mubr.f32.gmra.mrb[0].mxu0 %v247
        %v1940 = vpop.f32.mrb[0].mxu0
        %v1941 = vadd.f32 %v402, %v1940
        %v1942 = vpop.f32.mrb[0].mxu0
        %1943 = vmatprep.mubr.f32.mxu0 0.0
        %1944 = vmatmul.mubr.f32.gmra.mrb[0].mxu0 %v248
        %v1945 = vpop.f32.mrb[0].mxu0
        %v1946 = vadd.f32 %v407, %v1945
        %v1947 = vpop.f32.mrb[0].mxu0
        %1948 = vmatprep.mubr.f32.mxu0 0.0
        %1949 = vmatmul.mubr.f32.gmra.mrb[0].mxu0 %v249
        %v1950 = vpop.f32.mrb[0].mxu0
        %v1951 = vadd.f32 %v412, %v1950
        %v1952 = vpop.f32.mrb[0].mxu0
        %1953 = vmatprep.mubr.f32.mxu0 0.0
        %1954 = vmatmul.mubr.f32.gmra.mrb[0].mxu0 %v250
        %v1955 = vpop.f32.mrb[0].mxu0
        %v1956 = vadd.f32 %v417, %v1955
        %v1957 = vpop.f32.mrb[0].mxu0
        %1958 = vmatprep.mubr.f32.mxu0 0.0
        %1959 = vmatmul.mubr.f32.gmra.mrb[0].mxu0 %v251
        %v1960 = vpop.f32.mrb[0].mxu0
        %v1961 = vadd.f32 %v422, %v1960
        %v1962 = vpop.f32.mrb[0].mxu0
        %1963 = vmatprep.mubr.f32.mxu0 0.0
        %1964 = vmatmul.mubr.f32.gmra.mrb[0].mxu0 %v252
        %v1965 = vpop.f32.mrb[0].mxu0
        %v1966 = vadd.f32 %v427, %v1965
        %v1967 = vpop.f32.mrb[0].mxu0
        %1968 = vmatprep.mubr.f32.mxu0 0.0
        %1969 = vmatmul.mubr.f32.gmra.mrb[0].mxu0 %v253
        %v1970 = vpop.f32.mrb[0].mxu0
        %v1971 = vadd.f32 %v432, %v1970
        %v1972 = vpop.f32.mrb[0].mxu0
        %1973 = vmatprep.mubr.f32.mxu0 0.0
        %1974 = vmatmul.mubr.f32.gmra.mrb[0].mxu0 %v254
        %v1975 = vpop.f32.mrb[0].mxu0
        %v1976 = vadd.f32 %v437, %v1975
        %v1977 = vpop.f32.mrb[0].mxu0
        %1978 = vmatprep.mubr.f32.mxu0 0.0
        %1979 = vmatmul.mubr.f32.gmra.mrb[0].mxu0 %v255
        %v1980 = vpop.f32.mrb[0].mxu0
        %v1981 = vadd.f32 %v442, %v1980
        %v1982 = vpop.f32.mrb[0].mxu0
        %1983 = vmatprep.mubr.f32.mxu0 0.0
        %1984 = vmatmul.mubr.f32.gmra.mrb[0].mxu0 %v256
        %v1985 = vpop.f32.mrb[0].mxu0
        %v1986 = vadd.f32 %v447, %v1985
        %v1987 = vpop.f32.mrb[0].mxu0
        %1988 = vmatprep.mubr.f32.mxu0 0.0
        %1989 = vmatmul.mubr.f32.gmra.mrb[0].mxu0 %v257
        %v1990 = vpop.f32.mrb[0].mxu0
        %v1991 = vadd.f32 %v452, %v1990
        %v1992 = vpop.f32.mrb[0].mxu0
        %1993 = vdwg.mxu0
        %s1994 = scalar_lea.vmem %s206, 1280 [#allocation2]
        %1995 = vst.msk [vmem:[%s1994] sm:$0xff] %vm679, %v1836
        %1996 = vst.msk [vmem:[%s1994 + $0x8] sm:$0xff] %vm679, %v1841
        %1997 = vst.msk [vmem:[%s1994 + $0x10] sm:$0xff] %vm679, %v1846
        %1998 = vst.msk [vmem:[%s1994 + $0x18] sm:$0xff] %vm679, %v1851
        %1999 = vst.msk [vmem:[%s1994 + $0x20] sm:$0xff] %vm679, %v1856
        %2000 = vst.msk [vmem:[%s1994 + $0x28] sm:$0xff] %vm679, %v1861
        %2001 = vst.msk [vmem:[%s1994 + $0x30] sm:$0xff] %vm679, %v1866
        %2002 = vst.msk [vmem:[%s1994 + $0x38] sm:$0xff] %vm679, %v1871
        %2003 = vst.msk [vmem:[%s1994 + $0x40] sm:$0xff] %vm679, %v1876
        %2004 = vst.msk [vmem:[%s1994 + $0x48] sm:$0xff] %vm679, %v1881
        %2005 = vst.msk [vmem:[%s1994 + $0x50] sm:$0xff] %vm679, %v1886
        %2006 = vst.msk [vmem:[%s1994 + $0x58] sm:$0xff] %vm679, %v1891
        %2007 = vst.msk [vmem:[%s1994 + $0x60] sm:$0xff] %vm679, %v1896
        %2008 = vst.msk [vmem:[%s1994 + $0x68] sm:$0xff] %vm679, %v1901
        %2009 = vst.msk [vmem:[%s1994 + $0x70] sm:$0xff] %vm679, %v1906
        %2010 = vst.msk [vmem:[%s1994 + $0x78] sm:$0xff] %vm679, %v1911
        %2011 = vst.msk [vmem:[%s1994 + $0x80] sm:$0xff] %vm679, %v1916
        %2012 = vst.msk [vmem:[%s1994 + $0x88] sm:$0xff] %vm679, %v1921
        %2013 = vst.msk [vmem:[%s1994 + $0x90] sm:$0xff] %vm679, %v1926
        %2014 = vst.msk [vmem:[%s1994 + $0x98] sm:$0xff] %vm679, %v1931
        %2015 = vst.msk [vmem:[%s1994 + $0xa0] sm:$0xff] %vm679, %v1936
        %2016 = vst.msk [vmem:[%s1994 + $0xa8] sm:$0xff] %vm679, %v1941
        %2017 = vst.msk [vmem:[%s1994 + $0xb0] sm:$0xff] %vm679, %v1946
        %2018 = vst.msk [vmem:[%s1994 + $0xb8] sm:$0xff] %vm679, %v1951
        %2019 = vst.msk [vmem:[%s1994 + $0xc0] sm:$0xff] %vm679, %v1956
        %2020 = vst.msk [vmem:[%s1994 + $0xc8] sm:$0xff] %vm679, %v1961
        %2021 = vst.msk [vmem:[%s1994 + $0xd0] sm:$0xff] %vm679, %v1966
        %2022 = vst.msk [vmem:[%s1994 + $0xd8] sm:$0xff] %vm679, %v1971
        %2023 = vst.msk [vmem:[%s1994 + $0xe0] sm:$0xff] %vm679, %v1976
        %2024 = vst.msk [vmem:[%s1994 + $0xe8] sm:$0xff] %vm679, %v1981
        %2025 = vst.msk [vmem:[%s1994 + $0xf0] sm:$0xff] %vm679, %v1986
        %2026 = vst.msk [vmem:[%s1994 + $0xf8] sm:$0xff] %vm679, %v1991
        %s2027 = scalar_lea.vmem %s211, 192
        %v2028 = vld [vmem:[%s2027] sm:$0xff]
        %v2029 = vld [vmem:[%s2027 + $0x8] sm:$0xff]
        %v2030 = vld [vmem:[%s2027 + $0x10] sm:$0xff]
        %v2031 = vld [vmem:[%s2027 + $0x18] sm:$0xff]
        %2032 = vmatprep.subr.mxu0 0.0
        %2033 = vmatpush1.xpose.msra.mxu0 %v2028
        %2034 = vmatprep.subr.mxu0 0.0
        %2035 = vmatpush1.xpose.msra.mxu0 %v2029
        %2036 = vmatprep.subr.mxu0 0.0
        %2037 = vmatpush1.xpose.msra.mxu0 %v2030
        %2038 = vmatprep.subr.mxu0 0.0
        %2039 = vmatpush1.xpose.msra.mxu0 %v2031
        %2040 = vmatprep.subr.mxu0 0.0
        %2041 = vmatpush1.xpose.msra.mxu0 0.0
        %2042 = vmatprep.subr.mxu0 0.0
        %2043 = vmatpush1.xpose.msra.mxu0 0.0
        %2044 = vmatprep.subr.mxu0 0.0
        %2045 = vmatpush1.xpose.msra.mxu0 0.0
        %2046 = vmatprep.subr.mxu0 0.0
        %2047 = vmatpush1.xpose.msra.mxu0 0.0
        %2048 = vmatprep.subr.mxu0 0.0
        %2049 = vmatpush1.xpose.msra.mxu0 0.0
        %2050 = vmatprep.subr.mxu0 0.0
        %2051 = vmatpush1.xpose.msra.mxu0 0.0
        %2052 = vmatprep.subr.mxu0 0.0
        %2053 = vmatpush1.xpose.msra.mxu0 0.0
        %2054 = vmatprep.subr.mxu0 0.0
        %2055 = vmatpush1.xpose.msra.mxu0 0.0
        %2056 = vmatprep.subr.mxu0 0.0
        %2057 = vmatpush1.xpose.msra.mxu0 0.0
        %2058 = vmatprep.subr.mxu0 0.0
        %2059 = vmatpush1.xpose.msra.mxu0 0.0
        %2060 = vmatprep.subr.mxu0 0.0
        %2061 = vmatpush1.xpose.msra.mxu0 0.0
        %2062 = vmatprep.subr.mxu0 0.0
        %2063 = vmatpush1.xpose.msra.mxu0 0.0
        %2064 = vmatprep.subr.mxu0 0.0
        %2065 = vmatpush1.xpose.msra.mxu0 0.0
        %2066 = vmatprep.subr.mxu0 0.0
        %2067 = vmatpush1.xpose.msra.mxu0 0.0
        %2068 = vmatprep.subr.mxu0 0.0
        %2069 = vmatpush1.xpose.msra.mxu0 0.0
        %2070 = vmatprep.subr.mxu0 0.0
        %2071 = vmatpush1.xpose.msra.mxu0 0.0
        %2072 = vmatprep.subr.mxu0 0.0
        %2073 = vmatpush1.xpose.msra.mxu0 0.0
        %2074 = vmatprep.subr.mxu0 0.0
        %2075 = vmatpush1.xpose.msra.mxu0 0.0
        %2076 = vmatprep.subr.mxu0 0.0
        %2077 = vmatpush1.xpose.msra.mxu0 0.0
        %2078 = vmatprep.subr.mxu0 0.0
        %2079 = vmatpush1.xpose.msra.mxu0 0.0
        %2080 = vmatprep.subr.mxu0 0.0
        %2081 = vmatpush1.xpose.msra.mxu0 0.0
        %2082 = vmatprep.subr.mxu0 0.0
        %2083 = vmatpush1.xpose.msra.mxu0 0.0
        %2084 = vmatprep.subr.mxu0 0.0
        %2085 = vmatpush1.xpose.msra.mxu0 0.0
        %2086 = vmatprep.subr.mxu0 0.0
        %2087 = vmatpush1.xpose.msra.mxu0 0.0
        %2088 = vmatprep.subr.mxu0 0.0
        %2089 = vmatpush1.xpose.msra.mxu0 0.0
        %2090 = vmatprep.subr.mxu0 0.0
        %2091 = vmatpush1.xpose.msra.mxu0 0.0
        %2092 = vmatprep.subr.mxu0 0.0
        %2093 = vmatpush1.xpose.msra.mxu0 0.0
        %2094 = vmatprep.subr.mxu0 0.0
        %2095 = vmatpush1.xpose.msra.mxu0 0.0
        %2096 = vmatprep.mubr.f32.mxu0 0.0
        %2097 = vmatmul.mubr.f32.gmra.mrb[0].mxu0 %v226
        %v2098 = vpop.f32.mrb[0].mxu0
        %v2099 = vadd.f32 %v297, %v2098
        %v2100 = vpop.f32.mrb[0].mxu0
        %2101 = vmatprep.mubr.f32.mxu0 0.0
        %2102 = vmatmul.mubr.f32.gmra.mrb[0].mxu0 %v227
        %v2103 = vpop.f32.mrb[0].mxu0
        %v2104 = vadd.f32 %v302, %v2103
        %v2105 = vpop.f32.mrb[0].mxu0
        %2106 = vmatprep.mubr.f32.mxu0 0.0
        %2107 = vmatmul.mubr.f32.gmra.mrb[0].mxu0 %v228
        %v2108 = vpop.f32.mrb[0].mxu0
        %v2109 = vadd.f32 %v307, %v2108
        %v2110 = vpop.f32.mrb[0].mxu0
        %2111 = vmatprep.mubr.f32.mxu0 0.0
        %2112 = vmatmul.mubr.f32.gmra.mrb[0].mxu0 %v229
        %v2113 = vpop.f32.mrb[0].mxu0
        %v2114 = vadd.f32 %v312, %v2113
        %v2115 = vpop.f32.mrb[0].mxu0
        %2116 = vmatprep.mubr.f32.mxu0 0.0
        %2117 = vmatmul.mubr.f32.gmra.mrb[0].mxu0 %v230
        %v2118 = vpop.f32.mrb[0].mxu0
        %v2119 = vadd.f32 %v317, %v2118
        %v2120 = vpop.f32.mrb[0].mxu0
        %2121 = vmatprep.mubr.f32.mxu0 0.0
        %2122 = vmatmul.mubr.f32.gmra.mrb[0].mxu0 %v231
        %v2123 = vpop.f32.mrb[0].mxu0
        %v2124 = vadd.f32 %v322, %v2123
        %v2125 = vpop.f32.mrb[0].mxu0
        %2126 = vmatprep.mubr.f32.mxu0 0.0
        %2127 = vmatmul.mubr.f32.gmra.mrb[0].mxu0 %v232
        %v2128 = vpop.f32.mrb[0].mxu0
        %v2129 = vadd.f32 %v327, %v2128
        %v2130 = vpop.f32.mrb[0].mxu0
        %2131 = vmatprep.mubr.f32.mxu0 0.0
        %2132 = vmatmul.mubr.f32.gmra.mrb[0].mxu0 %v233
        %v2133 = vpop.f32.mrb[0].mxu0
        %v2134 = vadd.f32 %v332, %v2133
        %v2135 = vpop.f32.mrb[0].mxu0
        %2136 = vmatprep.mubr.f32.mxu0 0.0
        %2137 = vmatmul.mubr.f32.gmra.mrb[0].mxu0 %v234
        %v2138 = vpop.f32.mrb[0].mxu0
        %v2139 = vadd.f32 %v337, %v2138
        %v2140 = vpop.f32.mrb[0].mxu0
        %2141 = vmatprep.mubr.f32.mxu0 0.0
        %2142 = vmatmul.mubr.f32.gmra.mrb[0].mxu0 %v235
        %v2143 = vpop.f32.mrb[0].mxu0
        %v2144 = vadd.f32 %v342, %v2143
        %v2145 = vpop.f32.mrb[0].mxu0
        %2146 = vmatprep.mubr.f32.mxu0 0.0
        %2147 = vmatmul.mubr.f32.gmra.mrb[0].mxu0 %v236
        %v2148 = vpop.f32.mrb[0].mxu0
        %v2149 = vadd.f32 %v347, %v2148
        %v2150 = vpop.f32.mrb[0].mxu0
        %2151 = vmatprep.mubr.f32.mxu0 0.0
        %2152 = vmatmul.mubr.f32.gmra.mrb[0].mxu0 %v237
        %v2153 = vpop.f32.mrb[0].mxu0
        %v2154 = vadd.f32 %v352, %v2153
        %v2155 = vpop.f32.mrb[0].mxu0
        %2156 = vmatprep.mubr.f32.mxu0 0.0
        %2157 = vmatmul.mubr.f32.gmra.mrb[0].mxu0 %v238
        %v2158 = vpop.f32.mrb[0].mxu0
        %v2159 = vadd.f32 %v357, %v2158
        %v2160 = vpop.f32.mrb[0].mxu0
        %2161 = vmatprep.mubr.f32.mxu0 0.0
        %2162 = vmatmul.mubr.f32.gmra.mrb[0].mxu0 %v239
        %v2163 = vpop.f32.mrb[0].mxu0
        %v2164 = vadd.f32 %v362, %v2163
        %v2165 = vpop.f32.mrb[0].mxu0
        %2166 = vmatprep.mubr.f32.mxu0 0.0
        %2167 = vmatmul.mubr.f32.gmra.mrb[0].mxu0 %v240
        %v2168 = vpop.f32.mrb[0].mxu0
        %v2169 = vadd.f32 %v367, %v2168
        %v2170 = vpop.f32.mrb[0].mxu0
        %2171 = vmatprep.mubr.f32.mxu0 0.0
        %2172 = vmatmul.mubr.f32.gmra.mrb[0].mxu0 %v241
        %v2173 = vpop.f32.mrb[0].mxu0
        %v2174 = vadd.f32 %v372, %v2173
        %v2175 = vpop.f32.mrb[0].mxu0
        %2176 = vmatprep.mubr.f32.mxu0 0.0
        %2177 = vmatmul.mubr.f32.gmra.mrb[0].mxu0 %v242
        %v2178 = vpop.f32.mrb[0].mxu0
        %v2179 = vadd.f32 %v377, %v2178
        %v2180 = vpop.f32.mrb[0].mxu0
        %2181 = vmatprep.mubr.f32.mxu0 0.0
        %2182 = vmatmul.mubr.f32.gmra.mrb[0].mxu0 %v243
        %v2183 = vpop.f32.mrb[0].mxu0
        %v2184 = vadd.f32 %v382, %v2183
        %v2185 = vpop.f32.mrb[0].mxu0
        %2186 = vmatprep.mubr.f32.mxu0 0.0
        %2187 = vmatmul.mubr.f32.gmra.mrb[0].mxu0 %v244
        %v2188 = vpop.f32.mrb[0].mxu0
        %v2189 = vadd.f32 %v387, %v2188
        %v2190 = vpop.f32.mrb[0].mxu0
        %2191 = vmatprep.mubr.f32.mxu0 0.0
        %2192 = vmatmul.mubr.f32.gmra.mrb[0].mxu0 %v245
        %v2193 = vpop.f32.mrb[0].mxu0
        %v2194 = vadd.f32 %v392, %v2193
        %v2195 = vpop.f32.mrb[0].mxu0
        %2196 = vmatprep.mubr.f32.mxu0 0.0
        %2197 = vmatmul.mubr.f32.gmra.mrb[0].mxu0 %v246
        %v2198 = vpop.f32.mrb[0].mxu0
        %v2199 = vadd.f32 %v397, %v2198
        %v2200 = vpop.f32.mrb[0].mxu0
        %2201 = vmatprep.mubr.f32.mxu0 0.0
        %2202 = vmatmul.mubr.f32.gmra.mrb[0].mxu0 %v247
        %v2203 = vpop.f32.mrb[0].mxu0
        %v2204 = vadd.f32 %v402, %v2203
        %v2205 = vpop.f32.mrb[0].mxu0
        %2206 = vmatprep.mubr.f32.mxu0 0.0
        %2207 = vmatmul.mubr.f32.gmra.mrb[0].mxu0 %v248
        %v2208 = vpop.f32.mrb[0].mxu0
        %v2209 = vadd.f32 %v407, %v2208
        %v2210 = vpop.f32.mrb[0].mxu0
        %2211 = vmatprep.mubr.f32.mxu0 0.0
        %2212 = vmatmul.mubr.f32.gmra.mrb[0].mxu0 %v249
        %v2213 = vpop.f32.mrb[0].mxu0
        %v2214 = vadd.f32 %v412, %v2213
        %v2215 = vpop.f32.mrb[0].mxu0
        %2216 = vmatprep.mubr.f32.mxu0 0.0
        %2217 = vmatmul.mubr.f32.gmra.mrb[0].mxu0 %v250
        %v2218 = vpop.f32.mrb[0].mxu0
        %v2219 = vadd.f32 %v417, %v2218
        %v2220 = vpop.f32.mrb[0].mxu0
        %2221 = vmatprep.mubr.f32.mxu0 0.0
        %2222 = vmatmul.mubr.f32.gmra.mrb[0].mxu0 %v251
        %v2223 = vpop.f32.mrb[0].mxu0
        %v2224 = vadd.f32 %v422, %v2223
        %v2225 = vpop.f32.mrb[0].mxu0
        %2226 = vmatprep.mubr.f32.mxu0 0.0
        %2227 = vmatmul.mubr.f32.gmra.mrb[0].mxu0 %v252
        %v2228 = vpop.f32.mrb[0].mxu0
        %v2229 = vadd.f32 %v427, %v2228
        %v2230 = vpop.f32.mrb[0].mxu0
        %2231 = vmatprep.mubr.f32.mxu0 0.0
        %2232 = vmatmul.mubr.f32.gmra.mrb[0].mxu0 %v253
        %v2233 = vpop.f32.mrb[0].mxu0
        %v2234 = vadd.f32 %v432, %v2233
        %v2235 = vpop.f32.mrb[0].mxu0
        %2236 = vmatprep.mubr.f32.mxu0 0.0
        %2237 = vmatmul.mubr.f32.gmra.mrb[0].mxu0 %v254
        %v2238 = vpop.f32.mrb[0].mxu0
        %v2239 = vadd.f32 %v437, %v2238
        %v2240 = vpop.f32.mrb[0].mxu0
        %2241 = vmatprep.mubr.f32.mxu0 0.0
        %2242 = vmatmul.mubr.f32.gmra.mrb[0].mxu0 %v255
        %v2243 = vpop.f32.mrb[0].mxu0
        %v2244 = vadd.f32 %v442, %v2243
        %v2245 = vpop.f32.mrb[0].mxu0
        %2246 = vmatprep.mubr.f32.mxu0 0.0
        %2247 = vmatmul.mubr.f32.gmra.mrb[0].mxu0 %v256
        %v2248 = vpop.f32.mrb[0].mxu0
        %v2249 = vadd.f32 %v447, %v2248
        %v2250 = vpop.f32.mrb[0].mxu0
        %2251 = vmatprep.mubr.f32.mxu0 0.0
        %2252 = vmatmul.mubr.f32.gmra.mrb[0].mxu0 %v257
        %v2253 = vpop.f32.mrb[0].mxu0
        %v2254 = vadd.f32 %v452, %v2253
        %v2255 = vpop.f32.mrb[0].mxu0
        %2256 = vdwg.mxu0
        %s2257 = scalar_lea.vmem %s206, 1536 [#allocation2]
        %2258 = vst.msk [vmem:[%s2257] sm:$0xff] %vm679, %v2099
        %2259 = vst.msk [vmem:[%s2257 + $0x8] sm:$0xff] %vm679, %v2104
        %2260 = vst.msk [vmem:[%s2257 + $0x10] sm:$0xff] %vm679, %v2109
        %2261 = vst.msk [vmem:[%s2257 + $0x18] sm:$0xff] %vm679, %v2114
        %2262 = vst.msk [vmem:[%s2257 + $0x20] sm:$0xff] %vm679, %v2119
        %2263 = vst.msk [vmem:[%s2257 + $0x28] sm:$0xff] %vm679, %v2124
        %2264 = vst.msk [vmem:[%s2257 + $0x30] sm:$0xff] %vm679, %v2129
        %2265 = vst.msk [vmem:[%s2257 + $0x38] sm:$0xff] %vm679, %v2134
        %2266 = vst.msk [vmem:[%s2257 + $0x40] sm:$0xff] %vm679, %v2139
        %2267 = vst.msk [vmem:[%s2257 + $0x48] sm:$0xff] %vm679, %v2144
        %2268 = vst.msk [vmem:[%s2257 + $0x50] sm:$0xff] %vm679, %v2149
        %2269 = vst.msk [vmem:[%s2257 + $0x58] sm:$0xff] %vm679, %v2154
        %2270 = vst.msk [vmem:[%s2257 + $0x60] sm:$0xff] %vm679, %v2159
        %2271 = vst.msk [vmem:[%s2257 + $0x68] sm:$0xff] %vm679, %v2164
        %2272 = vst.msk [vmem:[%s2257 + $0x70] sm:$0xff] %vm679, %v2169
        %2273 = vst.msk [vmem:[%s2257 + $0x78] sm:$0xff] %vm679, %v2174
        %2274 = vst.msk [vmem:[%s2257 + $0x80] sm:$0xff] %vm679, %v2179
        %2275 = vst.msk [vmem:[%s2257 + $0x88] sm:$0xff] %vm679, %v2184
        %2276 = vst.msk [vmem:[%s2257 + $0x90] sm:$0xff] %vm679, %v2189
        %2277 = vst.msk [vmem:[%s2257 + $0x98] sm:$0xff] %vm679, %v2194
        %2278 = vst.msk [vmem:[%s2257 + $0xa0] sm:$0xff] %vm679, %v2199
        %2279 = vst.msk [vmem:[%s2257 + $0xa8] sm:$0xff] %vm679, %v2204
        %2280 = vst.msk [vmem:[%s2257 + $0xb0] sm:$0xff] %vm679, %v2209
        %2281 = vst.msk [vmem:[%s2257 + $0xb8] sm:$0xff] %vm679, %v2214
        %2282 = vst.msk [vmem:[%s2257 + $0xc0] sm:$0xff] %vm679, %v2219
        %2283 = vst.msk [vmem:[%s2257 + $0xc8] sm:$0xff] %vm679, %v2224
        %2284 = vst.msk [vmem:[%s2257 + $0xd0] sm:$0xff] %vm679, %v2229
        %2285 = vst.msk [vmem:[%s2257 + $0xd8] sm:$0xff] %vm679, %v2234
        %2286 = vst.msk [vmem:[%s2257 + $0xe0] sm:$0xff] %vm679, %v2239
        %2287 = vst.msk [vmem:[%s2257 + $0xe8] sm:$0xff] %vm679, %v2244
        %2288 = vst.msk [vmem:[%s2257 + $0xf0] sm:$0xff] %vm679, %v2249
        %2289 = vst.msk [vmem:[%s2257 + $0xf8] sm:$0xff] %vm679, %v2254
        %s2290 = scalar_lea.vmem %s211, 224
        %v2291 = vld [vmem:[%s2290] sm:$0xff]
        %v2292 = vld [vmem:[%s2290 + $0x8] sm:$0xff]
        %v2293 = vld [vmem:[%s2290 + $0x10] sm:$0xff]
        %v2294 = vld [vmem:[%s2290 + $0x18] sm:$0xff]
        %2295 = vmatprep.subr.mxu0 0.0
        %2296 = vmatpush1.xpose.msra.mxu0 %v2291
        %2297 = vmatprep.subr.mxu0 0.0
        %2298 = vmatpush1.xpose.msra.mxu0 %v2292
        %2299 = vmatprep.subr.mxu0 0.0
        %2300 = vmatpush1.xpose.msra.mxu0 %v2293
        %2301 = vmatprep.subr.mxu0 0.0
        %2302 = vmatpush1.xpose.msra.mxu0 %v2294
        %2303 = vmatprep.subr.mxu0 0.0
        %2304 = vmatpush1.xpose.msra.mxu0 0.0
        %2305 = vmatprep.subr.mxu0 0.0
        %2306 = vmatpush1.xpose.msra.mxu0 0.0
        %2307 = vmatprep.subr.mxu0 0.0
        %2308 = vmatpush1.xpose.msra.mxu0 0.0
        %2309 = vmatprep.subr.mxu0 0.0
        %2310 = vmatpush1.xpose.msra.mxu0 0.0
        %2311 = vmatprep.subr.mxu0 0.0
        %2312 = vmatpush1.xpose.msra.mxu0 0.0
        %2313 = vmatprep.subr.mxu0 0.0
        %2314 = vmatpush1.xpose.msra.mxu0 0.0
        %2315 = vmatprep.subr.mxu0 0.0
        %2316 = vmatpush1.xpose.msra.mxu0 0.0
        %2317 = vmatprep.subr.mxu0 0.0
        %2318 = vmatpush1.xpose.msra.mxu0 0.0
        %2319 = vmatprep.subr.mxu0 0.0
        %2320 = vmatpush1.xpose.msra.mxu0 0.0
        %2321 = vmatprep.subr.mxu0 0.0
        %2322 = vmatpush1.xpose.msra.mxu0 0.0
        %2323 = vmatprep.subr.mxu0 0.0
        %2324 = vmatpush1.xpose.msra.mxu0 0.0
        %2325 = vmatprep.subr.mxu0 0.0
        %2326 = vmatpush1.xpose.msra.mxu0 0.0
        %2327 = vmatprep.subr.mxu0 0.0
        %2328 = vmatpush1.xpose.msra.mxu0 0.0
        %2329 = vmatprep.subr.mxu0 0.0
        %2330 = vmatpush1.xpose.msra.mxu0 0.0
        %2331 = vmatprep.subr.mxu0 0.0
        %2332 = vmatpush1.xpose.msra.mxu0 0.0
        %2333 = vmatprep.subr.mxu0 0.0
        %2334 = vmatpush1.xpose.msra.mxu0 0.0
        %2335 = vmatprep.subr.mxu0 0.0
        %2336 = vmatpush1.xpose.msra.mxu0 0.0
        %2337 = vmatprep.subr.mxu0 0.0
        %2338 = vmatpush1.xpose.msra.mxu0 0.0
        %2339 = vmatprep.subr.mxu0 0.0
        %2340 = vmatpush1.xpose.msra.mxu0 0.0
        %2341 = vmatprep.subr.mxu0 0.0
        %2342 = vmatpush1.xpose.msra.mxu0 0.0
        %2343 = vmatprep.subr.mxu0 0.0
        %2344 = vmatpush1.xpose.msra.mxu0 0.0
        %2345 = vmatprep.subr.mxu0 0.0
        %2346 = vmatpush1.xpose.msra.mxu0 0.0
        %2347 = vmatprep.subr.mxu0 0.0
        %2348 = vmatpush1.xpose.msra.mxu0 0.0
        %2349 = vmatprep.subr.mxu0 0.0
        %2350 = vmatpush1.xpose.msra.mxu0 0.0
        %2351 = vmatprep.subr.mxu0 0.0
        %2352 = vmatpush1.xpose.msra.mxu0 0.0
        %2353 = vmatprep.subr.mxu0 0.0
        %2354 = vmatpush1.xpose.msra.mxu0 0.0
        %2355 = vmatprep.subr.mxu0 0.0
        %2356 = vmatpush1.xpose.msra.mxu0 0.0
        %2357 = vmatprep.subr.mxu0 0.0
        %2358 = vmatpush1.xpose.msra.mxu0 0.0
        %2359 = vmatprep.mubr.f32.mxu0 0.0
        %2360 = vmatmul.mubr.f32.gmra.mrb[0].mxu0 %v226
        %v2361 = vpop.f32.mrb[0].mxu0
        %v2362 = vadd.f32 %v297, %v2361
        %v2363 = vpop.f32.mrb[0].mxu0
        %2364 = vmatprep.mubr.f32.mxu0 0.0
        %2365 = vmatmul.mubr.f32.gmra.mrb[0].mxu0 %v227
        %v2366 = vpop.f32.mrb[0].mxu0
        %v2367 = vadd.f32 %v302, %v2366
        %v2368 = vpop.f32.mrb[0].mxu0
        %2369 = vmatprep.mubr.f32.mxu0 0.0
        %2370 = vmatmul.mubr.f32.gmra.mrb[0].mxu0 %v228
        %v2371 = vpop.f32.mrb[0].mxu0
        %v2372 = vadd.f32 %v307, %v2371
        %v2373 = vpop.f32.mrb[0].mxu0
        %2374 = vmatprep.mubr.f32.mxu0 0.0
        %2375 = vmatmul.mubr.f32.gmra.mrb[0].mxu0 %v229
        %v2376 = vpop.f32.mrb[0].mxu0
        %v2377 = vadd.f32 %v312, %v2376
        %v2378 = vpop.f32.mrb[0].mxu0
        %2379 = vmatprep.mubr.f32.mxu0 0.0
        %2380 = vmatmul.mubr.f32.gmra.mrb[0].mxu0 %v230
        %v2381 = vpop.f32.mrb[0].mxu0
        %v2382 = vadd.f32 %v317, %v2381
        %v2383 = vpop.f32.mrb[0].mxu0
        %2384 = vmatprep.mubr.f32.mxu0 0.0
        %2385 = vmatmul.mubr.f32.gmra.mrb[0].mxu0 %v231
        %v2386 = vpop.f32.mrb[0].mxu0
        %v2387 = vadd.f32 %v322, %v2386
        %v2388 = vpop.f32.mrb[0].mxu0
        %2389 = vmatprep.mubr.f32.mxu0 0.0
        %2390 = vmatmul.mubr.f32.gmra.mrb[0].mxu0 %v232
        %v2391 = vpop.f32.mrb[0].mxu0
        %v2392 = vadd.f32 %v327, %v2391
        %v2393 = vpop.f32.mrb[0].mxu0
        %2394 = vmatprep.mubr.f32.mxu0 0.0
        %2395 = vmatmul.mubr.f32.gmra.mrb[0].mxu0 %v233
        %v2396 = vpop.f32.mrb[0].mxu0
        %v2397 = vadd.f32 %v332, %v2396
        %v2398 = vpop.f32.mrb[0].mxu0
        %2399 = vmatprep.mubr.f32.mxu0 0.0
        %2400 = vmatmul.mubr.f32.gmra.mrb[0].mxu0 %v234
        %v2401 = vpop.f32.mrb[0].mxu0
        %v2402 = vadd.f32 %v337, %v2401
        %v2403 = vpop.f32.mrb[0].mxu0
        %2404 = vmatprep.mubr.f32.mxu0 0.0
        %2405 = vmatmul.mubr.f32.gmra.mrb[0].mxu0 %v235
        %v2406 = vpop.f32.mrb[0].mxu0
        %v2407 = vadd.f32 %v342, %v2406
        %v2408 = vpop.f32.mrb[0].mxu0
        %2409 = vmatprep.mubr.f32.mxu0 0.0
        %2410 = vmatmul.mubr.f32.gmra.mrb[0].mxu0 %v236
        %v2411 = vpop.f32.mrb[0].mxu0
        %v2412 = vadd.f32 %v347, %v2411
        %v2413 = vpop.f32.mrb[0].mxu0
        %2414 = vmatprep.mubr.f32.mxu0 0.0
        %2415 = vmatmul.mubr.f32.gmra.mrb[0].mxu0 %v237
        %v2416 = vpop.f32.mrb[0].mxu0
        %v2417 = vadd.f32 %v352, %v2416
        %v2418 = vpop.f32.mrb[0].mxu0
        %2419 = vmatprep.mubr.f32.mxu0 0.0
        %2420 = vmatmul.mubr.f32.gmra.mrb[0].mxu0 %v238
        %v2421 = vpop.f32.mrb[0].mxu0
        %v2422 = vadd.f32 %v357, %v2421
        %v2423 = vpop.f32.mrb[0].mxu0
        %2424 = vmatprep.mubr.f32.mxu0 0.0
        %2425 = vmatmul.mubr.f32.gmra.mrb[0].mxu0 %v239
        %v2426 = vpop.f32.mrb[0].mxu0
        %v2427 = vadd.f32 %v362, %v2426
        %v2428 = vpop.f32.mrb[0].mxu0
        %2429 = vmatprep.mubr.f32.mxu0 0.0
        %2430 = vmatmul.mubr.f32.gmra.mrb[0].mxu0 %v240
        %v2431 = vpop.f32.mrb[0].mxu0
        %v2432 = vadd.f32 %v367, %v2431
        %v2433 = vpop.f32.mrb[0].mxu0
        %2434 = vmatprep.mubr.f32.mxu0 0.0
        %2435 = vmatmul.mubr.f32.gmra.mrb[0].mxu0 %v241
        %v2436 = vpop.f32.mrb[0].mxu0
        %v2437 = vadd.f32 %v372, %v2436
        %v2438 = vpop.f32.mrb[0].mxu0
        %2439 = vmatprep.mubr.f32.mxu0 0.0
        %2440 = vmatmul.mubr.f32.gmra.mrb[0].mxu0 %v242
        %v2441 = vpop.f32.mrb[0].mxu0
        %v2442 = vadd.f32 %v377, %v2441
        %v2443 = vpop.f32.mrb[0].mxu0
        %2444 = vmatprep.mubr.f32.mxu0 0.0
        %2445 = vmatmul.mubr.f32.gmra.mrb[0].mxu0 %v243
        %v2446 = vpop.f32.mrb[0].mxu0
        %v2447 = vadd.f32 %v382, %v2446
        %v2448 = vpop.f32.mrb[0].mxu0
        %2449 = vmatprep.mubr.f32.mxu0 0.0
        %2450 = vmatmul.mubr.f32.gmra.mrb[0].mxu0 %v244
        %v2451 = vpop.f32.mrb[0].mxu0
        %v2452 = vadd.f32 %v387, %v2451
        %v2453 = vpop.f32.mrb[0].mxu0
        %2454 = vmatprep.mubr.f32.mxu0 0.0
        %2455 = vmatmul.mubr.f32.gmra.mrb[0].mxu0 %v245
        %v2456 = vpop.f32.mrb[0].mxu0
        %v2457 = vadd.f32 %v392, %v2456
        %v2458 = vpop.f32.mrb[0].mxu0
        %2459 = vmatprep.mubr.f32.mxu0 0.0
        %2460 = vmatmul.mubr.f32.gmra.mrb[0].mxu0 %v246
        %v2461 = vpop.f32.mrb[0].mxu0
        %v2462 = vadd.f32 %v397, %v2461
        %v2463 = vpop.f32.mrb[0].mxu0
        %2464 = vmatprep.mubr.f32.mxu0 0.0
        %2465 = vmatmul.mubr.f32.gmra.mrb[0].mxu0 %v247
        %v2466 = vpop.f32.mrb[0].mxu0
        %v2467 = vadd.f32 %v402, %v2466
        %v2468 = vpop.f32.mrb[0].mxu0
        %2469 = vmatprep.mubr.f32.mxu0 0.0
        %2470 = vmatmul.mubr.f32.gmra.mrb[0].mxu0 %v248
        %v2471 = vpop.f32.mrb[0].mxu0
        %v2472 = vadd.f32 %v407, %v2471
        %v2473 = vpop.f32.mrb[0].mxu0
        %2474 = vmatprep.mubr.f32.mxu0 0.0
        %2475 = vmatmul.mubr.f32.gmra.mrb[0].mxu0 %v249
        %v2476 = vpop.f32.mrb[0].mxu0
        %v2477 = vadd.f32 %v412, %v2476
        %v2478 = vpop.f32.mrb[0].mxu0
        %2479 = vmatprep.mubr.f32.mxu0 0.0
        %2480 = vmatmul.mubr.f32.gmra.mrb[0].mxu0 %v250
        %v2481 = vpop.f32.mrb[0].mxu0
        %v2482 = vadd.f32 %v417, %v2481
        %v2483 = vpop.f32.mrb[0].mxu0
        %2484 = vmatprep.mubr.f32.mxu0 0.0
        %2485 = vmatmul.mubr.f32.gmra.mrb[0].mxu0 %v251
        %v2486 = vpop.f32.mrb[0].mxu0
        %v2487 = vadd.f32 %v422, %v2486
        %v2488 = vpop.f32.mrb[0].mxu0
        %2489 = vmatprep.mubr.f32.mxu0 0.0
        %2490 = vmatmul.mubr.f32.gmra.mrb[0].mxu0 %v252
        %v2491 = vpop.f32.mrb[0].mxu0
        %v2492 = vadd.f32 %v427, %v2491
        %v2493 = vpop.f32.mrb[0].mxu0
        %2494 = vmatprep.mubr.f32.mxu0 0.0
        %2495 = vmatmul.mubr.f32.gmra.mrb[0].mxu0 %v253
        %v2496 = vpop.f32.mrb[0].mxu0
        %v2497 = vadd.f32 %v432, %v2496
        %v2498 = vpop.f32.mrb[0].mxu0
        %2499 = vmatprep.mubr.f32.mxu0 0.0
        %2500 = vmatmul.mubr.f32.gmra.mrb[0].mxu0 %v254
        %v2501 = vpop.f32.mrb[0].mxu0
        %v2502 = vadd.f32 %v437, %v2501
        %v2503 = vpop.f32.mrb[0].mxu0
        %2504 = vmatprep.mubr.f32.mxu0 0.0
        %2505 = vmatmul.mubr.f32.gmra.mrb[0].mxu0 %v255
        %v2506 = vpop.f32.mrb[0].mxu0
        %v2507 = vadd.f32 %v442, %v2506
        %v2508 = vpop.f32.mrb[0].mxu0
        %2509 = vmatprep.mubr.f32.mxu0 0.0
        %2510 = vmatmul.mubr.f32.gmra.mrb[0].mxu0 %v256
        %v2511 = vpop.f32.mrb[0].mxu0
        %v2512 = vadd.f32 %v447, %v2511
        %v2513 = vpop.f32.mrb[0].mxu0
        %2514 = vmatprep.mubr.f32.mxu0 0.0
        %2515 = vmatmul.mubr.f32.gmra.mrb[0].mxu0 %v257
        %v2516 = vpop.f32.mrb[0].mxu0
        %v2517 = vadd.f32 %v452, %v2516
        %v2518 = vpop.f32.mrb[0].mxu0
        %2519 = vdwg.mxu0
        %s2520 = scalar_lea.vmem %s206, 1792 [#allocation2]
        %2521 = vst.msk [vmem:[%s2520] sm:$0xff] %vm679, %v2362
        %2522 = vst.msk [vmem:[%s2520 + $0x8] sm:$0xff] %vm679, %v2367
        %2523 = vst.msk [vmem:[%s2520 + $0x10] sm:$0xff] %vm679, %v2372
        %2524 = vst.msk [vmem:[%s2520 + $0x18] sm:$0xff] %vm679, %v2377
        %2525 = vst.msk [vmem:[%s2520 + $0x20] sm:$0xff] %vm679, %v2382
        %2526 = vst.msk [vmem:[%s2520 + $0x28] sm:$0xff] %vm679, %v2387
        %2527 = vst.msk [vmem:[%s2520 + $0x30] sm:$0xff] %vm679, %v2392
        %2528 = vst.msk [vmem:[%s2520 + $0x38] sm:$0xff] %vm679, %v2397
        %2529 = vst.msk [vmem:[%s2520 + $0x40] sm:$0xff] %vm679, %v2402
        %2530 = vst.msk [vmem:[%s2520 + $0x48] sm:$0xff] %vm679, %v2407
        %2531 = vst.msk [vmem:[%s2520 + $0x50] sm:$0xff] %vm679, %v2412
        %2532 = vst.msk [vmem:[%s2520 + $0x58] sm:$0xff] %vm679, %v2417
        %2533 = vst.msk [vmem:[%s2520 + $0x60] sm:$0xff] %vm679, %v2422
        %2534 = vst.msk [vmem:[%s2520 + $0x68] sm:$0xff] %vm679, %v2427
        %2535 = vst.msk [vmem:[%s2520 + $0x70] sm:$0xff] %vm679, %v2432
        %2536 = vst.msk [vmem:[%s2520 + $0x78] sm:$0xff] %vm679, %v2437
        %2537 = vst.msk [vmem:[%s2520 + $0x80] sm:$0xff] %vm679, %v2442
        %2538 = vst.msk [vmem:[%s2520 + $0x88] sm:$0xff] %vm679, %v2447
        %2539 = vst.msk [vmem:[%s2520 + $0x90] sm:$0xff] %vm679, %v2452
        %2540 = vst.msk [vmem:[%s2520 + $0x98] sm:$0xff] %vm679, %v2457
        %2541 = vst.msk [vmem:[%s2520 + $0xa0] sm:$0xff] %vm679, %v2462
        %2542 = vst.msk [vmem:[%s2520 + $0xa8] sm:$0xff] %vm679, %v2467
        %2543 = vst.msk [vmem:[%s2520 + $0xb0] sm:$0xff] %vm679, %v2472
        %2544 = vst.msk [vmem:[%s2520 + $0xb8] sm:$0xff] %vm679, %v2477
        %2545 = vst.msk [vmem:[%s2520 + $0xc0] sm:$0xff] %vm679, %v2482
        %2546 = vst.msk [vmem:[%s2520 + $0xc8] sm:$0xff] %vm679, %v2487
        %2547 = vst.msk [vmem:[%s2520 + $0xd0] sm:$0xff] %vm679, %v2492
        %2548 = vst.msk [vmem:[%s2520 + $0xd8] sm:$0xff] %vm679, %v2497
        %2549 = vst.msk [vmem:[%s2520 + $0xe0] sm:$0xff] %vm679, %v2502
        %2550 = vst.msk [vmem:[%s2520 + $0xe8] sm:$0xff] %vm679, %v2507
        %2551 = vst.msk [vmem:[%s2520 + $0xf0] sm:$0xff] %vm679, %v2512
        %2552 = vst.msk [vmem:[%s2520 + $0xf8] sm:$0xff] %vm679, %v2517
        %s2553 = sand.u32 %s114, 1
        %s2554 = sand.u32 %s114, 1
        %s2555 = smul.addr %s2554, 2048
        %s2556 = scalar_lea.vmem [#allocation2], %s2555
        // Predicated region
        $region33: #{lm_rnn_forward.3} parent=31 // pred_check
          %p2557 = pneg %p124
        $region34: #{lm_rnn_forward.3} parent=31 // pred_check_branch
          %2559 = sbr.rel (%p2557) target = $region36
        $region35: #{lm_rnn_forward.3} parent=31 // pred_region
          %s2560 = smul.u32 32, %s18
          %s2561 = sadd.s32 %s19, %s2560
          %s2562 = smul.addr %s2561, 8
          %s2563 = scalar_lea.vmem %s3, %s2562
          // Predicated region
          $region37: #{lm_rnn_forward.3} parent=35 // pred_check
            _
          $region38: #{lm_rnn_forward.3} parent=35 // pred_check_branch
            %2565 = sbr.rel (0) target = $region40
          $region39: #{lm_rnn_forward.3} parent=35 // pred_region
            // Predicated region
            $region41: #{lm_rnn_forward.3} parent=39 // pred_check
              _
            $region42: #{lm_rnn_forward.3} parent=39 // pred_check_branch
              %2567 = sbr.rel (0) target = $region44
            $region43: #{lm_rnn_forward.3} parent=39 // pred_region
              // Predicated region
              $region56: #{lm_rnn_forward.3} parent=43 // pred_check
                _
              $region57: #{lm_rnn_forward.3} parent=43 // pred_check_branch
                %3092 = sbr.rel (0) target = $region59
              $region58: #{lm_rnn_forward.3} parent=43 // pred_region
                loop: start=0, step=1, limit=1
                $region60: #{lm_rnn_forward.3} parent=58 // loop_pre_header
                  _
                $region61: #{lm_rnn_forward.3} parent=58 // loop_header
                  %s3094 = sphi 0, %s3098
                  %p3095 = scmp.ge.s32.totalorder %s3094, 1
                  %s3099 = sphi %s2556, %s2556
                  %s3100 = sphi %s2563, %s2563
                $region62: #{lm_rnn_forward.3} parent=58 // loop_header_branch
                  %3097 = sbr.rel (%p3095) target = $region66
                $region63: #{lm_rnn_forward.3} parent=58 // loop_body
                  %v3101 = vld [vmem:[%s3099] sm:$0xff]
                  %3102 = vst [vmem:[%s3100] sm:$0xff] %v3101
                  %v3103 = vld [vmem:[%s3099 + $0x8] sm:$0xff]
                  %3104 = vst [vmem:[%s3100 + $0x8] sm:$0xff] %v3103
                  %v3105 = vld [vmem:[%s3099 + $0x10] sm:$0xff]
                  %3106 = vst [vmem:[%s3100 + $0x10] sm:$0xff] %v3105
                  %v3107 = vld [vmem:[%s3099 + $0x18] sm:$0xff]
                  %3108 = vst [vmem:[%s3100 + $0x18] sm:$0xff] %v3107
                  %v3109 = vld [vmem:[%s3099 + $0x20] sm:$0xff]
                  %3110 = vst [vmem:[%s3100 + $0x20] sm:$0xff] %v3109
                  %v3111 = vld [vmem:[%s3099 + $0x28] sm:$0xff]
                  %3112 = vst [vmem:[%s3100 + $0x28] sm:$0xff] %v3111
                  %v3113 = vld [vmem:[%s3099 + $0x30] sm:$0xff]
                  %3114 = vst [vmem:[%s3100 + $0x30] sm:$0xff] %v3113
                  %v3115 = vld [vmem:[%s3099 + $0x38] sm:$0xff]
                  %3116 = vst [vmem:[%s3100 + $0x38] sm:$0xff] %v3115
                  %v3117 = vld [vmem:[%s3099 + $0x40] sm:$0xff]
                  %3118 = vst [vmem:[%s3100 + $0x40] sm:$0xff] %v3117
                  %v3119 = vld [vmem:[%s3099 + $0x48] sm:$0xff]
                  %3120 = vst [vmem:[%s3100 + $0x48] sm:$0xff] %v3119
                  %v3121 = vld [vmem:[%s3099 + $0x50] sm:$0xff]
                  %3122 = vst [vmem:[%s3100 + $0x50] sm:$0xff] %v3121
                  %v3123 = vld [vmem:[%s3099 + $0x58] sm:$0xff]
                  %3124 = vst [vmem:[%s3100 + $0x58] sm:$0xff] %v3123
                  %v3125 = vld [vmem:[%s3099 + $0x60] sm:$0xff]
                  %3126 = vst [vmem:[%s3100 + $0x60] sm:$0xff] %v3125
                  %v3127 = vld [vmem:[%s3099 + $0x68] sm:$0xff]
                  %3128 = vst [vmem:[%s3100 + $0x68] sm:$0xff] %v3127
                  %v3129 = vld [vmem:[%s3099 + $0x70] sm:$0xff]
                  %3130 = vst [vmem:[%s3100 + $0x70] sm:$0xff] %v3129
                  %v3131 = vld [vmem:[%s3099 + $0x78] sm:$0xff]
                  %3132 = vst [vmem:[%s3100 + $0x78] sm:$0xff] %v3131
                  %v3133 = vld [vmem:[%s3099 + $0x80] sm:$0xff]
                  %3134 = vst [vmem:[%s3100 + $0x80] sm:$0xff] %v3133
                  %v3135 = vld [vmem:[%s3099 + $0x88] sm:$0xff]
                  %3136 = vst [vmem:[%s3100 + $0x88] sm:$0xff] %v3135
                  %v3137 = vld [vmem:[%s3099 + $0x90] sm:$0xff]
                  %3138 = vst [vmem:[%s3100 + $0x90] sm:$0xff] %v3137
                  %v3139 = vld [vmem:[%s3099 + $0x98] sm:$0xff]
                  %3140 = vst [vmem:[%s3100 + $0x98] sm:$0xff] %v3139
                  %v3141 = vld [vmem:[%s3099 + $0xa0] sm:$0xff]
                  %3142 = vst [vmem:[%s3100 + $0xa0] sm:$0xff] %v3141
                  %v3143 = vld [vmem:[%s3099 + $0xa8] sm:$0xff]
                  %3144 = vst [vmem:[%s3100 + $0xa8] sm:$0xff] %v3143
                  %v3145 = vld [vmem:[%s3099 + $0xb0] sm:$0xff]
                  %3146 = vst [vmem:[%s3100 + $0xb0] sm:$0xff] %v3145
                  %v3147 = vld [vmem:[%s3099 + $0xb8] sm:$0xff]
                  %3148 = vst [vmem:[%s3100 + $0xb8] sm:$0xff] %v3147
                  %v3149 = vld [vmem:[%s3099 + $0xc0] sm:$0xff]
                  %3150 = vst [vmem:[%s3100 + $0xc0] sm:$0xff] %v3149
                  %v3151 = vld [vmem:[%s3099 + $0xc8] sm:$0xff]
                  %3152 = vst [vmem:[%s3100 + $0xc8] sm:$0xff] %v3151
                  %v3153 = vld [vmem:[%s3099 + $0xd0] sm:$0xff]
                  %3154 = vst [vmem:[%s3100 + $0xd0] sm:$0xff] %v3153
                  %v3155 = vld [vmem:[%s3099 + $0xd8] sm:$0xff]
                  %3156 = vst [vmem:[%s3100 + $0xd8] sm:$0xff] %v3155
                  %v3157 = vld [vmem:[%s3099 + $0xe0] sm:$0xff]
                  %3158 = vst [vmem:[%s3100 + $0xe0] sm:$0xff] %v3157
                  %v3159 = vld [vmem:[%s3099 + $0xe8] sm:$0xff]
                  %3160 = vst [vmem:[%s3100 + $0xe8] sm:$0xff] %v3159
                  %v3161 = vld [vmem:[%s3099 + $0xf0] sm:$0xff]
                  %3162 = vst [vmem:[%s3100 + $0xf0] sm:$0xff] %v3161
                  %v3163 = vld [vmem:[%s3099 + $0xf8] sm:$0xff]
                  %3164 = vst [vmem:[%s3100 + $0xf8] sm:$0xff] %v3163
                  %v3165 = vld [vmem:[%s3099 + $0x100] sm:$0xff]
                  %3166 = vst [vmem:[%s3100 + $0x200] sm:$0xff] %v3165
                  %v3167 = vld [vmem:[%s3099 + $0x108] sm:$0xff]
                  %3168 = vst [vmem:[%s3100 + $0x208] sm:$0xff] %v3167
                  %v3169 = vld [vmem:[%s3099 + $0x110] sm:$0xff]
                  %3170 = vst [vmem:[%s3100 + $0x210] sm:$0xff] %v3169
                  %v3171 = vld [vmem:[%s3099 + $0x118] sm:$0xff]
                  %3172 = vst [vmem:[%s3100 + $0x218] sm:$0xff] %v3171
                  %v3173 = vld [vmem:[%s3099 + $0x120] sm:$0xff]
                  %3174 = vst [vmem:[%s3100 + $0x220] sm:$0xff] %v3173
                  %v3175 = vld [vmem:[%s3099 + $0x128] sm:$0xff]
                  %3176 = vst [vmem:[%s3100 + $0x228] sm:$0xff] %v3175
                  %v3177 = vld [vmem:[%s3099 + $0x130] sm:$0xff]
                  %3178 = vst [vmem:[%s3100 + $0x230] sm:$0xff] %v3177
                  %v3179 = vld [vmem:[%s3099 + $0x138] sm:$0xff]
                  %3180 = vst [vmem:[%s3100 + $0x238] sm:$0xff] %v3179
                  %v3181 = vld [vmem:[%s3099 + $0x140] sm:$0xff]
                  %3182 = vst [vmem:[%s3100 + $0x240] sm:$0xff] %v3181
                  %v3183 = vld [vmem:[%s3099 + $0x148] sm:$0xff]
                  %3184 = vst [vmem:[%s3100 + $0x248] sm:$0xff] %v3183
                  %v3185 = vld [vmem:[%s3099 + $0x150] sm:$0xff]
                  %3186 = vst [vmem:[%s3100 + $0x250] sm:$0xff] %v3185
                  %v3187 = vld [vmem:[%s3099 + $0x158] sm:$0xff]
                  %3188 = vst [vmem:[%s3100 + $0x258] sm:$0xff] %v3187
                  %v3189 = vld [vmem:[%s3099 + $0x160] sm:$0xff]
                  %3190 = vst [vmem:[%s3100 + $0x260] sm:$0xff] %v3189
                  %v3191 = vld [vmem:[%s3099 + $0x168] sm:$0xff]
                  %3192 = vst [vmem:[%s3100 + $0x268] sm:$0xff] %v3191
                  %v3193 = vld [vmem:[%s3099 + $0x170] sm:$0xff]
                  %3194 = vst [vmem:[%s3100 + $0x270] sm:$0xff] %v3193
                  %v3195 = vld [vmem:[%s3099 + $0x178] sm:$0xff]
                  %3196 = vst [vmem:[%s3100 + $0x278] sm:$0xff] %v3195
                  %v3197 = vld [vmem:[%s3099 + $0x180] sm:$0xff]
                  %3198 = vst [vmem:[%s3100 + $0x280] sm:$0xff] %v3197
                  %v3199 = vld [vmem:[%s3099 + $0x188] sm:$0xff]
                  %3200 = vst [vmem:[%s3100 + $0x288] sm:$0xff] %v3199
                  %v3201 = vld [vmem:[%s3099 + $0x190] sm:$0xff]
                  %3202 = vst [vmem:[%s3100 + $0x290] sm:$0xff] %v3201
                  %v3203 = vld [vmem:[%s3099 + $0x198] sm:$0xff]
                  %3204 = vst [vmem:[%s3100 + $0x298] sm:$0xff] %v3203
                  %v3205 = vld [vmem:[%s3099 + $0x1a0] sm:$0xff]
                  %3206 = vst [vmem:[%s3100 + $0x2a0] sm:$0xff] %v3205
                  %v3207 = vld [vmem:[%s3099 + $0x1a8] sm:$0xff]
                  %3208 = vst [vmem:[%s3100 + $0x2a8] sm:$0xff] %v3207
                  %v3209 = vld [vmem:[%s3099 + $0x1b0] sm:$0xff]
                  %3210 = vst [vmem:[%s3100 + $0x2b0] sm:$0xff] %v3209
                  %v3211 = vld [vmem:[%s3099 + $0x1b8] sm:$0xff]
                  %3212 = vst [vmem:[%s3100 + $0x2b8] sm:$0xff] %v3211
                  %v3213 = vld [vmem:[%s3099 + $0x1c0] sm:$0xff]
                  %3214 = vst [vmem:[%s3100 + $0x2c0] sm:$0xff] %v3213
                  %v3215 = vld [vmem:[%s3099 + $0x1c8] sm:$0xff]
                  %3216 = vst [vmem:[%s3100 + $0x2c8] sm:$0xff] %v3215
                  %v3217 = vld [vmem:[%s3099 + $0x1d0] sm:$0xff]
                  %3218 = vst [vmem:[%s3100 + $0x2d0] sm:$0xff] %v3217
                  %v3219 = vld [vmem:[%s3099 + $0x1d8] sm:$0xff]
                  %3220 = vst [vmem:[%s3100 + $0x2d8] sm:$0xff] %v3219
                  %v3221 = vld [vmem:[%s3099 + $0x1e0] sm:$0xff]
                  %3222 = vst [vmem:[%s3100 + $0x2e0] sm:$0xff] %v3221
                  %v3223 = vld [vmem:[%s3099 + $0x1e8] sm:$0xff]
                  %3224 = vst [vmem:[%s3100 + $0x2e8] sm:$0xff] %v3223
                  %v3225 = vld [vmem:[%s3099 + $0x1f0] sm:$0xff]
                  %3226 = vst [vmem:[%s3100 + $0x2f0] sm:$0xff] %v3225
                  %v3227 = vld [vmem:[%s3099 + $0x1f8] sm:$0xff]
                  %3228 = vst [vmem:[%s3100 + $0x2f8] sm:$0xff] %v3227
                  %v3229 = vld [vmem:[%s3099 + $0x200] sm:$0xff]
                  %3230 = vst [vmem:[%s3100 + $0x400] sm:$0xff] %v3229
                  %v3231 = vld [vmem:[%s3099 + $0x208] sm:$0xff]
                  %3232 = vst [vmem:[%s3100 + $0x408] sm:$0xff] %v3231
                  %v3233 = vld [vmem:[%s3099 + $0x210] sm:$0xff]
                  %3234 = vst [vmem:[%s3100 + $0x410] sm:$0xff] %v3233
                  %v3235 = vld [vmem:[%s3099 + $0x218] sm:$0xff]
                  %3236 = vst [vmem:[%s3100 + $0x418] sm:$0xff] %v3235
                  %v3237 = vld [vmem:[%s3099 + $0x220] sm:$0xff]
                  %3238 = vst [vmem:[%s3100 + $0x420] sm:$0xff] %v3237
                  %v3239 = vld [vmem:[%s3099 + $0x228] sm:$0xff]
                  %3240 = vst [vmem:[%s3100 + $0x428] sm:$0xff] %v3239
                  %v3241 = vld [vmem:[%s3099 + $0x230] sm:$0xff]
                  %3242 = vst [vmem:[%s3100 + $0x430] sm:$0xff] %v3241
                  %v3243 = vld [vmem:[%s3099 + $0x238] sm:$0xff]
                  %3244 = vst [vmem:[%s3100 + $0x438] sm:$0xff] %v3243
                  %v3245 = vld [vmem:[%s3099 + $0x240] sm:$0xff]
                  %3246 = vst [vmem:[%s3100 + $0x440] sm:$0xff] %v3245
                  %v3247 = vld [vmem:[%s3099 + $0x248] sm:$0xff]
                  %3248 = vst [vmem:[%s3100 + $0x448] sm:$0xff] %v3247
                  %v3249 = vld [vmem:[%s3099 + $0x250] sm:$0xff]
                  %3250 = vst [vmem:[%s3100 + $0x450] sm:$0xff] %v3249
                  %v3251 = vld [vmem:[%s3099 + $0x258] sm:$0xff]
                  %3252 = vst [vmem:[%s3100 + $0x458] sm:$0xff] %v3251
                  %v3253 = vld [vmem:[%s3099 + $0x260] sm:$0xff]
                  %3254 = vst [vmem:[%s3100 + $0x460] sm:$0xff] %v3253
                  %v3255 = vld [vmem:[%s3099 + $0x268] sm:$0xff]
                  %3256 = vst [vmem:[%s3100 + $0x468] sm:$0xff] %v3255
                  %v3257 = vld [vmem:[%s3099 + $0x270] sm:$0xff]
                  %3258 = vst [vmem:[%s3100 + $0x470] sm:$0xff] %v3257
                  %v3259 = vld [vmem:[%s3099 + $0x278] sm:$0xff]
                  %3260 = vst [vmem:[%s3100 + $0x478] sm:$0xff] %v3259
                  %v3261 = vld [vmem:[%s3099 + $0x280] sm:$0xff]
                  %3262 = vst [vmem:[%s3100 + $0x480] sm:$0xff] %v3261
                  %v3263 = vld [vmem:[%s3099 + $0x288] sm:$0xff]
                  %3264 = vst [vmem:[%s3100 + $0x488] sm:$0xff] %v3263
                  %v3265 = vld [vmem:[%s3099 + $0x290] sm:$0xff]
                  %3266 = vst [vmem:[%s3100 + $0x490] sm:$0xff] %v3265
                  %v3267 = vld [vmem:[%s3099 + $0x298] sm:$0xff]
                  %3268 = vst [vmem:[%s3100 + $0x498] sm:$0xff] %v3267
                  %v3269 = vld [vmem:[%s3099 + $0x2a0] sm:$0xff]
                  %3270 = vst [vmem:[%s3100 + $0x4a0] sm:$0xff] %v3269
                  %v3271 = vld [vmem:[%s3099 + $0x2a8] sm:$0xff]
                  %3272 = vst [vmem:[%s3100 + $0x4a8] sm:$0xff] %v3271
                  %v3273 = vld [vmem:[%s3099 + $0x2b0] sm:$0xff]
                  %3274 = vst [vmem:[%s3100 + $0x4b0] sm:$0xff] %v3273
                  %v3275 = vld [vmem:[%s3099 + $0x2b8] sm:$0xff]
                  %3276 = vst [vmem:[%s3100 + $0x4b8] sm:$0xff] %v3275
                  %v3277 = vld [vmem:[%s3099 + $0x2c0] sm:$0xff]
                  %3278 = vst [vmem:[%s3100 + $0x4c0] sm:$0xff] %v3277
                  %v3279 = vld [vmem:[%s3099 + $0x2c8] sm:$0xff]
                  %3280 = vst [vmem:[%s3100 + $0x4c8] sm:$0xff] %v3279
                  %v3281 = vld [vmem:[%s3099 + $0x2d0] sm:$0xff]
                  %3282 = vst [vmem:[%s3100 + $0x4d0] sm:$0xff] %v3281
                  %v3283 = vld [vmem:[%s3099 + $0x2d8] sm:$0xff]
                  %3284 = vst [vmem:[%s3100 + $0x4d8] sm:$0xff] %v3283
                  %v3285 = vld [vmem:[%s3099 + $0x2e0] sm:$0xff]
                  %3286 = vst [vmem:[%s3100 + $0x4e0] sm:$0xff] %v3285
                  %v3287 = vld [vmem:[%s3099 + $0x2e8] sm:$0xff]
                  %3288 = vst [vmem:[%s3100 + $0x4e8] sm:$0xff] %v3287
                  %v3289 = vld [vmem:[%s3099 + $0x2f0] sm:$0xff]
                  %3290 = vst [vmem:[%s3100 + $0x4f0] sm:$0xff] %v3289
                  %v3291 = vld [vmem:[%s3099 + $0x2f8] sm:$0xff]
                  %3292 = vst [vmem:[%s3100 + $0x4f8] sm:$0xff] %v3291
                  %v3293 = vld [vmem:[%s3099 + $0x300] sm:$0xff]
                  %3294 = vst [vmem:[%s3100 + $0x600] sm:$0xff] %v3293
                  %v3295 = vld [vmem:[%s3099 + $0x308] sm:$0xff]
                  %3296 = vst [vmem:[%s3100 + $0x608] sm:$0xff] %v3295
                  %v3297 = vld [vmem:[%s3099 + $0x310] sm:$0xff]
                  %3298 = vst [vmem:[%s3100 + $0x610] sm:$0xff] %v3297
                  %v3299 = vld [vmem:[%s3099 + $0x318] sm:$0xff]
                  %3300 = vst [vmem:[%s3100 + $0x618] sm:$0xff] %v3299
                  %v3301 = vld [vmem:[%s3099 + $0x320] sm:$0xff]
                  %3302 = vst [vmem:[%s3100 + $0x620] sm:$0xff] %v3301
                  %v3303 = vld [vmem:[%s3099 + $0x328] sm:$0xff]
                  %3304 = vst [vmem:[%s3100 + $0x628] sm:$0xff] %v3303
                  %v3305 = vld [vmem:[%s3099 + $0x330] sm:$0xff]
                  %3306 = vst [vmem:[%s3100 + $0x630] sm:$0xff] %v3305
                  %v3307 = vld [vmem:[%s3099 + $0x338] sm:$0xff]
                  %3308 = vst [vmem:[%s3100 + $0x638] sm:$0xff] %v3307
                  %v3309 = vld [vmem:[%s3099 + $0x340] sm:$0xff]
                  %3310 = vst [vmem:[%s3100 + $0x640] sm:$0xff] %v3309
                  %v3311 = vld [vmem:[%s3099 + $0x348] sm:$0xff]
                  %3312 = vst [vmem:[%s3100 + $0x648] sm:$0xff] %v3311
                  %v3313 = vld [vmem:[%s3099 + $0x350] sm:$0xff]
                  %3314 = vst [vmem:[%s3100 + $0x650] sm:$0xff] %v3313
                  %v3315 = vld [vmem:[%s3099 + $0x358] sm:$0xff]
                  %3316 = vst [vmem:[%s3100 + $0x658] sm:$0xff] %v3315
                  %v3317 = vld [vmem:[%s3099 + $0x360] sm:$0xff]
                  %3318 = vst [vmem:[%s3100 + $0x660] sm:$0xff] %v3317
                  %v3319 = vld [vmem:[%s3099 + $0x368] sm:$0xff]
                  %3320 = vst [vmem:[%s3100 + $0x668] sm:$0xff] %v3319
                  %v3321 = vld [vmem:[%s3099 + $0x370] sm:$0xff]
                  %3322 = vst [vmem:[%s3100 + $0x670] sm:$0xff] %v3321
                  %v3323 = vld [vmem:[%s3099 + $0x378] sm:$0xff]
                  %3324 = vst [vmem:[%s3100 + $0x678] sm:$0xff] %v3323
                  %v3325 = vld [vmem:[%s3099 + $0x380] sm:$0xff]
                  %3326 = vst [vmem:[%s3100 + $0x680] sm:$0xff] %v3325
                  %v3327 = vld [vmem:[%s3099 + $0x388] sm:$0xff]
                  %3328 = vst [vmem:[%s3100 + $0x688] sm:$0xff] %v3327
                  %v3329 = vld [vmem:[%s3099 + $0x390] sm:$0xff]
                  %3330 = vst [vmem:[%s3100 + $0x690] sm:$0xff] %v3329
                  %v3331 = vld [vmem:[%s3099 + $0x398] sm:$0xff]
                  %3332 = vst [vmem:[%s3100 + $0x698] sm:$0xff] %v3331
                  %v3333 = vld [vmem:[%s3099 + $0x3a0] sm:$0xff]
                  %3334 = vst [vmem:[%s3100 + $0x6a0] sm:$0xff] %v3333
                  %v3335 = vld [vmem:[%s3099 + $0x3a8] sm:$0xff]
                  %3336 = vst [vmem:[%s3100 + $0x6a8] sm:$0xff] %v3335
                  %v3337 = vld [vmem:[%s3099 + $0x3b0] sm:$0xff]
                  %3338 = vst [vmem:[%s3100 + $0x6b0] sm:$0xff] %v3337
                  %v3339 = vld [vmem:[%s3099 + $0x3b8] sm:$0xff]
                  %3340 = vst [vmem:[%s3100 + $0x6b8] sm:$0xff] %v3339
                  %v3341 = vld [vmem:[%s3099 + $0x3c0] sm:$0xff]
                  %3342 = vst [vmem:[%s3100 + $0x6c0] sm:$0xff] %v3341
                  %v3343 = vld [vmem:[%s3099 + $0x3c8] sm:$0xff]
                  %3344 = vst [vmem:[%s3100 + $0x6c8] sm:$0xff] %v3343
                  %v3345 = vld [vmem:[%s3099 + $0x3d0] sm:$0xff]
                  %3346 = vst [vmem:[%s3100 + $0x6d0] sm:$0xff] %v3345
                  %v3347 = vld [vmem:[%s3099 + $0x3d8] sm:$0xff]
                  %3348 = vst [vmem:[%s3100 + $0x6d8] sm:$0xff] %v3347
                  %v3349 = vld [vmem:[%s3099 + $0x3e0] sm:$0xff]
                  %3350 = vst [vmem:[%s3100 + $0x6e0] sm:$0xff] %v3349
                  %v3351 = vld [vmem:[%s3099 + $0x3e8] sm:$0xff]
                  %3352 = vst [vmem:[%s3100 + $0x6e8] sm:$0xff] %v3351
                  %v3353 = vld [vmem:[%s3099 + $0x3f0] sm:$0xff]
                  %3354 = vst [vmem:[%s3100 + $0x6f0] sm:$0xff] %v3353
                  %v3355 = vld [vmem:[%s3099 + $0x3f8] sm:$0xff]
                  %3356 = vst [vmem:[%s3100 + $0x6f8] sm:$0xff] %v3355
                  %v3357 = vld [vmem:[%s3099 + $0x400] sm:$0xff]
                  %3358 = vst [vmem:[%s3100 + $0x800] sm:$0xff] %v3357
                  %v3359 = vld [vmem:[%s3099 + $0x408] sm:$0xff]
                  %3360 = vst [vmem:[%s3100 + $0x808] sm:$0xff] %v3359
                  %v3361 = vld [vmem:[%s3099 + $0x410] sm:$0xff]
                  %3362 = vst [vmem:[%s3100 + $0x810] sm:$0xff] %v3361
                  %v3363 = vld [vmem:[%s3099 + $0x418] sm:$0xff]
                  %3364 = vst [vmem:[%s3100 + $0x818] sm:$0xff] %v3363
                  %v3365 = vld [vmem:[%s3099 + $0x420] sm:$0xff]
                  %3366 = vst [vmem:[%s3100 + $0x820] sm:$0xff] %v3365
                  %v3367 = vld [vmem:[%s3099 + $0x428] sm:$0xff]
                  %3368 = vst [vmem:[%s3100 + $0x828] sm:$0xff] %v3367
                  %v3369 = vld [vmem:[%s3099 + $0x430] sm:$0xff]
                  %3370 = vst [vmem:[%s3100 + $0x830] sm:$0xff] %v3369
                  %v3371 = vld [vmem:[%s3099 + $0x438] sm:$0xff]
                  %3372 = vst [vmem:[%s3100 + $0x838] sm:$0xff] %v3371
                  %v3373 = vld [vmem:[%s3099 + $0x440] sm:$0xff]
                  %3374 = vst [vmem:[%s3100 + $0x840] sm:$0xff] %v3373
                  %v3375 = vld [vmem:[%s3099 + $0x448] sm:$0xff]
                  %3376 = vst [vmem:[%s3100 + $0x848] sm:$0xff] %v3375
                  %v3377 = vld [vmem:[%s3099 + $0x450] sm:$0xff]
                  %3378 = vst [vmem:[%s3100 + $0x850] sm:$0xff] %v3377
                  %v3379 = vld [vmem:[%s3099 + $0x458] sm:$0xff]
                  %3380 = vst [vmem:[%s3100 + $0x858] sm:$0xff] %v3379
                  %v3381 = vld [vmem:[%s3099 + $0x460] sm:$0xff]
                  %3382 = vst [vmem:[%s3100 + $0x860] sm:$0xff] %v3381
                  %v3383 = vld [vmem:[%s3099 + $0x468] sm:$0xff]
                  %3384 = vst [vmem:[%s3100 + $0x868] sm:$0xff] %v3383
                  %v3385 = vld [vmem:[%s3099 + $0x470] sm:$0xff]
                  %3386 = vst [vmem:[%s3100 + $0x870] sm:$0xff] %v3385
                  %v3387 = vld [vmem:[%s3099 + $0x478] sm:$0xff]
                  %3388 = vst [vmem:[%s3100 + $0x878] sm:$0xff] %v3387
                  %v3389 = vld [vmem:[%s3099 + $0x480] sm:$0xff]
                  %3390 = vst [vmem:[%s3100 + $0x880] sm:$0xff] %v3389
                  %v3391 = vld [vmem:[%s3099 + $0x488] sm:$0xff]
                  %3392 = vst [vmem:[%s3100 + $0x888] sm:$0xff] %v3391
                  %v3393 = vld [vmem:[%s3099 + $0x490] sm:$0xff]
                  %3394 = vst [vmem:[%s3100 + $0x890] sm:$0xff] %v3393
                  %v3395 = vld [vmem:[%s3099 + $0x498] sm:$0xff]
                  %3396 = vst [vmem:[%s3100 + $0x898] sm:$0xff] %v3395
                  %v3397 = vld [vmem:[%s3099 + $0x4a0] sm:$0xff]
                  %3398 = vst [vmem:[%s3100 + $0x8a0] sm:$0xff] %v3397
                  %v3399 = vld [vmem:[%s3099 + $0x4a8] sm:$0xff]
                  %3400 = vst [vmem:[%s3100 + $0x8a8] sm:$0xff] %v3399
                  %v3401 = vld [vmem:[%s3099 + $0x4b0] sm:$0xff]
                  %3402 = vst [vmem:[%s3100 + $0x8b0] sm:$0xff] %v3401
                  %v3403 = vld [vmem:[%s3099 + $0x4b8] sm:$0xff]
                  %3404 = vst [vmem:[%s3100 + $0x8b8] sm:$0xff] %v3403
                  %v3405 = vld [vmem:[%s3099 + $0x4c0] sm:$0xff]
                  %3406 = vst [vmem:[%s3100 + $0x8c0] sm:$0xff] %v3405
                  %v3407 = vld [vmem:[%s3099 + $0x4c8] sm:$0xff]
                  %3408 = vst [vmem:[%s3100 + $0x8c8] sm:$0xff] %v3407
                  %v3409 = vld [vmem:[%s3099 + $0x4d0] sm:$0xff]
                  %3410 = vst [vmem:[%s3100 + $0x8d0] sm:$0xff] %v3409
                  %v3411 = vld [vmem:[%s3099 + $0x4d8] sm:$0xff]
                  %3412 = vst [vmem:[%s3100 + $0x8d8] sm:$0xff] %v3411
                  %v3413 = vld [vmem:[%s3099 + $0x4e0] sm:$0xff]
                  %3414 = vst [vmem:[%s3100 + $0x8e0] sm:$0xff] %v3413
                  %v3415 = vld [vmem:[%s3099 + $0x4e8] sm:$0xff]
                  %3416 = vst [vmem:[%s3100 + $0x8e8] sm:$0xff] %v3415
                  %v3417 = vld [vmem:[%s3099 + $0x4f0] sm:$0xff]
                  %3418 = vst [vmem:[%s3100 + $0x8f0] sm:$0xff] %v3417
                  %v3419 = vld [vmem:[%s3099 + $0x4f8] sm:$0xff]
                  %3420 = vst [vmem:[%s3100 + $0x8f8] sm:$0xff] %v3419
                  %v3421 = vld [vmem:[%s3099 + $0x500] sm:$0xff]
                  %3422 = vst [vmem:[%s3100 + $0xa00] sm:$0xff] %v3421
                  %v3423 = vld [vmem:[%s3099 + $0x508] sm:$0xff]
                  %3424 = vst [vmem:[%s3100 + $0xa08] sm:$0xff] %v3423
                  %v3425 = vld [vmem:[%s3099 + $0x510] sm:$0xff]
                  %3426 = vst [vmem:[%s3100 + $0xa10] sm:$0xff] %v3425
                  %v3427 = vld [vmem:[%s3099 + $0x518] sm:$0xff]
                  %3428 = vst [vmem:[%s3100 + $0xa18] sm:$0xff] %v3427
                  %v3429 = vld [vmem:[%s3099 + $0x520] sm:$0xff]
                  %3430 = vst [vmem:[%s3100 + $0xa20] sm:$0xff] %v3429
                  %v3431 = vld [vmem:[%s3099 + $0x528] sm:$0xff]
                  %3432 = vst [vmem:[%s3100 + $0xa28] sm:$0xff] %v3431
                  %v3433 = vld [vmem:[%s3099 + $0x530] sm:$0xff]
                  %3434 = vst [vmem:[%s3100 + $0xa30] sm:$0xff] %v3433
                  %v3435 = vld [vmem:[%s3099 + $0x538] sm:$0xff]
                  %3436 = vst [vmem:[%s3100 + $0xa38] sm:$0xff] %v3435
                  %v3437 = vld [vmem:[%s3099 + $0x540] sm:$0xff]
                  %3438 = vst [vmem:[%s3100 + $0xa40] sm:$0xff] %v3437
                  %v3439 = vld [vmem:[%s3099 + $0x548] sm:$0xff]
                  %3440 = vst [vmem:[%s3100 + $0xa48] sm:$0xff] %v3439
                  %v3441 = vld [vmem:[%s3099 + $0x550] sm:$0xff]
                  %3442 = vst [vmem:[%s3100 + $0xa50] sm:$0xff] %v3441
                  %v3443 = vld [vmem:[%s3099 + $0x558] sm:$0xff]
                  %3444 = vst [vmem:[%s3100 + $0xa58] sm:$0xff] %v3443
                  %v3445 = vld [vmem:[%s3099 + $0x560] sm:$0xff]
                  %3446 = vst [vmem:[%s3100 + $0xa60] sm:$0xff] %v3445
                  %v3447 = vld [vmem:[%s3099 + $0x568] sm:$0xff]
                  %3448 = vst [vmem:[%s3100 + $0xa68] sm:$0xff] %v3447
                  %v3449 = vld [vmem:[%s3099 + $0x570] sm:$0xff]
                  %3450 = vst [vmem:[%s3100 + $0xa70] sm:$0xff] %v3449
                  %v3451 = vld [vmem:[%s3099 + $0x578] sm:$0xff]
                  %3452 = vst [vmem:[%s3100 + $0xa78] sm:$0xff] %v3451
                  %v3453 = vld [vmem:[%s3099 + $0x580] sm:$0xff]
                  %3454 = vst [vmem:[%s3100 + $0xa80] sm:$0xff] %v3453
                  %v3455 = vld [vmem:[%s3099 + $0x588] sm:$0xff]
                  %3456 = vst [vmem:[%s3100 + $0xa88] sm:$0xff] %v3455
                  %v3457 = vld [vmem:[%s3099 + $0x590] sm:$0xff]
                  %3458 = vst [vmem:[%s3100 + $0xa90] sm:$0xff] %v3457
                  %v3459 = vld [vmem:[%s3099 + $0x598] sm:$0xff]
                  %3460 = vst [vmem:[%s3100 + $0xa98] sm:$0xff] %v3459
                  %v3461 = vld [vmem:[%s3099 + $0x5a0] sm:$0xff]
                  %3462 = vst [vmem:[%s3100 + $0xaa0] sm:$0xff] %v3461
                  %v3463 = vld [vmem:[%s3099 + $0x5a8] sm:$0xff]
                  %3464 = vst [vmem:[%s3100 + $0xaa8] sm:$0xff] %v3463
                  %v3465 = vld [vmem:[%s3099 + $0x5b0] sm:$0xff]
                  %3466 = vst [vmem:[%s3100 + $0xab0] sm:$0xff] %v3465
                  %v3467 = vld [vmem:[%s3099 + $0x5b8] sm:$0xff]
                  %3468 = vst [vmem:[%s3100 + $0xab8] sm:$0xff] %v3467
                  %v3469 = vld [vmem:[%s3099 + $0x5c0] sm:$0xff]
                  %3470 = vst [vmem:[%s3100 + $0xac0] sm:$0xff] %v3469
                  %v3471 = vld [vmem:[%s3099 + $0x5c8] sm:$0xff]
                  %3472 = vst [vmem:[%s3100 + $0xac8] sm:$0xff] %v3471
                  %v3473 = vld [vmem:[%s3099 + $0x5d0] sm:$0xff]
                  %3474 = vst [vmem:[%s3100 + $0xad0] sm:$0xff] %v3473
                  %v3475 = vld [vmem:[%s3099 + $0x5d8] sm:$0xff]
                  %3476 = vst [vmem:[%s3100 + $0xad8] sm:$0xff] %v3475
                  %v3477 = vld [vmem:[%s3099 + $0x5e0] sm:$0xff]
                  %3478 = vst [vmem:[%s3100 + $0xae0] sm:$0xff] %v3477
                  %v3479 = vld [vmem:[%s3099 + $0x5e8] sm:$0xff]
                  %3480 = vst [vmem:[%s3100 + $0xae8] sm:$0xff] %v3479
                  %v3481 = vld [vmem:[%s3099 + $0x5f0] sm:$0xff]
                  %3482 = vst [vmem:[%s3100 + $0xaf0] sm:$0xff] %v3481
                  %v3483 = vld [vmem:[%s3099 + $0x5f8] sm:$0xff]
                  %3484 = vst [vmem:[%s3100 + $0xaf8] sm:$0xff] %v3483
                  %v3485 = vld [vmem:[%s3099 + $0x600] sm:$0xff]
                  %3486 = vst [vmem:[%s3100 + $0xc00] sm:$0xff] %v3485
                  %v3487 = vld [vmem:[%s3099 + $0x608] sm:$0xff]
                  %3488 = vst [vmem:[%s3100 + $0xc08] sm:$0xff] %v3487
                  %v3489 = vld [vmem:[%s3099 + $0x610] sm:$0xff]
                  %3490 = vst [vmem:[%s3100 + $0xc10] sm:$0xff] %v3489
                  %v3491 = vld [vmem:[%s3099 + $0x618] sm:$0xff]
                  %3492 = vst [vmem:[%s3100 + $0xc18] sm:$0xff] %v3491
                  %v3493 = vld [vmem:[%s3099 + $0x620] sm:$0xff]
                  %3494 = vst [vmem:[%s3100 + $0xc20] sm:$0xff] %v3493
                  %v3495 = vld [vmem:[%s3099 + $0x628] sm:$0xff]
                  %3496 = vst [vmem:[%s3100 + $0xc28] sm:$0xff] %v3495
                  %v3497 = vld [vmem:[%s3099 + $0x630] sm:$0xff]
                  %3498 = vst [vmem:[%s3100 + $0xc30] sm:$0xff] %v3497
                  %v3499 = vld [vmem:[%s3099 + $0x638] sm:$0xff]
                  %3500 = vst [vmem:[%s3100 + $0xc38] sm:$0xff] %v3499
                  %v3501 = vld [vmem:[%s3099 + $0x640] sm:$0xff]
                  %3502 = vst [vmem:[%s3100 + $0xc40] sm:$0xff] %v3501
                  %v3503 = vld [vmem:[%s3099 + $0x648] sm:$0xff]
                  %3504 = vst [vmem:[%s3100 + $0xc48] sm:$0xff] %v3503
                  %v3505 = vld [vmem:[%s3099 + $0x650] sm:$0xff]
                  %3506 = vst [vmem:[%s3100 + $0xc50] sm:$0xff] %v3505
                  %v3507 = vld [vmem:[%s3099 + $0x658] sm:$0xff]
                  %3508 = vst [vmem:[%s3100 + $0xc58] sm:$0xff] %v3507
                  %v3509 = vld [vmem:[%s3099 + $0x660] sm:$0xff]
                  %3510 = vst [vmem:[%s3100 + $0xc60] sm:$0xff] %v3509
                  %v3511 = vld [vmem:[%s3099 + $0x668] sm:$0xff]
                  %3512 = vst [vmem:[%s3100 + $0xc68] sm:$0xff] %v3511
                  %v3513 = vld [vmem:[%s3099 + $0x670] sm:$0xff]
                  %3514 = vst [vmem:[%s3100 + $0xc70] sm:$0xff] %v3513
                  %v3515 = vld [vmem:[%s3099 + $0x678] sm:$0xff]
                  %3516 = vst [vmem:[%s3100 + $0xc78] sm:$0xff] %v3515
                  %v3517 = vld [vmem:[%s3099 + $0x680] sm:$0xff]
                  %3518 = vst [vmem:[%s3100 + $0xc80] sm:$0xff] %v3517
                  %v3519 = vld [vmem:[%s3099 + $0x688] sm:$0xff]
                  %3520 = vst [vmem:[%s3100 + $0xc88] sm:$0xff] %v3519
                  %v3521 = vld [vmem:[%s3099 + $0x690] sm:$0xff]
                  %3522 = vst [vmem:[%s3100 + $0xc90] sm:$0xff] %v3521
                  %v3523 = vld [vmem:[%s3099 + $0x698] sm:$0xff]
                  %3524 = vst [vmem:[%s3100 + $0xc98] sm:$0xff] %v3523
                  %v3525 = vld [vmem:[%s3099 + $0x6a0] sm:$0xff]
                  %3526 = vst [vmem:[%s3100 + $0xca0] sm:$0xff] %v3525
                  %v3527 = vld [vmem:[%s3099 + $0x6a8] sm:$0xff]
                  %3528 = vst [vmem:[%s3100 + $0xca8] sm:$0xff] %v3527
                  %v3529 = vld [vmem:[%s3099 + $0x6b0] sm:$0xff]
                  %3530 = vst [vmem:[%s3100 + $0xcb0] sm:$0xff] %v3529
                  %v3531 = vld [vmem:[%s3099 + $0x6b8] sm:$0xff]
                  %3532 = vst [vmem:[%s3100 + $0xcb8] sm:$0xff] %v3531
                  %v3533 = vld [vmem:[%s3099 + $0x6c0] sm:$0xff]
                  %3534 = vst [vmem:[%s3100 + $0xcc0] sm:$0xff] %v3533
                  %v3535 = vld [vmem:[%s3099 + $0x6c8] sm:$0xff]
                  %3536 = vst [vmem:[%s3100 + $0xcc8] sm:$0xff] %v3535
                  %v3537 = vld [vmem:[%s3099 + $0x6d0] sm:$0xff]
                  %3538 = vst [vmem:[%s3100 + $0xcd0] sm:$0xff] %v3537
                  %v3539 = vld [vmem:[%s3099 + $0x6d8] sm:$0xff]
                  %3540 = vst [vmem:[%s3100 + $0xcd8] sm:$0xff] %v3539
                  %v3541 = vld [vmem:[%s3099 + $0x6e0] sm:$0xff]
                  %3542 = vst [vmem:[%s3100 + $0xce0] sm:$0xff] %v3541
                  %v3543 = vld [vmem:[%s3099 + $0x6e8] sm:$0xff]
                  %3544 = vst [vmem:[%s3100 + $0xce8] sm:$0xff] %v3543
                  %v3545 = vld [vmem:[%s3099 + $0x6f0] sm:$0xff]
                  %3546 = vst [vmem:[%s3100 + $0xcf0] sm:$0xff] %v3545
                  %v3547 = vld [vmem:[%s3099 + $0x6f8] sm:$0xff]
                  %3548 = vst [vmem:[%s3100 + $0xcf8] sm:$0xff] %v3547
                  %v3549 = vld [vmem:[%s3099 + $0x700] sm:$0xff]
                  %3550 = vst [vmem:[%s3100 + $0xe00] sm:$0xff] %v3549
                  %v3551 = vld [vmem:[%s3099 + $0x708] sm:$0xff]
                  %3552 = vst [vmem:[%s3100 + $0xe08] sm:$0xff] %v3551
                  %v3553 = vld [vmem:[%s3099 + $0x710] sm:$0xff]
                  %3554 = vst [vmem:[%s3100 + $0xe10] sm:$0xff] %v3553
                  %v3555 = vld [vmem:[%s3099 + $0x718] sm:$0xff]
                  %3556 = vst [vmem:[%s3100 + $0xe18] sm:$0xff] %v3555
                  %v3557 = vld [vmem:[%s3099 + $0x720] sm:$0xff]
                  %3558 = vst [vmem:[%s3100 + $0xe20] sm:$0xff] %v3557
                  %v3559 = vld [vmem:[%s3099 + $0x728] sm:$0xff]
                  %3560 = vst [vmem:[%s3100 + $0xe28] sm:$0xff] %v3559
                  %v3561 = vld [vmem:[%s3099 + $0x730] sm:$0xff]
                  %3562 = vst [vmem:[%s3100 + $0xe30] sm:$0xff] %v3561
                  %v3563 = vld [vmem:[%s3099 + $0x738] sm:$0xff]
                  %3564 = vst [vmem:[%s3100 + $0xe38] sm:$0xff] %v3563
                  %v3565 = vld [vmem:[%s3099 + $0x740] sm:$0xff]
                  %3566 = vst [vmem:[%s3100 + $0xe40] sm:$0xff] %v3565
                  %v3567 = vld [vmem:[%s3099 + $0x748] sm:$0xff]
                  %3568 = vst [vmem:[%s3100 + $0xe48] sm:$0xff] %v3567
                  %v3569 = vld [vmem:[%s3099 + $0x750] sm:$0xff]
                  %3570 = vst [vmem:[%s3100 + $0xe50] sm:$0xff] %v3569
                  %v3571 = vld [vmem:[%s3099 + $0x758] sm:$0xff]
                  %3572 = vst [vmem:[%s3100 + $0xe58] sm:$0xff] %v3571
                  %v3573 = vld [vmem:[%s3099 + $0x760] sm:$0xff]
                  %3574 = vst [vmem:[%s3100 + $0xe60] sm:$0xff] %v3573
                  %v3575 = vld [vmem:[%s3099 + $0x768] sm:$0xff]
                  %3576 = vst [vmem:[%s3100 + $0xe68] sm:$0xff] %v3575
                  %v3577 = vld [vmem:[%s3099 + $0x770] sm:$0xff]
                  %3578 = vst [vmem:[%s3100 + $0xe70] sm:$0xff] %v3577
                  %v3579 = vld [vmem:[%s3099 + $0x778] sm:$0xff]
                  %3580 = vst [vmem:[%s3100 + $0xe78] sm:$0xff] %v3579
                  %v3581 = vld [vmem:[%s3099 + $0x780] sm:$0xff]
                  %3582 = vst [vmem:[%s3100 + $0xe80] sm:$0xff] %v3581
                  %v3583 = vld [vmem:[%s3099 + $0x788] sm:$0xff]
                  %3584 = vst [vmem:[%s3100 + $0xe88] sm:$0xff] %v3583
                  %v3585 = vld [vmem:[%s3099 + $0x790] sm:$0xff]
                  %3586 = vst [vmem:[%s3100 + $0xe90] sm:$0xff] %v3585
                  %v3587 = vld [vmem:[%s3099 + $0x798] sm:$0xff]
                  %3588 = vst [vmem:[%s3100 + $0xe98] sm:$0xff] %v3587
                  %v3589 = vld [vmem:[%s3099 + $0x7a0] sm:$0xff]
                  %3590 = vst [vmem:[%s3100 + $0xea0] sm:$0xff] %v3589
                  %v3591 = vld [vmem:[%s3099 + $0x7a8] sm:$0xff]
                  %3592 = vst [vmem:[%s3100 + $0xea8] sm:$0xff] %v3591
                  %v3593 = vld [vmem:[%s3099 + $0x7b0] sm:$0xff]
                  %3594 = vst [vmem:[%s3100 + $0xeb0] sm:$0xff] %v3593
                  %v3595 = vld [vmem:[%s3099 + $0x7b8] sm:$0xff]
                  %3596 = vst [vmem:[%s3100 + $0xeb8] sm:$0xff] %v3595
                  %v3597 = vld [vmem:[%s3099 + $0x7c0] sm:$0xff]
                  %3598 = vst [vmem:[%s3100 + $0xec0] sm:$0xff] %v3597
                  %v3599 = vld [vmem:[%s3099 + $0x7c8] sm:$0xff]
                  %3600 = vst [vmem:[%s3100 + $0xec8] sm:$0xff] %v3599
                  %v3601 = vld [vmem:[%s3099 + $0x7d0] sm:$0xff]
                  %3602 = vst [vmem:[%s3100 + $0xed0] sm:$0xff] %v3601
                  %v3603 = vld [vmem:[%s3099 + $0x7d8] sm:$0xff]
                  %3604 = vst [vmem:[%s3100 + $0xed8] sm:$0xff] %v3603
                  %v3605 = vld [vmem:[%s3099 + $0x7e0] sm:$0xff]
                  %3606 = vst [vmem:[%s3100 + $0xee0] sm:$0xff] %v3605
                  %v3607 = vld [vmem:[%s3099 + $0x7e8] sm:$0xff]
                  %3608 = vst [vmem:[%s3100 + $0xee8] sm:$0xff] %v3607
                  %v3609 = vld [vmem:[%s3099 + $0x7f0] sm:$0xff]
                  %3610 = vst [vmem:[%s3100 + $0xef0] sm:$0xff] %v3609
                  %v3611 = vld [vmem:[%s3099 + $0x7f8] sm:$0xff]
                  %3612 = vst [vmem:[%s3100 + $0xef8] sm:$0xff] %v3611
                $region64: #{lm_rnn_forward.3} parent=58 // loop_footer
                  %s3098 = sadd.s32 1, %s3094
                $region65: #{lm_rnn_forward.3} parent=58 // loop_footer_branch
                  %3093 = sbr.rel target = $region61
                $region66: #{lm_rnn_forward.3} parent=58 // loop_exit
                  _
              $region59: #{lm_rnn_forward.3} parent=43 // pred_fallthru
                _
              // Predicated region
              $region67: #{lm_rnn_forward.3} parent=43 // pred_check
                _
              $region68: #{lm_rnn_forward.3} parent=43 // pred_check_branch
                %3614 = sbr.rel target = $region70
              $region69: #{lm_rnn_forward.3} parent=43 // pred_region
                _
              $region70: #{lm_rnn_forward.3} parent=43 // pred_fallthru
                _
            $region44: #{lm_rnn_forward.3} parent=39 // pred_fallthru
              _
            // Predicated region
            $region45: #{lm_rnn_forward.3} parent=39 // pred_check
              _
            $region46: #{lm_rnn_forward.3} parent=39 // pred_check_branch
              %2569 = sbr.rel target = $region48
            $region47: #{lm_rnn_forward.3} parent=39 // pred_region
              loop: start=0, step=1, limit=1
              $region49: #{lm_rnn_forward.3} parent=47 // loop_pre_header
                _
              $region50: #{lm_rnn_forward.3} parent=47 // loop_header
                %s2572 = sphi 0, %s2576
                %p2573 = scmp.ge.s32.totalorder %s2572, 1
                %s2577 = sphi %s2556, %s2556
                %s2578 = sphi %s2563, %s2563
              $region51: #{lm_rnn_forward.3} parent=47 // loop_header_branch
                %2575 = sbr.rel (%p2573) target = $region55
              $region52: #{lm_rnn_forward.3} parent=47 // loop_body
                %v2579 = vld [vmem:[%s2577] sm:$0xff]
                %2580 = vst [vmem:[%s2578] sm:$0xff] %v2579
                %v2581 = vld [vmem:[%s2577 + $0x8] sm:$0xff]
                %2582 = vst [vmem:[%s2578 + $0x8] sm:$0xff] %v2581
                %v2583 = vld [vmem:[%s2577 + $0x10] sm:$0xff]
                %2584 = vst [vmem:[%s2578 + $0x10] sm:$0xff] %v2583
                %v2585 = vld [vmem:[%s2577 + $0x18] sm:$0xff]
                %2586 = vst [vmem:[%s2578 + $0x18] sm:$0xff] %v2585
                %v2587 = vld [vmem:[%s2577 + $0x20] sm:$0xff]
                %2588 = vst [vmem:[%s2578 + $0x20] sm:$0xff] %v2587
                %v2589 = vld [vmem:[%s2577 + $0x28] sm:$0xff]
                %2590 = vst [vmem:[%s2578 + $0x28] sm:$0xff] %v2589
                %v2591 = vld [vmem:[%s2577 + $0x30] sm:$0xff]
                %2592 = vst [vmem:[%s2578 + $0x30] sm:$0xff] %v2591
                %v2593 = vld [vmem:[%s2577 + $0x38] sm:$0xff]
                %2594 = vst [vmem:[%s2578 + $0x38] sm:$0xff] %v2593
                %v2595 = vld [vmem:[%s2577 + $0x40] sm:$0xff]
                %2596 = vst [vmem:[%s2578 + $0x40] sm:$0xff] %v2595
                %v2597 = vld [vmem:[%s2577 + $0x48] sm:$0xff]
                %2598 = vst [vmem:[%s2578 + $0x48] sm:$0xff] %v2597
                %v2599 = vld [vmem:[%s2577 + $0x50] sm:$0xff]
                %2600 = vst [vmem:[%s2578 + $0x50] sm:$0xff] %v2599
                %v2601 = vld [vmem:[%s2577 + $0x58] sm:$0xff]
                %2602 = vst [vmem:[%s2578 + $0x58] sm:$0xff] %v2601
                %v2603 = vld [vmem:[%s2577 + $0x60] sm:$0xff]
                %2604 = vst [vmem:[%s2578 + $0x60] sm:$0xff] %v2603
                %v2605 = vld [vmem:[%s2577 + $0x68] sm:$0xff]
                %2606 = vst [vmem:[%s2578 + $0x68] sm:$0xff] %v2605
                %v2607 = vld [vmem:[%s2577 + $0x70] sm:$0xff]
                %2608 = vst [vmem:[%s2578 + $0x70] sm:$0xff] %v2607
                %v2609 = vld [vmem:[%s2577 + $0x78] sm:$0xff]
                %2610 = vst [vmem:[%s2578 + $0x78] sm:$0xff] %v2609
                %v2611 = vld [vmem:[%s2577 + $0x80] sm:$0xff]
                %2612 = vst [vmem:[%s2578 + $0x80] sm:$0xff] %v2611
                %v2613 = vld [vmem:[%s2577 + $0x88] sm:$0xff]
                %2614 = vst [vmem:[%s2578 + $0x88] sm:$0xff] %v2613
                %v2615 = vld [vmem:[%s2577 + $0x90] sm:$0xff]
                %2616 = vst [vmem:[%s2578 + $0x90] sm:$0xff] %v2615
                %v2617 = vld [vmem:[%s2577 + $0x98] sm:$0xff]
                %2618 = vst [vmem:[%s2578 + $0x98] sm:$0xff] %v2617
                %v2619 = vld [vmem:[%s2577 + $0xa0] sm:$0xff]
                %2620 = vst [vmem:[%s2578 + $0xa0] sm:$0xff] %v2619
                %v2621 = vld [vmem:[%s2577 + $0xa8] sm:$0xff]
                %2622 = vst [vmem:[%s2578 + $0xa8] sm:$0xff] %v2621
                %v2623 = vld [vmem:[%s2577 + $0xb0] sm:$0xff]
                %2624 = vst [vmem:[%s2578 + $0xb0] sm:$0xff] %v2623
                %v2625 = vld [vmem:[%s2577 + $0xb8] sm:$0xff]
                %2626 = vst [vmem:[%s2578 + $0xb8] sm:$0xff] %v2625
                %v2627 = vld [vmem:[%s2577 + $0xc0] sm:$0xff]
                %2628 = vst [vmem:[%s2578 + $0xc0] sm:$0xff] %v2627
                %v2629 = vld [vmem:[%s2577 + $0xc8] sm:$0xff]
                %2630 = vst [vmem:[%s2578 + $0xc8] sm:$0xff] %v2629
                %v2631 = vld [vmem:[%s2577 + $0xd0] sm:$0xff]
                %2632 = vst [vmem:[%s2578 + $0xd0] sm:$0xff] %v2631
                %v2633 = vld [vmem:[%s2577 + $0xd8] sm:$0xff]
                %2634 = vst [vmem:[%s2578 + $0xd8] sm:$0xff] %v2633
                %v2635 = vld [vmem:[%s2577 + $0xe0] sm:$0xff]
                %2636 = vst [vmem:[%s2578 + $0xe0] sm:$0xff] %v2635
                %v2637 = vld [vmem:[%s2577 + $0xe8] sm:$0xff]
                %2638 = vst [vmem:[%s2578 + $0xe8] sm:$0xff] %v2637
                %v2639 = vld [vmem:[%s2577 + $0xf0] sm:$0xff]
                %2640 = vst [vmem:[%s2578 + $0xf0] sm:$0xff] %v2639
                %v2641 = vld [vmem:[%s2577 + $0xf8] sm:$0xff]
                %2642 = vst [vmem:[%s2578 + $0xf8] sm:$0xff] %v2641
                %v2643 = vld [vmem:[%s2577 + $0x100] sm:$0xff]
                %2644 = vst [vmem:[%s2578 + $0x200] sm:$0xff] %v2643
                %v2645 = vld [vmem:[%s2577 + $0x108] sm:$0xff]
                %2646 = vst [vmem:[%s2578 + $0x208] sm:$0xff] %v2645
                %v2647 = vld [vmem:[%s2577 + $0x110] sm:$0xff]
                %2648 = vst [vmem:[%s2578 + $0x210] sm:$0xff] %v2647
                %v2649 = vld [vmem:[%s2577 + $0x118] sm:$0xff]
                %2650 = vst [vmem:[%s2578 + $0x218] sm:$0xff] %v2649
                %v2651 = vld [vmem:[%s2577 + $0x120] sm:$0xff]
                %2652 = vst [vmem:[%s2578 + $0x220] sm:$0xff] %v2651
                %v2653 = vld [vmem:[%s2577 + $0x128] sm:$0xff]
                %2654 = vst [vmem:[%s2578 + $0x228] sm:$0xff] %v2653
                %v2655 = vld [vmem:[%s2577 + $0x130] sm:$0xff]
                %2656 = vst [vmem:[%s2578 + $0x230] sm:$0xff] %v2655
                %v2657 = vld [vmem:[%s2577 + $0x138] sm:$0xff]
                %2658 = vst [vmem:[%s2578 + $0x238] sm:$0xff] %v2657
                %v2659 = vld [vmem:[%s2577 + $0x140] sm:$0xff]
                %2660 = vst [vmem:[%s2578 + $0x240] sm:$0xff] %v2659
                %v2661 = vld [vmem:[%s2577 + $0x148] sm:$0xff]
                %2662 = vst [vmem:[%s2578 + $0x248] sm:$0xff] %v2661
                %v2663 = vld [vmem:[%s2577 + $0x150] sm:$0xff]
                %2664 = vst [vmem:[%s2578 + $0x250] sm:$0xff] %v2663
                %v2665 = vld [vmem:[%s2577 + $0x158] sm:$0xff]
                %2666 = vst [vmem:[%s2578 + $0x258] sm:$0xff] %v2665
                %v2667 = vld [vmem:[%s2577 + $0x160] sm:$0xff]
                %2668 = vst [vmem:[%s2578 + $0x260] sm:$0xff] %v2667
                %v2669 = vld [vmem:[%s2577 + $0x168] sm:$0xff]
                %2670 = vst [vmem:[%s2578 + $0x268] sm:$0xff] %v2669
                %v2671 = vld [vmem:[%s2577 + $0x170] sm:$0xff]
                %2672 = vst [vmem:[%s2578 + $0x270] sm:$0xff] %v2671
                %v2673 = vld [vmem:[%s2577 + $0x178] sm:$0xff]
                %2674 = vst [vmem:[%s2578 + $0x278] sm:$0xff] %v2673
                %v2675 = vld [vmem:[%s2577 + $0x180] sm:$0xff]
                %2676 = vst [vmem:[%s2578 + $0x280] sm:$0xff] %v2675
                %v2677 = vld [vmem:[%s2577 + $0x188] sm:$0xff]
                %2678 = vst [vmem:[%s2578 + $0x288] sm:$0xff] %v2677
                %v2679 = vld [vmem:[%s2577 + $0x190] sm:$0xff]
                %2680 = vst [vmem:[%s2578 + $0x290] sm:$0xff] %v2679
                %v2681 = vld [vmem:[%s2577 + $0x198] sm:$0xff]
                %2682 = vst [vmem:[%s2578 + $0x298] sm:$0xff] %v2681
                %v2683 = vld [vmem:[%s2577 + $0x1a0] sm:$0xff]
                %2684 = vst [vmem:[%s2578 + $0x2a0] sm:$0xff] %v2683
                %v2685 = vld [vmem:[%s2577 + $0x1a8] sm:$0xff]
                %2686 = vst [vmem:[%s2578 + $0x2a8] sm:$0xff] %v2685
                %v2687 = vld [vmem:[%s2577 + $0x1b0] sm:$0xff]
                %2688 = vst [vmem:[%s2578 + $0x2b0] sm:$0xff] %v2687
                %v2689 = vld [vmem:[%s2577 + $0x1b8] sm:$0xff]
                %2690 = vst [vmem:[%s2578 + $0x2b8] sm:$0xff] %v2689
                %v2691 = vld [vmem:[%s2577 + $0x1c0] sm:$0xff]
                %2692 = vst [vmem:[%s2578 + $0x2c0] sm:$0xff] %v2691
                %v2693 = vld [vmem:[%s2577 + $0x1c8] sm:$0xff]
                %2694 = vst [vmem:[%s2578 + $0x2c8] sm:$0xff] %v2693
                %v2695 = vld [vmem:[%s2577 + $0x1d0] sm:$0xff]
                %2696 = vst [vmem:[%s2578 + $0x2d0] sm:$0xff] %v2695
                %v2697 = vld [vmem:[%s2577 + $0x1d8] sm:$0xff]
                %2698 = vst [vmem:[%s2578 + $0x2d8] sm:$0xff] %v2697
                %v2699 = vld [vmem:[%s2577 + $0x1e0] sm:$0xff]
                %2700 = vst [vmem:[%s2578 + $0x2e0] sm:$0xff] %v2699
                %v2701 = vld [vmem:[%s2577 + $0x1e8] sm:$0xff]
                %2702 = vst [vmem:[%s2578 + $0x2e8] sm:$0xff] %v2701
                %v2703 = vld [vmem:[%s2577 + $0x1f0] sm:$0xff]
                %2704 = vst [vmem:[%s2578 + $0x2f0] sm:$0xff] %v2703
                %v2705 = vld [vmem:[%s2577 + $0x1f8] sm:$0xff]
                %2706 = vst [vmem:[%s2578 + $0x2f8] sm:$0xff] %v2705
                %v2707 = vld [vmem:[%s2577 + $0x200] sm:$0xff]
                %2708 = vst [vmem:[%s2578 + $0x400] sm:$0xff] %v2707
                %v2709 = vld [vmem:[%s2577 + $0x208] sm:$0xff]
                %2710 = vst [vmem:[%s2578 + $0x408] sm:$0xff] %v2709
                %v2711 = vld [vmem:[%s2577 + $0x210] sm:$0xff]
                %2712 = vst [vmem:[%s2578 + $0x410] sm:$0xff] %v2711
                %v2713 = vld [vmem:[%s2577 + $0x218] sm:$0xff]
                %2714 = vst [vmem:[%s2578 + $0x418] sm:$0xff] %v2713
                %v2715 = vld [vmem:[%s2577 + $0x220] sm:$0xff]
                %2716 = vst [vmem:[%s2578 + $0x420] sm:$0xff] %v2715
                %v2717 = vld [vmem:[%s2577 + $0x228] sm:$0xff]
                %2718 = vst [vmem:[%s2578 + $0x428] sm:$0xff] %v2717
                %v2719 = vld [vmem:[%s2577 + $0x230] sm:$0xff]
                %2720 = vst [vmem:[%s2578 + $0x430] sm:$0xff] %v2719
                %v2721 = vld [vmem:[%s2577 + $0x238] sm:$0xff]
                %2722 = vst [vmem:[%s2578 + $0x438] sm:$0xff] %v2721
                %v2723 = vld [vmem:[%s2577 + $0x240] sm:$0xff]
                %2724 = vst [vmem:[%s2578 + $0x440] sm:$0xff] %v2723
                %v2725 = vld [vmem:[%s2577 + $0x248] sm:$0xff]
                %2726 = vst [vmem:[%s2578 + $0x448] sm:$0xff] %v2725
                %v2727 = vld [vmem:[%s2577 + $0x250] sm:$0xff]
                %2728 = vst [vmem:[%s2578 + $0x450] sm:$0xff] %v2727
                %v2729 = vld [vmem:[%s2577 + $0x258] sm:$0xff]
                %2730 = vst [vmem:[%s2578 + $0x458] sm:$0xff] %v2729
                %v2731 = vld [vmem:[%s2577 + $0x260] sm:$0xff]
                %2732 = vst [vmem:[%s2578 + $0x460] sm:$0xff] %v2731
                %v2733 = vld [vmem:[%s2577 + $0x268] sm:$0xff]
                %2734 = vst [vmem:[%s2578 + $0x468] sm:$0xff] %v2733
                %v2735 = vld [vmem:[%s2577 + $0x270] sm:$0xff]
                %2736 = vst [vmem:[%s2578 + $0x470] sm:$0xff] %v2735
                %v2737 = vld [vmem:[%s2577 + $0x278] sm:$0xff]
                %2738 = vst [vmem:[%s2578 + $0x478] sm:$0xff] %v2737
                %v2739 = vld [vmem:[%s2577 + $0x280] sm:$0xff]
                %2740 = vst [vmem:[%s2578 + $0x480] sm:$0xff] %v2739
                %v2741 = vld [vmem:[%s2577 + $0x288] sm:$0xff]
                %2742 = vst [vmem:[%s2578 + $0x488] sm:$0xff] %v2741
                %v2743 = vld [vmem:[%s2577 + $0x290] sm:$0xff]
                %2744 = vst [vmem:[%s2578 + $0x490] sm:$0xff] %v2743
                %v2745 = vld [vmem:[%s2577 + $0x298] sm:$0xff]
                %2746 = vst [vmem:[%s2578 + $0x498] sm:$0xff] %v2745
                %v2747 = vld [vmem:[%s2577 + $0x2a0] sm:$0xff]
                %2748 = vst [vmem:[%s2578 + $0x4a0] sm:$0xff] %v2747
                %v2749 = vld [vmem:[%s2577 + $0x2a8] sm:$0xff]
                %2750 = vst [vmem:[%s2578 + $0x4a8] sm:$0xff] %v2749
                %v2751 = vld [vmem:[%s2577 + $0x2b0] sm:$0xff]
                %2752 = vst [vmem:[%s2578 + $0x4b0] sm:$0xff] %v2751
                %v2753 = vld [vmem:[%s2577 + $0x2b8] sm:$0xff]
                %2754 = vst [vmem:[%s2578 + $0x4b8] sm:$0xff] %v2753
                %v2755 = vld [vmem:[%s2577 + $0x2c0] sm:$0xff]
                %2756 = vst [vmem:[%s2578 + $0x4c0] sm:$0xff] %v2755
                %v2757 = vld [vmem:[%s2577 + $0x2c8] sm:$0xff]
                %2758 = vst [vmem:[%s2578 + $0x4c8] sm:$0xff] %v2757
                %v2759 = vld [vmem:[%s2577 + $0x2d0] sm:$0xff]
                %2760 = vst [vmem:[%s2578 + $0x4d0] sm:$0xff] %v2759
                %v2761 = vld [vmem:[%s2577 + $0x2d8] sm:$0xff]
                %2762 = vst [vmem:[%s2578 + $0x4d8] sm:$0xff] %v2761
                %v2763 = vld [vmem:[%s2577 + $0x2e0] sm:$0xff]
                %2764 = vst [vmem:[%s2578 + $0x4e0] sm:$0xff] %v2763
                %v2765 = vld [vmem:[%s2577 + $0x2e8] sm:$0xff]
                %2766 = vst [vmem:[%s2578 + $0x4e8] sm:$0xff] %v2765
                %v2767 = vld [vmem:[%s2577 + $0x2f0] sm:$0xff]
                %2768 = vst [vmem:[%s2578 + $0x4f0] sm:$0xff] %v2767
                %v2769 = vld [vmem:[%s2577 + $0x2f8] sm:$0xff]
                %2770 = vst [vmem:[%s2578 + $0x4f8] sm:$0xff] %v2769
                %v2771 = vld [vmem:[%s2577 + $0x300] sm:$0xff]
                %2772 = vst [vmem:[%s2578 + $0x600] sm:$0xff] %v2771
                %v2773 = vld [vmem:[%s2577 + $0x308] sm:$0xff]
                %2774 = vst [vmem:[%s2578 + $0x608] sm:$0xff] %v2773
                %v2775 = vld [vmem:[%s2577 + $0x310] sm:$0xff]
                %2776 = vst [vmem:[%s2578 + $0x610] sm:$0xff] %v2775
                %v2777 = vld [vmem:[%s2577 + $0x318] sm:$0xff]
                %2778 = vst [vmem:[%s2578 + $0x618] sm:$0xff] %v2777
                %v2779 = vld [vmem:[%s2577 + $0x320] sm:$0xff]
                %2780 = vst [vmem:[%s2578 + $0x620] sm:$0xff] %v2779
                %v2781 = vld [vmem:[%s2577 + $0x328] sm:$0xff]
                %2782 = vst [vmem:[%s2578 + $0x628] sm:$0xff] %v2781
                %v2783 = vld [vmem:[%s2577 + $0x330] sm:$0xff]
                %2784 = vst [vmem:[%s2578 + $0x630] sm:$0xff] %v2783
                %v2785 = vld [vmem:[%s2577 + $0x338] sm:$0xff]
                %2786 = vst [vmem:[%s2578 + $0x638] sm:$0xff] %v2785
                %v2787 = vld [vmem:[%s2577 + $0x340] sm:$0xff]
                %2788 = vst [vmem:[%s2578 + $0x640] sm:$0xff] %v2787
                %v2789 = vld [vmem:[%s2577 + $0x348] sm:$0xff]
                %2790 = vst [vmem:[%s2578 + $0x648] sm:$0xff] %v2789
                %v2791 = vld [vmem:[%s2577 + $0x350] sm:$0xff]
                %2792 = vst [vmem:[%s2578 + $0x650] sm:$0xff] %v2791
                %v2793 = vld [vmem:[%s2577 + $0x358] sm:$0xff]
                %2794 = vst [vmem:[%s2578 + $0x658] sm:$0xff] %v2793
                %v2795 = vld [vmem:[%s2577 + $0x360] sm:$0xff]
                %2796 = vst [vmem:[%s2578 + $0x660] sm:$0xff] %v2795
                %v2797 = vld [vmem:[%s2577 + $0x368] sm:$0xff]
                %2798 = vst [vmem:[%s2578 + $0x668] sm:$0xff] %v2797
                %v2799 = vld [vmem:[%s2577 + $0x370] sm:$0xff]
                %2800 = vst [vmem:[%s2578 + $0x670] sm:$0xff] %v2799
                %v2801 = vld [vmem:[%s2577 + $0x378] sm:$0xff]
                %2802 = vst [vmem:[%s2578 + $0x678] sm:$0xff] %v2801
                %v2803 = vld [vmem:[%s2577 + $0x380] sm:$0xff]
                %2804 = vst [vmem:[%s2578 + $0x680] sm:$0xff] %v2803
                %v2805 = vld [vmem:[%s2577 + $0x388] sm:$0xff]
                %2806 = vst [vmem:[%s2578 + $0x688] sm:$0xff] %v2805
                %v2807 = vld [vmem:[%s2577 + $0x390] sm:$0xff]
                %2808 = vst [vmem:[%s2578 + $0x690] sm:$0xff] %v2807
                %v2809 = vld [vmem:[%s2577 + $0x398] sm:$0xff]
                %2810 = vst [vmem:[%s2578 + $0x698] sm:$0xff] %v2809
                %v2811 = vld [vmem:[%s2577 + $0x3a0] sm:$0xff]
                %2812 = vst [vmem:[%s2578 + $0x6a0] sm:$0xff] %v2811
                %v2813 = vld [vmem:[%s2577 + $0x3a8] sm:$0xff]
                %2814 = vst [vmem:[%s2578 + $0x6a8] sm:$0xff] %v2813
                %v2815 = vld [vmem:[%s2577 + $0x3b0] sm:$0xff]
                %2816 = vst [vmem:[%s2578 + $0x6b0] sm:$0xff] %v2815
                %v2817 = vld [vmem:[%s2577 + $0x3b8] sm:$0xff]
                %2818 = vst [vmem:[%s2578 + $0x6b8] sm:$0xff] %v2817
                %v2819 = vld [vmem:[%s2577 + $0x3c0] sm:$0xff]
                %2820 = vst [vmem:[%s2578 + $0x6c0] sm:$0xff] %v2819
                %v2821 = vld [vmem:[%s2577 + $0x3c8] sm:$0xff]
                %2822 = vst [vmem:[%s2578 + $0x6c8] sm:$0xff] %v2821
                %v2823 = vld [vmem:[%s2577 + $0x3d0] sm:$0xff]
                %2824 = vst [vmem:[%s2578 + $0x6d0] sm:$0xff] %v2823
                %v2825 = vld [vmem:[%s2577 + $0x3d8] sm:$0xff]
                %2826 = vst [vmem:[%s2578 + $0x6d8] sm:$0xff] %v2825
                %v2827 = vld [vmem:[%s2577 + $0x3e0] sm:$0xff]
                %2828 = vst [vmem:[%s2578 + $0x6e0] sm:$0xff] %v2827
                %v2829 = vld [vmem:[%s2577 + $0x3e8] sm:$0xff]
                %2830 = vst [vmem:[%s2578 + $0x6e8] sm:$0xff] %v2829
                %v2831 = vld [vmem:[%s2577 + $0x3f0] sm:$0xff]
                %2832 = vst [vmem:[%s2578 + $0x6f0] sm:$0xff] %v2831
                %v2833 = vld [vmem:[%s2577 + $0x3f8] sm:$0xff]
                %2834 = vst [vmem:[%s2578 + $0x6f8] sm:$0xff] %v2833
                %v2835 = vld [vmem:[%s2577 + $0x400] sm:$0xff]
                %2836 = vst [vmem:[%s2578 + $0x800] sm:$0xff] %v2835
                %v2837 = vld [vmem:[%s2577 + $0x408] sm:$0xff]
                %2838 = vst [vmem:[%s2578 + $0x808] sm:$0xff] %v2837
                %v2839 = vld [vmem:[%s2577 + $0x410] sm:$0xff]
                %2840 = vst [vmem:[%s2578 + $0x810] sm:$0xff] %v2839
                %v2841 = vld [vmem:[%s2577 + $0x418] sm:$0xff]
                %2842 = vst [vmem:[%s2578 + $0x818] sm:$0xff] %v2841
                %v2843 = vld [vmem:[%s2577 + $0x420] sm:$0xff]
                %2844 = vst [vmem:[%s2578 + $0x820] sm:$0xff] %v2843
                %v2845 = vld [vmem:[%s2577 + $0x428] sm:$0xff]
                %2846 = vst [vmem:[%s2578 + $0x828] sm:$0xff] %v2845
                %v2847 = vld [vmem:[%s2577 + $0x430] sm:$0xff]
                %2848 = vst [vmem:[%s2578 + $0x830] sm:$0xff] %v2847
                %v2849 = vld [vmem:[%s2577 + $0x438] sm:$0xff]
                %2850 = vst [vmem:[%s2578 + $0x838] sm:$0xff] %v2849
                %v2851 = vld [vmem:[%s2577 + $0x440] sm:$0xff]
                %2852 = vst [vmem:[%s2578 + $0x840] sm:$0xff] %v2851
                %v2853 = vld [vmem:[%s2577 + $0x448] sm:$0xff]
                %2854 = vst [vmem:[%s2578 + $0x848] sm:$0xff] %v2853
                %v2855 = vld [vmem:[%s2577 + $0x450] sm:$0xff]
                %2856 = vst [vmem:[%s2578 + $0x850] sm:$0xff] %v2855
                %v2857 = vld [vmem:[%s2577 + $0x458] sm:$0xff]
                %2858 = vst [vmem:[%s2578 + $0x858] sm:$0xff] %v2857
                %v2859 = vld [vmem:[%s2577 + $0x460] sm:$0xff]
                %2860 = vst [vmem:[%s2578 + $0x860] sm:$0xff] %v2859
                %v2861 = vld [vmem:[%s2577 + $0x468] sm:$0xff]
                %2862 = vst [vmem:[%s2578 + $0x868] sm:$0xff] %v2861
                %v2863 = vld [vmem:[%s2577 + $0x470] sm:$0xff]
                %2864 = vst [vmem:[%s2578 + $0x870] sm:$0xff] %v2863
                %v2865 = vld [vmem:[%s2577 + $0x478] sm:$0xff]
                %2866 = vst [vmem:[%s2578 + $0x878] sm:$0xff] %v2865
                %v2867 = vld [vmem:[%s2577 + $0x480] sm:$0xff]
                %2868 = vst [vmem:[%s2578 + $0x880] sm:$0xff] %v2867
                %v2869 = vld [vmem:[%s2577 + $0x488] sm:$0xff]
                %2870 = vst [vmem:[%s2578 + $0x888] sm:$0xff] %v2869
                %v2871 = vld [vmem:[%s2577 + $0x490] sm:$0xff]
                %2872 = vst [vmem:[%s2578 + $0x890] sm:$0xff] %v2871
                %v2873 = vld [vmem:[%s2577 + $0x498] sm:$0xff]
                %2874 = vst [vmem:[%s2578 + $0x898] sm:$0xff] %v2873
                %v2875 = vld [vmem:[%s2577 + $0x4a0] sm:$0xff]
                %2876 = vst [vmem:[%s2578 + $0x8a0] sm:$0xff] %v2875
                %v2877 = vld [vmem:[%s2577 + $0x4a8] sm:$0xff]
                %2878 = vst [vmem:[%s2578 + $0x8a8] sm:$0xff] %v2877
                %v2879 = vld [vmem:[%s2577 + $0x4b0] sm:$0xff]
                %2880 = vst [vmem:[%s2578 + $0x8b0] sm:$0xff] %v2879
                %v2881 = vld [vmem:[%s2577 + $0x4b8] sm:$0xff]
                %2882 = vst [vmem:[%s2578 + $0x8b8] sm:$0xff] %v2881
                %v2883 = vld [vmem:[%s2577 + $0x4c0] sm:$0xff]
                %2884 = vst [vmem:[%s2578 + $0x8c0] sm:$0xff] %v2883
                %v2885 = vld [vmem:[%s2577 + $0x4c8] sm:$0xff]
                %2886 = vst [vmem:[%s2578 + $0x8c8] sm:$0xff] %v2885
                %v2887 = vld [vmem:[%s2577 + $0x4d0] sm:$0xff]
                %2888 = vst [vmem:[%s2578 + $0x8d0] sm:$0xff] %v2887
                %v2889 = vld [vmem:[%s2577 + $0x4d8] sm:$0xff]
                %2890 = vst [vmem:[%s2578 + $0x8d8] sm:$0xff] %v2889
                %v2891 = vld [vmem:[%s2577 + $0x4e0] sm:$0xff]
                %2892 = vst [vmem:[%s2578 + $0x8e0] sm:$0xff] %v2891
                %v2893 = vld [vmem:[%s2577 + $0x4e8] sm:$0xff]
                %2894 = vst [vmem:[%s2578 + $0x8e8] sm:$0xff] %v2893
                %v2895 = vld [vmem:[%s2577 + $0x4f0] sm:$0xff]
                %2896 = vst [vmem:[%s2578 + $0x8f0] sm:$0xff] %v2895
                %v2897 = vld [vmem:[%s2577 + $0x4f8] sm:$0xff]
                %2898 = vst [vmem:[%s2578 + $0x8f8] sm:$0xff] %v2897
                %v2899 = vld [vmem:[%s2577 + $0x500] sm:$0xff]
                %2900 = vst [vmem:[%s2578 + $0xa00] sm:$0xff] %v2899
                %v2901 = vld [vmem:[%s2577 + $0x508] sm:$0xff]
                %2902 = vst [vmem:[%s2578 + $0xa08] sm:$0xff] %v2901
                %v2903 = vld [vmem:[%s2577 + $0x510] sm:$0xff]
                %2904 = vst [vmem:[%s2578 + $0xa10] sm:$0xff] %v2903
                %v2905 = vld [vmem:[%s2577 + $0x518] sm:$0xff]
                %2906 = vst [vmem:[%s2578 + $0xa18] sm:$0xff] %v2905
                %v2907 = vld [vmem:[%s2577 + $0x520] sm:$0xff]
                %2908 = vst [vmem:[%s2578 + $0xa20] sm:$0xff] %v2907
                %v2909 = vld [vmem:[%s2577 + $0x528] sm:$0xff]
                %2910 = vst [vmem:[%s2578 + $0xa28] sm:$0xff] %v2909
                %v2911 = vld [vmem:[%s2577 + $0x530] sm:$0xff]
                %2912 = vst [vmem:[%s2578 + $0xa30] sm:$0xff] %v2911
                %v2913 = vld [vmem:[%s2577 + $0x538] sm:$0xff]
                %2914 = vst [vmem:[%s2578 + $0xa38] sm:$0xff] %v2913
                %v2915 = vld [vmem:[%s2577 + $0x540] sm:$0xff]
                %2916 = vst [vmem:[%s2578 + $0xa40] sm:$0xff] %v2915
                %v2917 = vld [vmem:[%s2577 + $0x548] sm:$0xff]
                %2918 = vst [vmem:[%s2578 + $0xa48] sm:$0xff] %v2917
                %v2919 = vld [vmem:[%s2577 + $0x550] sm:$0xff]
                %2920 = vst [vmem:[%s2578 + $0xa50] sm:$0xff] %v2919
                %v2921 = vld [vmem:[%s2577 + $0x558] sm:$0xff]
                %2922 = vst [vmem:[%s2578 + $0xa58] sm:$0xff] %v2921
                %v2923 = vld [vmem:[%s2577 + $0x560] sm:$0xff]
                %2924 = vst [vmem:[%s2578 + $0xa60] sm:$0xff] %v2923
                %v2925 = vld [vmem:[%s2577 + $0x568] sm:$0xff]
                %2926 = vst [vmem:[%s2578 + $0xa68] sm:$0xff] %v2925
                %v2927 = vld [vmem:[%s2577 + $0x570] sm:$0xff]
                %2928 = vst [vmem:[%s2578 + $0xa70] sm:$0xff] %v2927
                %v2929 = vld [vmem:[%s2577 + $0x578] sm:$0xff]
                %2930 = vst [vmem:[%s2578 + $0xa78] sm:$0xff] %v2929
                %v2931 = vld [vmem:[%s2577 + $0x580] sm:$0xff]
                %2932 = vst [vmem:[%s2578 + $0xa80] sm:$0xff] %v2931
                %v2933 = vld [vmem:[%s2577 + $0x588] sm:$0xff]
                %2934 = vst [vmem:[%s2578 + $0xa88] sm:$0xff] %v2933
                %v2935 = vld [vmem:[%s2577 + $0x590] sm:$0xff]
                %2936 = vst [vmem:[%s2578 + $0xa90] sm:$0xff] %v2935
                %v2937 = vld [vmem:[%s2577 + $0x598] sm:$0xff]
                %2938 = vst [vmem:[%s2578 + $0xa98] sm:$0xff] %v2937
                %v2939 = vld [vmem:[%s2577 + $0x5a0] sm:$0xff]
                %2940 = vst [vmem:[%s2578 + $0xaa0] sm:$0xff] %v2939
                %v2941 = vld [vmem:[%s2577 + $0x5a8] sm:$0xff]
                %2942 = vst [vmem:[%s2578 + $0xaa8] sm:$0xff] %v2941
                %v2943 = vld [vmem:[%s2577 + $0x5b0] sm:$0xff]
                %2944 = vst [vmem:[%s2578 + $0xab0] sm:$0xff] %v2943
                %v2945 = vld [vmem:[%s2577 + $0x5b8] sm:$0xff]
                %2946 = vst [vmem:[%s2578 + $0xab8] sm:$0xff] %v2945
                %v2947 = vld [vmem:[%s2577 + $0x5c0] sm:$0xff]
                %2948 = vst [vmem:[%s2578 + $0xac0] sm:$0xff] %v2947
                %v2949 = vld [vmem:[%s2577 + $0x5c8] sm:$0xff]
                %2950 = vst [vmem:[%s2578 + $0xac8] sm:$0xff] %v2949
                %v2951 = vld [vmem:[%s2577 + $0x5d0] sm:$0xff]
                %2952 = vst [vmem:[%s2578 + $0xad0] sm:$0xff] %v2951
                %v2953 = vld [vmem:[%s2577 + $0x5d8] sm:$0xff]
                %2954 = vst [vmem:[%s2578 + $0xad8] sm:$0xff] %v2953
                %v2955 = vld [vmem:[%s2577 + $0x5e0] sm:$0xff]
                %2956 = vst [vmem:[%s2578 + $0xae0] sm:$0xff] %v2955
                %v2957 = vld [vmem:[%s2577 + $0x5e8] sm:$0xff]
                %2958 = vst [vmem:[%s2578 + $0xae8] sm:$0xff] %v2957
                %v2959 = vld [vmem:[%s2577 + $0x5f0] sm:$0xff]
                %2960 = vst [vmem:[%s2578 + $0xaf0] sm:$0xff] %v2959
                %v2961 = vld [vmem:[%s2577 + $0x5f8] sm:$0xff]
                %2962 = vst [vmem:[%s2578 + $0xaf8] sm:$0xff] %v2961
                %v2963 = vld [vmem:[%s2577 + $0x600] sm:$0xff]
                %2964 = vst [vmem:[%s2578 + $0xc00] sm:$0xff] %v2963
                %v2965 = vld [vmem:[%s2577 + $0x608] sm:$0xff]
                %2966 = vst [vmem:[%s2578 + $0xc08] sm:$0xff] %v2965
                %v2967 = vld [vmem:[%s2577 + $0x610] sm:$0xff]
                %2968 = vst [vmem:[%s2578 + $0xc10] sm:$0xff] %v2967
                %v2969 = vld [vmem:[%s2577 + $0x618] sm:$0xff]
                %2970 = vst [vmem:[%s2578 + $0xc18] sm:$0xff] %v2969
                %v2971 = vld [vmem:[%s2577 + $0x620] sm:$0xff]
                %2972 = vst [vmem:[%s2578 + $0xc20] sm:$0xff] %v2971
                %v2973 = vld [vmem:[%s2577 + $0x628] sm:$0xff]
                %2974 = vst [vmem:[%s2578 + $0xc28] sm:$0xff] %v2973
                %v2975 = vld [vmem:[%s2577 + $0x630] sm:$0xff]
                %2976 = vst [vmem:[%s2578 + $0xc30] sm:$0xff] %v2975
                %v2977 = vld [vmem:[%s2577 + $0x638] sm:$0xff]
                %2978 = vst [vmem:[%s2578 + $0xc38] sm:$0xff] %v2977
                %v2979 = vld [vmem:[%s2577 + $0x640] sm:$0xff]
                %2980 = vst [vmem:[%s2578 + $0xc40] sm:$0xff] %v2979
                %v2981 = vld [vmem:[%s2577 + $0x648] sm:$0xff]
                %2982 = vst [vmem:[%s2578 + $0xc48] sm:$0xff] %v2981
                %v2983 = vld [vmem:[%s2577 + $0x650] sm:$0xff]
                %2984 = vst [vmem:[%s2578 + $0xc50] sm:$0xff] %v2983
                %v2985 = vld [vmem:[%s2577 + $0x658] sm:$0xff]
                %2986 = vst [vmem:[%s2578 + $0xc58] sm:$0xff] %v2985
                %v2987 = vld [vmem:[%s2577 + $0x660] sm:$0xff]
                %2988 = vst [vmem:[%s2578 + $0xc60] sm:$0xff] %v2987
                %v2989 = vld [vmem:[%s2577 + $0x668] sm:$0xff]
                %2990 = vst [vmem:[%s2578 + $0xc68] sm:$0xff] %v2989
                %v2991 = vld [vmem:[%s2577 + $0x670] sm:$0xff]
                %2992 = vst [vmem:[%s2578 + $0xc70] sm:$0xff] %v2991
                %v2993 = vld [vmem:[%s2577 + $0x678] sm:$0xff]
                %2994 = vst [vmem:[%s2578 + $0xc78] sm:$0xff] %v2993
                %v2995 = vld [vmem:[%s2577 + $0x680] sm:$0xff]
                %2996 = vst [vmem:[%s2578 + $0xc80] sm:$0xff] %v2995
                %v2997 = vld [vmem:[%s2577 + $0x688] sm:$0xff]
                %2998 = vst [vmem:[%s2578 + $0xc88] sm:$0xff] %v2997
                %v2999 = vld [vmem:[%s2577 + $0x690] sm:$0xff]
                %3000 = vst [vmem:[%s2578 + $0xc90] sm:$0xff] %v2999
                %v3001 = vld [vmem:[%s2577 + $0x698] sm:$0xff]
                %3002 = vst [vmem:[%s2578 + $0xc98] sm:$0xff] %v3001
                %v3003 = vld [vmem:[%s2577 + $0x6a0] sm:$0xff]
                %3004 = vst [vmem:[%s2578 + $0xca0] sm:$0xff] %v3003
                %v3005 = vld [vmem:[%s2577 + $0x6a8] sm:$0xff]
                %3006 = vst [vmem:[%s2578 + $0xca8] sm:$0xff] %v3005
                %v3007 = vld [vmem:[%s2577 + $0x6b0] sm:$0xff]
                %3008 = vst [vmem:[%s2578 + $0xcb0] sm:$0xff] %v3007
                %v3009 = vld [vmem:[%s2577 + $0x6b8] sm:$0xff]
                %3010 = vst [vmem:[%s2578 + $0xcb8] sm:$0xff] %v3009
                %v3011 = vld [vmem:[%s2577 + $0x6c0] sm:$0xff]
                %3012 = vst [vmem:[%s2578 + $0xcc0] sm:$0xff] %v3011
                %v3013 = vld [vmem:[%s2577 + $0x6c8] sm:$0xff]
                %3014 = vst [vmem:[%s2578 + $0xcc8] sm:$0xff] %v3013
                %v3015 = vld [vmem:[%s2577 + $0x6d0] sm:$0xff]
                %3016 = vst [vmem:[%s2578 + $0xcd0] sm:$0xff] %v3015
                %v3017 = vld [vmem:[%s2577 + $0x6d8] sm:$0xff]
                %3018 = vst [vmem:[%s2578 + $0xcd8] sm:$0xff] %v3017
                %v3019 = vld [vmem:[%s2577 + $0x6e0] sm:$0xff]
                %3020 = vst [vmem:[%s2578 + $0xce0] sm:$0xff] %v3019
                %v3021 = vld [vmem:[%s2577 + $0x6e8] sm:$0xff]
                %3022 = vst [vmem:[%s2578 + $0xce8] sm:$0xff] %v3021
                %v3023 = vld [vmem:[%s2577 + $0x6f0] sm:$0xff]
                %3024 = vst [vmem:[%s2578 + $0xcf0] sm:$0xff] %v3023
                %v3025 = vld [vmem:[%s2577 + $0x6f8] sm:$0xff]
                %3026 = vst [vmem:[%s2578 + $0xcf8] sm:$0xff] %v3025
                %v3027 = vld [vmem:[%s2577 + $0x700] sm:$0xff]
                %3028 = vst [vmem:[%s2578 + $0xe00] sm:$0xff] %v3027
                %v3029 = vld [vmem:[%s2577 + $0x708] sm:$0xff]
                %3030 = vst [vmem:[%s2578 + $0xe08] sm:$0xff] %v3029
                %v3031 = vld [vmem:[%s2577 + $0x710] sm:$0xff]
                %3032 = vst [vmem:[%s2578 + $0xe10] sm:$0xff] %v3031
                %v3033 = vld [vmem:[%s2577 + $0x718] sm:$0xff]
                %3034 = vst [vmem:[%s2578 + $0xe18] sm:$0xff] %v3033
                %v3035 = vld [vmem:[%s2577 + $0x720] sm:$0xff]
                %3036 = vst [vmem:[%s2578 + $0xe20] sm:$0xff] %v3035
                %v3037 = vld [vmem:[%s2577 + $0x728] sm:$0xff]
                %3038 = vst [vmem:[%s2578 + $0xe28] sm:$0xff] %v3037
                %v3039 = vld [vmem:[%s2577 + $0x730] sm:$0xff]
                %3040 = vst [vmem:[%s2578 + $0xe30] sm:$0xff] %v3039
                %v3041 = vld [vmem:[%s2577 + $0x738] sm:$0xff]
                %3042 = vst [vmem:[%s2578 + $0xe38] sm:$0xff] %v3041
                %v3043 = vld [vmem:[%s2577 + $0x740] sm:$0xff]
                %3044 = vst [vmem:[%s2578 + $0xe40] sm:$0xff] %v3043
                %v3045 = vld [vmem:[%s2577 + $0x748] sm:$0xff]
                %3046 = vst [vmem:[%s2578 + $0xe48] sm:$0xff] %v3045
                %v3047 = vld [vmem:[%s2577 + $0x750] sm:$0xff]
                %3048 = vst [vmem:[%s2578 + $0xe50] sm:$0xff] %v3047
                %v3049 = vld [vmem:[%s2577 + $0x758] sm:$0xff]
                %3050 = vst [vmem:[%s2578 + $0xe58] sm:$0xff] %v3049
                %v3051 = vld [vmem:[%s2577 + $0x760] sm:$0xff]
                %3052 = vst [vmem:[%s2578 + $0xe60] sm:$0xff] %v3051
                %v3053 = vld [vmem:[%s2577 + $0x768] sm:$0xff]
                %3054 = vst [vmem:[%s2578 + $0xe68] sm:$0xff] %v3053
                %v3055 = vld [vmem:[%s2577 + $0x770] sm:$0xff]
                %3056 = vst [vmem:[%s2578 + $0xe70] sm:$0xff] %v3055
                %v3057 = vld [vmem:[%s2577 + $0x778] sm:$0xff]
                %3058 = vst [vmem:[%s2578 + $0xe78] sm:$0xff] %v3057
                %v3059 = vld [vmem:[%s2577 + $0x780] sm:$0xff]
                %3060 = vst [vmem:[%s2578 + $0xe80] sm:$0xff] %v3059
                %v3061 = vld [vmem:[%s2577 + $0x788] sm:$0xff]
                %3062 = vst [vmem:[%s2578 + $0xe88] sm:$0xff] %v3061
                %v3063 = vld [vmem:[%s2577 + $0x790] sm:$0xff]
                %3064 = vst [vmem:[%s2578 + $0xe90] sm:$0xff] %v3063
                %v3065 = vld [vmem:[%s2577 + $0x798] sm:$0xff]
                %3066 = vst [vmem:[%s2578 + $0xe98] sm:$0xff] %v3065
                %v3067 = vld [vmem:[%s2577 + $0x7a0] sm:$0xff]
                %3068 = vst [vmem:[%s2578 + $0xea0] sm:$0xff] %v3067
                %v3069 = vld [vmem:[%s2577 + $0x7a8] sm:$0xff]
                %3070 = vst [vmem:[%s2578 + $0xea8] sm:$0xff] %v3069
                %v3071 = vld [vmem:[%s2577 + $0x7b0] sm:$0xff]
                %3072 = vst [vmem:[%s2578 + $0xeb0] sm:$0xff] %v3071
                %v3073 = vld [vmem:[%s2577 + $0x7b8] sm:$0xff]
                %3074 = vst [vmem:[%s2578 + $0xeb8] sm:$0xff] %v3073
                %v3075 = vld [vmem:[%s2577 + $0x7c0] sm:$0xff]
                %3076 = vst [vmem:[%s2578 + $0xec0] sm:$0xff] %v3075
                %v3077 = vld [vmem:[%s2577 + $0x7c8] sm:$0xff]
                %3078 = vst [vmem:[%s2578 + $0xec8] sm:$0xff] %v3077
                %v3079 = vld [vmem:[%s2577 + $0x7d0] sm:$0xff]
                %3080 = vst [vmem:[%s2578 + $0xed0] sm:$0xff] %v3079
                %v3081 = vld [vmem:[%s2577 + $0x7d8] sm:$0xff]
                %3082 = vst [vmem:[%s2578 + $0xed8] sm:$0xff] %v3081
                %v3083 = vld [vmem:[%s2577 + $0x7e0] sm:$0xff]
                %3084 = vst [vmem:[%s2578 + $0xee0] sm:$0xff] %v3083
                %v3085 = vld [vmem:[%s2577 + $0x7e8] sm:$0xff]
                %3086 = vst [vmem:[%s2578 + $0xee8] sm:$0xff] %v3085
                %v3087 = vld [vmem:[%s2577 + $0x7f0] sm:$0xff]
                %3088 = vst [vmem:[%s2578 + $0xef0] sm:$0xff] %v3087
                %v3089 = vld [vmem:[%s2577 + $0x7f8] sm:$0xff]
                %3090 = vst [vmem:[%s2578 + $0xef8] sm:$0xff] %v3089
              $region53: #{lm_rnn_forward.3} parent=47 // loop_footer
                %s2576 = sadd.s32 1, %s2572
              $region54: #{lm_rnn_forward.3} parent=47 // loop_footer_branch
                %2571 = sbr.rel target = $region50
              $region55: #{lm_rnn_forward.3} parent=47 // loop_exit
                _
            $region48: #{lm_rnn_forward.3} parent=39 // pred_fallthru
              _
          $region40: #{lm_rnn_forward.3} parent=35 // pred_fallthru
            _
          %3615 = vnop
        $region36: #{lm_rnn_forward.3} parent=31 // pred_fallthru
          _
      $region32: #{lm_rnn_forward.3} parent=5 // pred_fallthru
        _
      %p3616 = scmp.le.s32.totalorder 2, %s9
      // Predicated region
      $region71: #{lm_rnn_forward.3} parent=5 // pred_check
        %p3617 = pneg %p3616
      $region72: #{lm_rnn_forward.3} parent=5 // pred_check_branch
        %3619 = sbr.rel (%p3617) target = $region74
      $region73: #{lm_rnn_forward.3} parent=5 // pred_region
        %s3620 = ssub.s32 %s9, 2
        // Predicated region
        $region75: #{lm_rnn_forward.3} parent=73 // pred_check
          %p3621 = pneg %p130
        $region76: #{lm_rnn_forward.3} parent=73 // pred_check_branch
          %3623 = sbr.rel (%p3621) target = $region78
        $region77: #{lm_rnn_forward.3} parent=73 // pred_region
          %s3624 = sand.u32 %s115, 1
          %s3625 = sand.u32 %s115, 1
          %s3626 = smul.addr %s3625, 2048
          %s3627 = scalar_lea.vmem [#allocation2], %s3626
        $region78: #{lm_rnn_forward.3} parent=73 // pred_fallthru
          _
      $region74: #{lm_rnn_forward.3} parent=5 // pred_fallthru
        _
    $region6: #{lm_rnn_forward.3} parent=1 // loop_footer
      %s13 = sadd.s32 1, %s9
    $region7: #{lm_rnn_forward.3} parent=1 // loop_footer_branch
      %8 = sbr.rel target = $region3
    $region8: #{lm_rnn_forward.3} parent=1 // loop_exit
      _

// kernel: lm_rnn_forward.2
$region0: #{lm_rnn_forward.2}
  #allocation0 [shape = 'u32[]', space=smem, size = 0x4, offset = 0x4, fixed_abs, tag = 'smem constant byte address 0x4 - core index']
  #allocation1 [shape = 'u32[144,128]{1,0:T(1,128)}', space=vmem, size = 0x12000, scoped, tag = 'internal scratch']
  #allocation2 [shape = 'f32[64,128]{1,0:T(8,128)}', space=vmem, size = 0x8000, scoped, tag = 'scratch operand']
  #allocation3 [shape = 'f32[8,128]{1,0:T(8,128)}', space=vmem, size = 0x1000, scoped, tag = 'scratch operand']
  %s0 = inlined_call_operand.vmem [shape: f32[256,128], index: 0, kind: input, shape index: {}]
  %s1 = inlined_call_operand.hbm [shape: f32[128,128], index: 1, kind: input, shape index: {}]
  %s2 = inlined_call_operand.hbm [shape: f32[128,128], index: 2, kind: input, shape index: {}]
  %s3 = inlined_call_operand.vmem [shape: f32[1,128], index: 3, kind: input, shape index: {}]
  %s4 = inlined_call_operand.vmem [shape: f32[32,8,128], index: 4, kind: output, shape index: {}]
  %s5 = sld [smem:[#allocation0]]
  $region61: #{lm_rnn_forward.2} parent=0
    _
  %s7 = ssub.s32 1, %s5
  %s8 = scalar_select 0, %s7, %s5
  $region1: #{lm_rnn_forward.2} parent=0
    #allocation4 [shape = 'u8[65536]{0}', space=vmem, size = 0x10000, scoped, tag = 'input window, operand 1, single buffered']
    #allocation5 [shape = 's32[2]{0}', space=sflag, size = 0x8, scoped, tag = 'scoped memory for lm_rnn_forward.2']
    #allocation6 [shape = 'u8[65536]{0}', space=vmem, size = 0x10000, scoped, tag = 'input window, operand 2, single buffered']
    #allocation7 [shape = 's32[1]{0}', space=sflag, size = 0x4, scoped, tag = 'scoped memory for lm_rnn_forward.2']
    %9 = vsyncpa [#allocation5], 0
    %10 = vsyncpa [#allocation7], 0
    loop: start=0, step=1, limit=6
    $region2: #{lm_rnn_forward.2} parent=1 // loop_pre_header
      _
    $region3: #{lm_rnn_forward.2} parent=1 // loop_header
      %s12 = sphi 0, %s16
      %p13 = scmp.ge.s32.totalorder %s12, 6
      %s22 = sphi 0, %s24
      %s25 = sphi 0, %s22
      %s26 = sphi 0, %s25
      %s42 = sphi 0, %s26
      %s46 = sphi 0, %s46
      %s48 = sphi 0, %s46
      %s49 = sphi 0, %s48
      %s63 = sphi 0, %s49
      %s67 = sphi 0, %s67
      %s69 = sphi 0, %s67
      %s70 = sphi 0, %s69
      %s84 = sphi 0, %s70
      %s88 = sphi 0, %s88
      %s90 = sphi 0, %s88
      %s91 = sphi 0, %s90
      %s105 = sphi 0, %s91
      %s111 = sphi 0, %s113
      %s114 = sphi 0, %s111
      %s115 = sphi 0, %s114
      %s131 = sphi 0, %s115
    $region4: #{lm_rnn_forward.2} parent=1 // loop_header_branch
      %15 = sbr.rel (%p13) target = $region8
    $region5: #{lm_rnn_forward.2} parent=1 // loop_body
      %s17 = ssub.s32 %s12, 1
      %s18 = ssub.s32 %s12, 2
      %s19 = sadd.s32 %s12, 1
      %s20 = ssub.s32 %s12, %s19
      %p21 = scmp.eq.s32.totalorder %s20, 0
      %s23 = sadd.s32 %s22, 1
      %s24 = scalar_select %p21, %s22, %s23
      %p27 = pneg %p21
      %p28 = scmp.eq.s32.totalorder %s12, 3
      %p29 = por %p27, %p28
      %p30 = scmp.ne.s32.totalorder %s22, %s25
      %p31 = scmp.eq.s32.totalorder %s12, 0
      %p32 = por %p30, %p31
      %p33 = scmp.ne.s32.totalorder %s22, %s25
      %p34 = scmp.eq.s32.totalorder %s17, 3
      %p35 = por %p33, %p34
      %p36 = scmp.ne.s32.totalorder %s25, %s26
      %p37 = scmp.eq.s32.totalorder %s17, 0
      %p38 = por %p36, %p37
      %p39 = scmp.ne.s32.totalorder %s25, %s26
      %p40 = scmp.eq.s32.totalorder %s18, 3
      %p41 = por %p39, %p40
      %p43 = scmp.ne.s32.totalorder %s26, %s42
      %p44 = scmp.eq.s32.totalorder %s18, 0
      %p45 = por %p43, %p44
      %s47 = sadd.s32 %s46, 1
      %p50 = scmp.eq.s32.totalorder %s12, 3
      %p51 = scmp.ne.s32.totalorder %s46, %s48
      %p52 = scmp.eq.s32.totalorder %s12, 0
      %p53 = por %p51, %p52
      %p54 = scmp.ne.s32.totalorder %s46, %s48
      %p55 = scmp.eq.s32.totalorder %s17, 3
      %p56 = por %p54, %p55
      %p57 = scmp.ne.s32.totalorder %s48, %s49
      %p58 = scmp.eq.s32.totalorder %s17, 0
      %p59 = por %p57, %p58
      %p60 = scmp.ne.s32.totalorder %s48, %s49
      %p61 = scmp.eq.s32.totalorder %s18, 3
      %p62 = por %p60, %p61
      %p64 = scmp.ne.s32.totalorder %s49, %s63
      %p65 = scmp.eq.s32.totalorder %s18, 0
      %p66 = por %p64, %p65
      %s68 = sadd.s32 %s67, 1
      %p71 = scmp.eq.s32.totalorder %s12, 3
      %p72 = scmp.ne.s32.totalorder %s67, %s69
      %p73 = scmp.eq.s32.totalorder %s12, 0
      %p74 = por %p72, %p73
      %p75 = scmp.ne.s32.totalorder %s67, %s69
      %p76 = scmp.eq.s32.totalorder %s17, 3
      %p77 = por %p75, %p76
      %p78 = scmp.ne.s32.totalorder %s69, %s70
      %p79 = scmp.eq.s32.totalorder %s17, 0
      %p80 = por %p78, %p79
      %p81 = scmp.ne.s32.totalorder %s69, %s70
      %p82 = scmp.eq.s32.totalorder %s18, 3
      %p83 = por %p81, %p82
      %p85 = scmp.ne.s32.totalorder %s70, %s84
      %p86 = scmp.eq.s32.totalorder %s18, 0
      %p87 = por %p85, %p86
      %s89 = sadd.s32 %s88, 1
      %p92 = scmp.eq.s32.totalorder %s12, 3
      %p93 = scmp.ne.s32.totalorder %s88, %s90
      %p94 = scmp.eq.s32.totalorder %s12, 0
      %p95 = por %p93, %p94
      %p96 = scmp.ne.s32.totalorder %s88, %s90
      %p97 = scmp.eq.s32.totalorder %s17, 3
      %p98 = por %p96, %p97
      %p99 = scmp.ne.s32.totalorder %s90, %s91
      %p100 = scmp.eq.s32.totalorder %s17, 0
      %p101 = por %p99, %p100
      %p102 = scmp.ne.s32.totalorder %s90, %s91
      %p103 = scmp.eq.s32.totalorder %s18, 3
      %p104 = por %p102, %p103
      %p106 = scmp.ne.s32.totalorder %s91, %s105
      %p107 = scmp.eq.s32.totalorder %s18, 0
      %p108 = por %p106, %p107
      %s109 = ssub.s32 %s12, %s19
      %p110 = scmp.eq.s32.totalorder %s109, 0
      %s112 = sadd.s32 %s111, 1
      %s113 = scalar_select %p110, %s111, %s112
      %p116 = pneg %p110
      %p117 = scmp.eq.s32.totalorder %s12, 3
      %p118 = por %p116, %p117
      %p119 = scmp.ne.s32.totalorder %s111, %s114
      %p120 = scmp.eq.s32.totalorder %s12, 0
      %p121 = por %p119, %p120
      %p122 = scmp.ne.s32.totalorder %s111, %s114
      %p123 = scmp.eq.s32.totalorder %s17, 3
      %p124 = por %p122, %p123
      %p125 = scmp.ne.s32.totalorder %s114, %s115
      %p126 = scmp.eq.s32.totalorder %s17, 0
      %p127 = por %p125, %p126
      %p128 = scmp.ne.s32.totalorder %s114, %s115
      %p129 = scmp.eq.s32.totalorder %s18, 3
      %p130 = por %p128, %p129
      %p132 = scmp.ne.s32.totalorder %s115, %s131
      %p133 = scmp.eq.s32.totalorder %s18, 0
      %p134 = por %p132, %p133
      %p135 = scmp.le.s32.totalorder 1, %s12
      %p136 = scmp.lt.s32.totalorder %s12, 5
      %p137 = pnand %p135, %p136
      %p138 = pneg %p137
      // Predicated region
      $region9: #{lm_rnn_forward.2} parent=5 // pred_check
        _
      $region10: #{lm_rnn_forward.2} parent=5 // pred_check_branch
        %140 = sbr.rel (%p137) target = $region12
      $region11: #{lm_rnn_forward.2} parent=5 // pred_region
        %s141 = ssub.s32 %s12, 1
        // Predicated region
        $region13: #{lm_rnn_forward.2} parent=11 // pred_check
          %p142 = pneg %p59
        $region14: #{lm_rnn_forward.2} parent=11 // pred_check_branch
          %144 = sbr.rel (%p142) target = $region16
        $region15: #{lm_rnn_forward.2} parent=11 // pred_region
          %s146 = ssub.s32 2048, 2048
          %147 = vsyncadd [#allocation5], %s146
          %s148 = sshll.u32 [#allocation4], 4
          %s149 = int_to_ptr.vmem [resolvable:$true] %s148
          %154 = dma.hbm_to_vmem [thread:$0]  %s1, 2048, %s149, [#allocation5], 128, 128, 8
        $region16: #{lm_rnn_forward.2} parent=11 // pred_fallthru
          _
        // Predicated region
        $region17: #{lm_rnn_forward.2} parent=11 // pred_check
          %p155 = pneg %p80
        $region18: #{lm_rnn_forward.2} parent=11 // pred_check_branch
          %157 = sbr.rel (%p155) target = $region20
        $region19: #{lm_rnn_forward.2} parent=11 // pred_region
          %s159 = ssub.s32 2048, 2048
          %160 = vsyncadd [#allocation7], %s159
          %s161 = sshll.u32 [#allocation6], 4
          %s162 = int_to_ptr.vmem [resolvable:$true] %s161
          %167 = dma.hbm_to_vmem [thread:$0]  %s2, 2048, %s162, [#allocation7], 128, 128, 8
        $region20: #{lm_rnn_forward.2} parent=11 // pred_fallthru
          _
        // Predicated region
        $region21: #{lm_rnn_forward.2} parent=11 // pred_check
          %p168 = pneg %p101
        $region22: #{lm_rnn_forward.2} parent=11 // pred_check_branch
          %170 = sbr.rel (%p168) target = $region24
        $region23: #{lm_rnn_forward.2} parent=11 // pred_region
          _
        $region24: #{lm_rnn_forward.2} parent=11 // pred_fallthru
          _
      $region12: #{lm_rnn_forward.2} parent=5 // pred_fallthru
        _
      %p171 = scmp.lt.s32.totalorder %s12, 4
      // Predicated region
      $region25: #{lm_rnn_forward.2} parent=5 // pred_check
        %p172 = pneg %p171
      $region26: #{lm_rnn_forward.2} parent=5 // pred_check_branch
        %174 = sbr.rel (%p172) target = $region28
      $region27: #{lm_rnn_forward.2} parent=5 // pred_region
        // Predicated region
        $region29: #{lm_rnn_forward.2} parent=27 // pred_check
          %p175 = pneg %p32
        $region30: #{lm_rnn_forward.2} parent=27 // pred_check_branch
          %177 = sbr.rel (%p175) target = $region32
        $region31: #{lm_rnn_forward.2} parent=27 // pred_region
          %s178 = smul.u32 8, %s12
          %p179 = scmp.lt.s32.totalorder %s178, 31
          %s180 = scalar_select %p179, %s178, 31
          %s181 = smul.addr %s180, 8
          %s182 = scalar_lea.vmem %s0, %s181
          %s183 = smul.u32 8, %s12
        $region32: #{lm_rnn_forward.2} parent=27 // pred_fallthru
          _
      $region28: #{lm_rnn_forward.2} parent=5 // pred_fallthru
        _
      %p184 = scmp.le.s32.totalorder 1, %s12
      %p185 = scmp.lt.s32.totalorder %s12, 5
      %p186 = pnand %p184, %p185
      %p187 = pneg %p186
      // Predicated region
      $region33: #{lm_rnn_forward.2} parent=5 // pred_check
        _
      $region34: #{lm_rnn_forward.2} parent=5 // pred_check_branch
        %189 = sbr.rel (%p186) target = $region36
      $region35: #{lm_rnn_forward.2} parent=5 // pred_region
        %s190 = ssub.s32 %s12, 1
        // Predicated region
        $region37: #{lm_rnn_forward.2} parent=35 // pred_check
          %p191 = pneg %p59
        $region38: #{lm_rnn_forward.2} parent=35 // pred_check_branch
          %193 = sbr.rel (%p191) target = $region40
        $region39: #{lm_rnn_forward.2} parent=35 // pred_region
          %194 = dma.done [#allocation5], 2048
        $region40: #{lm_rnn_forward.2} parent=35 // pred_fallthru
          _
        // Predicated region
        $region41: #{lm_rnn_forward.2} parent=35 // pred_check
          %p195 = pneg %p80
        $region42: #{lm_rnn_forward.2} parent=35 // pred_check_branch
          %197 = sbr.rel (%p195) target = $region44
        $region43: #{lm_rnn_forward.2} parent=35 // pred_region
          %198 = dma.done [#allocation7], 2048
        $region44: #{lm_rnn_forward.2} parent=35 // pred_fallthru
          _
        %s199 = smul.u32 8, %s17
        %p200 = scmp.lt.s32.totalorder %s199, 31
        %s201 = scalar_select %p200, %s199, 31
        %s202 = smul.addr %s201, 8
        %s203 = scalar_lea.vmem %s0, %s202
        %p204 = pneg %p38
        %p205 = pneg %p35
        %p206 = pneg %p59
        %p207 = pneg %p56
        %p208 = pneg %p80
        %p209 = pneg %p77
        %p210 = pneg %p101
        %p211 = pneg %p98
        %p212 = pneg %p127
        %p213 = pneg %p124
        %s214 = smul.u32 8, %s17
        %p215 = scmp.lt.s32.totalorder %s214, 31
        %s216 = scalar_select %p215, %s214, 31
        %s217 = smul.addr %s216, 8
        %s218 = scalar_lea.vmem %s4, %s217
        %s219 = smul.u32 8, %s17
        %p220 = scmp.lt.s32.totalorder %s219, 31
        %s221 = scalar_select %p220, %s219, 31
        %s222 = smul.addr %s221, 8
        %s223 = scalar_lea.vmem %s0, %s222
        %s224 = smul.u32 8, %s17
        %s225 = smul.u32 8, %s17
        %p226 = scmp.lt.s32.totalorder %s225, 31
        %s227 = scalar_select %p226, %s225, 31
        %s228 = smul.addr %s227, 8
        %s229 = scalar_lea.vmem %s4, %s228
        %s230 = smul.u32 8, %s17
        %p231 = scmp.eq.s32.totalorder %s17, 0
        // Predicated region
        $region45: #{lm_rnn_forward.2} parent=35 // pred_check
          %p232 = pneg %p231
        $region46: #{lm_rnn_forward.2} parent=35 // pred_check_branch
          %234 = sbr.rel (%p232) target = $region48
        $region47: #{lm_rnn_forward.2} parent=35 // pred_region
          %235 = vst [vmem:[#allocation3] sm:$0xff] 0.0
        $region48: #{lm_rnn_forward.2} parent=35 // pred_fallthru
          _
        %v236 = vld [vmem:[%s223] sm:$0xff]
        %v237 = vld [vmem:[%s223 + $0x8] sm:$0xff]
        %v238 = vld [vmem:[%s223 + $0x10] sm:$0xff]
        %v239 = vld [vmem:[%s223 + $0x18] sm:$0xff]
        %v240 = vld [vmem:[%s223 + $0x20] sm:$0xff]
        %v241 = vld [vmem:[%s223 + $0x28] sm:$0xff]
        %v242 = vld [vmem:[%s223 + $0x30] sm:$0xff]
        %v243 = vld [vmem:[%s223 + $0x38] sm:$0xff]
        %v244 = vld [vmem:[#allocation4] sm:$0xff]
        %v245 = vld [vmem:[#allocation4 + $0x8] sm:$0xff]
        %v246 = vld [vmem:[#allocation4 + $0x10] sm:$0xff]
        %v247 = vld [vmem:[#allocation4 + $0x18] sm:$0xff]
        %v248 = vld [vmem:[#allocation4 + $0x20] sm:$0xff]
        %v249 = vld [vmem:[#allocation4 + $0x28] sm:$0xff]
        %v250 = vld [vmem:[#allocation4 + $0x30] sm:$0xff]
        %v251 = vld [vmem:[#allocation4 + $0x38] sm:$0xff]
        %v252 = vld [vmem:[#allocation4 + $0x40] sm:$0xff]
        %v253 = vld [vmem:[#allocation4 + $0x48] sm:$0xff]
        %v254 = vld [vmem:[#allocation4 + $0x50] sm:$0xff]
        %v255 = vld [vmem:[#allocation4 + $0x58] sm:$0xff]
        %v256 = vld [vmem:[#allocation4 + $0x60] sm:$0xff]
        %v257 = vld [vmem:[#allocation4 + $0x68] sm:$0xff]
        %v258 = vld [vmem:[#allocation4 + $0x70] sm:$0xff]
        %v259 = vld [vmem:[#allocation4 + $0x78] sm:$0xff]
        %v260 = vld [vmem:[%s3] sm:$0x1]
        %v262 = vlaneseq
        %v263 = vshrl.u32 %v262, 7
        %v264 = vsub.s32 0, %v263
        %v265 = vrot.slane %v260, %v264
        %267 = vmatprep.subr.mxu0 0.0
        %268 = vmatpush1.msra.mxu0 %v244
        %269 = vmatprep.subr.mxu0 0.0
        %270 = vmatpush1.msra.mxu0 %v245
        %271 = vmatprep.subr.mxu0 0.0
        %272 = vmatpush1.msra.mxu0 %v246
        %273 = vmatprep.subr.mxu0 0.0
        %274 = vmatpush1.msra.mxu0 %v247
        %275 = vmatprep.subr.mxu0 0.0
        %276 = vmatpush1.msra.mxu0 %v248
        %277 = vmatprep.subr.mxu0 0.0
        %278 = vmatpush1.msra.mxu0 %v249
        %279 = vmatprep.subr.mxu0 0.0
        %280 = vmatpush1.msra.mxu0 %v250
        %281 = vmatprep.subr.mxu0 0.0
        %282 = vmatpush1.msra.mxu0 %v251
        %283 = vmatprep.subr.mxu0 0.0
        %284 = vmatpush1.msra.mxu0 %v252
        %285 = vmatprep.subr.mxu0 0.0
        %286 = vmatpush1.msra.mxu0 %v253
        %287 = vmatprep.subr.mxu0 0.0
        %288 = vmatpush1.msra.mxu0 %v254
        %289 = vmatprep.subr.mxu0 0.0
        %290 = vmatpush1.msra.mxu0 %v255
        %291 = vmatprep.subr.mxu0 0.0
        %292 = vmatpush1.msra.mxu0 %v256
        %293 = vmatprep.subr.mxu0 0.0
        %294 = vmatpush1.msra.mxu0 %v257
        %295 = vmatprep.subr.mxu0 0.0
        %296 = vmatpush1.msra.mxu0 %v258
        %297 = vmatprep.subr.mxu0 0.0
        %298 = vmatpush1.msra.mxu0 %v259
        %299 = vmatprep.subr.mxu0 0.0
        %300 = vmatpush1.msra.mxu0 0.0
        %301 = vmatprep.subr.mxu0 0.0
        %302 = vmatpush1.msra.mxu0 0.0
        %303 = vmatprep.subr.mxu0 0.0
        %304 = vmatpush1.msra.mxu0 0.0
        %305 = vmatprep.subr.mxu0 0.0
        %306 = vmatpush1.msra.mxu0 0.0
        %307 = vmatprep.subr.mxu0 0.0
        %308 = vmatpush1.msra.mxu0 0.0
        %309 = vmatprep.subr.mxu0 0.0
        %310 = vmatpush1.msra.mxu0 0.0
        %311 = vmatprep.subr.mxu0 0.0
        %312 = vmatpush1.msra.mxu0 0.0
        %313 = vmatprep.subr.mxu0 0.0
        %314 = vmatpush1.msra.mxu0 0.0
        %315 = vmatprep.subr.mxu0 0.0
        %316 = vmatpush1.msra.mxu0 0.0
        %317 = vmatprep.subr.mxu0 0.0
        %318 = vmatpush1.msra.mxu0 0.0
        %319 = vmatprep.subr.mxu0 0.0
        %320 = vmatpush1.msra.mxu0 0.0
        %321 = vmatprep.subr.mxu0 0.0
        %322 = vmatpush1.msra.mxu0 0.0
        %323 = vmatprep.subr.mxu0 0.0
        %324 = vmatpush1.msra.mxu0 0.0
        %325 = vmatprep.subr.mxu0 0.0
        %326 = vmatpush1.msra.mxu0 0.0
        %327 = vmatprep.subr.mxu0 0.0
        %328 = vmatpush1.msra.mxu0 0.0
        %329 = vmatprep.subr.mxu0 0.0
        %330 = vmatpush1.msra.mxu0 0.0
        %331 = vmatprep.mubr.f32.mxu0 0.0
        %332 = vmatmul.mubr.f32.gmra.mrb[0].mxu0 %v236
        %v333 = vpop.f32.mrb[0].mxu0
        %v334 = vadd.f32 %v265, %v333
        %v335 = vpop.f32.mrb[0].mxu0
        %336 = vmatprep.mubr.f32.mxu0 0.0
        %337 = vmatmul.mubr.f32.gmra.mrb[0].mxu0 %v237
        %v338 = vpop.f32.mrb[0].mxu0
        %v339 = vadd.f32 %v265, %v338
        %v340 = vpop.f32.mrb[0].mxu0
        %341 = vmatprep.mubr.f32.mxu0 0.0
        %342 = vmatmul.mubr.f32.gmra.mrb[0].mxu0 %v238
        %v343 = vpop.f32.mrb[0].mxu0
        %v344 = vadd.f32 %v265, %v343
        %v345 = vpop.f32.mrb[0].mxu0
        %346 = vmatprep.mubr.f32.mxu0 0.0
        %347 = vmatmul.mubr.f32.gmra.mrb[0].mxu0 %v239
        %v348 = vpop.f32.mrb[0].mxu0
        %v349 = vadd.f32 %v265, %v348
        %v350 = vpop.f32.mrb[0].mxu0
        %351 = vmatprep.mubr.f32.mxu0 0.0
        %352 = vmatmul.mubr.f32.gmra.mrb[0].mxu0 %v240
        %v353 = vpop.f32.mrb[0].mxu0
        %v354 = vadd.f32 %v265, %v353
        %v355 = vpop.f32.mrb[0].mxu0
        %356 = vmatprep.mubr.f32.mxu0 0.0
        %357 = vmatmul.mubr.f32.gmra.mrb[0].mxu0 %v241
        %v358 = vpop.f32.mrb[0].mxu0
        %v359 = vadd.f32 %v265, %v358
        %v360 = vpop.f32.mrb[0].mxu0
        %361 = vmatprep.mubr.f32.mxu0 0.0
        %362 = vmatmul.mubr.f32.gmra.mrb[0].mxu0 %v242
        %v363 = vpop.f32.mrb[0].mxu0
        %v364 = vadd.f32 %v265, %v363
        %v365 = vpop.f32.mrb[0].mxu0
        %366 = vmatprep.mubr.f32.mxu0 0.0
        %367 = vmatmul.mubr.f32.gmra.mrb[0].mxu0 %v243
        %v368 = vpop.f32.mrb[0].mxu0
        %v369 = vadd.f32 %v265, %v368
        %v370 = vpop.f32.mrb[0].mxu0
        %371 = vdwg.mxu0
        %372 = vst [vmem:[#allocation2] sm:$0xff] %v334
        %373 = vst [vmem:[#allocation2 + $0x8] sm:$0xff] %v339
        %374 = vst [vmem:[#allocation2 + $0x10] sm:$0xff] %v344
        %375 = vst [vmem:[#allocation2 + $0x18] sm:$0xff] %v349
        %376 = vst [vmem:[#allocation2 + $0x20] sm:$0xff] %v354
        %377 = vst [vmem:[#allocation2 + $0x28] sm:$0xff] %v359
        %378 = vst [vmem:[#allocation2 + $0x30] sm:$0xff] %v364
        %379 = vst [vmem:[#allocation2 + $0x38] sm:$0xff] %v369
        %v380 = vld [vmem:[#allocation6] sm:$0xff]
        %v381 = vld [vmem:[#allocation6 + $0x8] sm:$0xff]
        %v382 = vld [vmem:[#allocation6 + $0x10] sm:$0xff]
        %v383 = vld [vmem:[#allocation6 + $0x18] sm:$0xff]
        %v384 = vld [vmem:[#allocation6 + $0x20] sm:$0xff]
        %v385 = vld [vmem:[#allocation6 + $0x28] sm:$0xff]
        %v386 = vld [vmem:[#allocation6 + $0x30] sm:$0xff]
        %v387 = vld [vmem:[#allocation6 + $0x38] sm:$0xff]
        %v388 = vld [vmem:[#allocation6 + $0x40] sm:$0xff]
        %v389 = vld [vmem:[#allocation6 + $0x48] sm:$0xff]
        %v390 = vld [vmem:[#allocation6 + $0x50] sm:$0xff]
        %v391 = vld [vmem:[#allocation6 + $0x58] sm:$0xff]
        %v392 = vld [vmem:[#allocation6 + $0x60] sm:$0xff]
        %v393 = vld [vmem:[#allocation6 + $0x68] sm:$0xff]
        %v394 = vld [vmem:[#allocation6 + $0x70] sm:$0xff]
        %v395 = vld [vmem:[#allocation6 + $0x78] sm:$0xff]
        %v396 = vld [vmem:[#allocation3] sm:$0xff]
        %v397 = vld [vmem:[#allocation2] sm:$0xff]
        %398 = vmatprep.subr.mxu0 0.0
        %399 = vmatpush1.msra.mxu0 %v380
        %400 = vmatprep.subr.mxu0 0.0
        %401 = vmatpush1.msra.mxu0 %v381
        %402 = vmatprep.subr.mxu0 0.0
        %403 = vmatpush1.msra.mxu0 %v382
        %404 = vmatprep.subr.mxu0 0.0
        %405 = vmatpush1.msra.mxu0 %v383
        %406 = vmatprep.subr.mxu0 0.0
        %407 = vmatpush1.msra.mxu0 %v384
        %408 = vmatprep.subr.mxu0 0.0
        %409 = vmatpush1.msra.mxu0 %v385
        %410 = vmatprep.subr.mxu0 0.0
        %411 = vmatpush1.msra.mxu0 %v386
        %412 = vmatprep.subr.mxu0 0.0
        %413 = vmatpush1.msra.mxu0 %v387
        %414 = vmatprep.subr.mxu0 0.0
        %415 = vmatpush1.msra.mxu0 %v388
        %416 = vmatprep.subr.mxu0 0.0
        %417 = vmatpush1.msra.mxu0 %v389
        %418 = vmatprep.subr.mxu0 0.0
        %419 = vmatpush1.msra.mxu0 %v390
        %420 = vmatprep.subr.mxu0 0.0
        %421 = vmatpush1.msra.mxu0 %v391
        %422 = vmatprep.subr.mxu0 0.0
        %423 = vmatpush1.msra.mxu0 %v392
        %424 = vmatprep.subr.mxu0 0.0
        %425 = vmatpush1.msra.mxu0 %v393
        %426 = vmatprep.subr.mxu0 0.0
        %427 = vmatpush1.msra.mxu0 %v394
        %428 = vmatprep.subr.mxu0 0.0
        %429 = vmatpush1.msra.mxu0 %v395
        %430 = vmatprep.subr.mxu0 0.0
        %431 = vmatpush1.msra.mxu0 0.0
        %432 = vmatprep.subr.mxu0 0.0
        %433 = vmatpush1.msra.mxu0 0.0
        %434 = vmatprep.subr.mxu0 0.0
        %435 = vmatpush1.msra.mxu0 0.0
        %436 = vmatprep.subr.mxu0 0.0
        %437 = vmatpush1.msra.mxu0 0.0
        %438 = vmatprep.subr.mxu0 0.0
        %439 = vmatpush1.msra.mxu0 0.0
        %440 = vmatprep.subr.mxu0 0.0
        %441 = vmatpush1.msra.mxu0 0.0
        %442 = vmatprep.subr.mxu0 0.0
        %443 = vmatpush1.msra.mxu0 0.0
        %444 = vmatprep.subr.mxu0 0.0
        %445 = vmatpush1.msra.mxu0 0.0
        %446 = vmatprep.subr.mxu0 0.0
        %447 = vmatpush1.msra.mxu0 0.0
        %448 = vmatprep.subr.mxu0 0.0
        %449 = vmatpush1.msra.mxu0 0.0
        %450 = vmatprep.subr.mxu0 0.0
        %451 = vmatpush1.msra.mxu0 0.0
        %452 = vmatprep.subr.mxu0 0.0
        %453 = vmatpush1.msra.mxu0 0.0
        %454 = vmatprep.subr.mxu0 0.0
        %455 = vmatpush1.msra.mxu0 0.0
        %456 = vmatprep.subr.mxu0 0.0
        %457 = vmatpush1.msra.mxu0 0.0
        %458 = vmatprep.subr.mxu0 0.0
        %459 = vmatpush1.msra.mxu0 0.0
        %460 = vmatprep.subr.mxu0 0.0
        %461 = vmatpush1.msra.mxu0 0.0
        %462 = vmatprep.mubr.f32.mxu0 0.0
        %463 = vmatmul.mubr.f32.gmra.mrb[0].mxu0 %v396
        %v464 = vpop.f32.mrb[0].mxu0
        %v465 = vadd.f32 0.0, %v464
        %v466 = vpop.f32.mrb[0].mxu0
        %467 = vdwg.mxu0
        %v468 = vadd.f32 %v397, %v465
        %v469 = vtanh.pop %v468
        %470 = vst [vmem:[%s229] sm:$0xff] %v469
        %s471 = scalar_lea.vmem [#allocation2], 8
        %v472 = vld [vmem:[%s471] sm:$0xff]
        %473 = vmatprep.subr.mxu0 0.0
        %474 = vmatpush1.msra.mxu0 %v380
        %475 = vmatprep.subr.mxu0 0.0
        %476 = vmatpush1.msra.mxu0 %v381
        %477 = vmatprep.subr.mxu0 0.0
        %478 = vmatpush1.msra.mxu0 %v382
        %479 = vmatprep.subr.mxu0 0.0
        %480 = vmatpush1.msra.mxu0 %v383
        %481 = vmatprep.subr.mxu0 0.0
        %482 = vmatpush1.msra.mxu0 %v384
        %483 = vmatprep.subr.mxu0 0.0
        %484 = vmatpush1.msra.mxu0 %v385
        %485 = vmatprep.subr.mxu0 0.0
        %486 = vmatpush1.msra.mxu0 %v386
        %487 = vmatprep.subr.mxu0 0.0
        %488 = vmatpush1.msra.mxu0 %v387
        %489 = vmatprep.subr.mxu0 0.0
        %490 = vmatpush1.msra.mxu0 %v388
        %491 = vmatprep.subr.mxu0 0.0
        %492 = vmatpush1.msra.mxu0 %v389
        %493 = vmatprep.subr.mxu0 0.0
        %494 = vmatpush1.msra.mxu0 %v390
        %495 = vmatprep.subr.mxu0 0.0
        %496 = vmatpush1.msra.mxu0 %v391
        %497 = vmatprep.subr.mxu0 0.0
        %498 = vmatpush1.msra.mxu0 %v392
        %499 = vmatprep.subr.mxu0 0.0
        %500 = vmatpush1.msra.mxu0 %v393
        %501 = vmatprep.subr.mxu0 0.0
        %502 = vmatpush1.msra.mxu0 %v394
        %503 = vmatprep.subr.mxu0 0.0
        %504 = vmatpush1.msra.mxu0 %v395
        %505 = vmatprep.subr.mxu0 0.0
        %506 = vmatpush1.msra.mxu0 0.0
        %507 = vmatprep.subr.mxu0 0.0
        %508 = vmatpush1.msra.mxu0 0.0
        %509 = vmatprep.subr.mxu0 0.0
        %510 = vmatpush1.msra.mxu0 0.0
        %511 = vmatprep.subr.mxu0 0.0
        %512 = vmatpush1.msra.mxu0 0.0
        %513 = vmatprep.subr.mxu0 0.0
        %514 = vmatpush1.msra.mxu0 0.0
        %515 = vmatprep.subr.mxu0 0.0
        %516 = vmatpush1.msra.mxu0 0.0
        %517 = vmatprep.subr.mxu0 0.0
        %518 = vmatpush1.msra.mxu0 0.0
        %519 = vmatprep.subr.mxu0 0.0
        %520 = vmatpush1.msra.mxu0 0.0
        %521 = vmatprep.subr.mxu0 0.0
        %522 = vmatpush1.msra.mxu0 0.0
        %523 = vmatprep.subr.mxu0 0.0
        %524 = vmatpush1.msra.mxu0 0.0
        %525 = vmatprep.subr.mxu0 0.0
        %526 = vmatpush1.msra.mxu0 0.0
        %527 = vmatprep.subr.mxu0 0.0
        %528 = vmatpush1.msra.mxu0 0.0
        %529 = vmatprep.subr.mxu0 0.0
        %530 = vmatpush1.msra.mxu0 0.0
        %531 = vmatprep.subr.mxu0 0.0
        %532 = vmatpush1.msra.mxu0 0.0
        %533 = vmatprep.subr.mxu0 0.0
        %534 = vmatpush1.msra.mxu0 0.0
        %535 = vmatprep.subr.mxu0 0.0
        %536 = vmatpush1.msra.mxu0 0.0
        %537 = vmatprep.mubr.f32.mxu0 0.0
        %538 = vmatmul.mubr.f32.gmra.mrb[0].mxu0 %v469
        %v539 = vpop.f32.mrb[0].mxu0
        %v540 = vadd.f32 0.0, %v539
        %v541 = vpop.f32.mrb[0].mxu0
        %542 = vdwg.mxu0
        %v543 = vadd.f32 %v472, %v540
        %v544 = vtanh.pop %v543
        %s545 = scalar_lea.vmem %s229, 8
        %546 = vst [vmem:[%s545] sm:$0xff] %v544
        %s547 = scalar_lea.vmem [#allocation2], 16
        %v548 = vld [vmem:[%s547] sm:$0xff]
        %549 = vmatprep.subr.mxu0 0.0
        %550 = vmatpush1.msra.mxu0 %v380
        %551 = vmatprep.subr.mxu0 0.0
        %552 = vmatpush1.msra.mxu0 %v381
        %553 = vmatprep.subr.mxu0 0.0
        %554 = vmatpush1.msra.mxu0 %v382
        %555 = vmatprep.subr.mxu0 0.0
        %556 = vmatpush1.msra.mxu0 %v383
        %557 = vmatprep.subr.mxu0 0.0
        %558 = vmatpush1.msra.mxu0 %v384
        %559 = vmatprep.subr.mxu0 0.0
        %560 = vmatpush1.msra.mxu0 %v385
        %561 = vmatprep.subr.mxu0 0.0
        %562 = vmatpush1.msra.mxu0 %v386
        %563 = vmatprep.subr.mxu0 0.0
        %564 = vmatpush1.msra.mxu0 %v387
        %565 = vmatprep.subr.mxu0 0.0
        %566 = vmatpush1.msra.mxu0 %v388
        %567 = vmatprep.subr.mxu0 0.0
        %568 = vmatpush1.msra.mxu0 %v389
        %569 = vmatprep.subr.mxu0 0.0
        %570 = vmatpush1.msra.mxu0 %v390
        %571 = vmatprep.subr.mxu0 0.0
        %572 = vmatpush1.msra.mxu0 %v391
        %573 = vmatprep.subr.mxu0 0.0
        %574 = vmatpush1.msra.mxu0 %v392
        %575 = vmatprep.subr.mxu0 0.0
        %576 = vmatpush1.msra.mxu0 %v393
        %577 = vmatprep.subr.mxu0 0.0
        %578 = vmatpush1.msra.mxu0 %v394
        %579 = vmatprep.subr.mxu0 0.0
        %580 = vmatpush1.msra.mxu0 %v395
        %581 = vmatprep.subr.mxu0 0.0
        %582 = vmatpush1.msra.mxu0 0.0
        %583 = vmatprep.subr.mxu0 0.0
        %584 = vmatpush1.msra.mxu0 0.0
        %585 = vmatprep.subr.mxu0 0.0
        %586 = vmatpush1.msra.mxu0 0.0
        %587 = vmatprep.subr.mxu0 0.0
        %588 = vmatpush1.msra.mxu0 0.0
        %589 = vmatprep.subr.mxu0 0.0
        %590 = vmatpush1.msra.mxu0 0.0
        %591 = vmatprep.subr.mxu0 0.0
        %592 = vmatpush1.msra.mxu0 0.0
        %593 = vmatprep.subr.mxu0 0.0
        %594 = vmatpush1.msra.mxu0 0.0
        %595 = vmatprep.subr.mxu0 0.0
        %596 = vmatpush1.msra.mxu0 0.0
        %597 = vmatprep.subr.mxu0 0.0
        %598 = vmatpush1.msra.mxu0 0.0
        %599 = vmatprep.subr.mxu0 0.0
        %600 = vmatpush1.msra.mxu0 0.0
        %601 = vmatprep.subr.mxu0 0.0
        %602 = vmatpush1.msra.mxu0 0.0
        %603 = vmatprep.subr.mxu0 0.0
        %604 = vmatpush1.msra.mxu0 0.0
        %605 = vmatprep.subr.mxu0 0.0
        %606 = vmatpush1.msra.mxu0 0.0
        %607 = vmatprep.subr.mxu0 0.0
        %608 = vmatpush1.msra.mxu0 0.0
        %609 = vmatprep.subr.mxu0 0.0
        %610 = vmatpush1.msra.mxu0 0.0
        %611 = vmatprep.subr.mxu0 0.0
        %612 = vmatpush1.msra.mxu0 0.0
        %613 = vmatprep.mubr.f32.mxu0 0.0
        %614 = vmatmul.mubr.f32.gmra.mrb[0].mxu0 %v544
        %v615 = vpop.f32.mrb[0].mxu0
        %v616 = vadd.f32 0.0, %v615
        %v617 = vpop.f32.mrb[0].mxu0
        %618 = vdwg.mxu0
        %v619 = vadd.f32 %v548, %v616
        %v620 = vtanh.pop %v619
        %s621 = scalar_lea.vmem %s229, 16
        %622 = vst [vmem:[%s621] sm:$0xff] %v620
        %s623 = scalar_lea.vmem [#allocation2], 24
        %v624 = vld [vmem:[%s623] sm:$0xff]
        %625 = vmatprep.subr.mxu0 0.0
        %626 = vmatpush1.msra.mxu0 %v380
        %627 = vmatprep.subr.mxu0 0.0
        %628 = vmatpush1.msra.mxu0 %v381
        %629 = vmatprep.subr.mxu0 0.0
        %630 = vmatpush1.msra.mxu0 %v382
        %631 = vmatprep.subr.mxu0 0.0
        %632 = vmatpush1.msra.mxu0 %v383
        %633 = vmatprep.subr.mxu0 0.0
        %634 = vmatpush1.msra.mxu0 %v384
        %635 = vmatprep.subr.mxu0 0.0
        %636 = vmatpush1.msra.mxu0 %v385
        %637 = vmatprep.subr.mxu0 0.0
        %638 = vmatpush1.msra.mxu0 %v386
        %639 = vmatprep.subr.mxu0 0.0
        %640 = vmatpush1.msra.mxu0 %v387
        %641 = vmatprep.subr.mxu0 0.0
        %642 = vmatpush1.msra.mxu0 %v388
        %643 = vmatprep.subr.mxu0 0.0
        %644 = vmatpush1.msra.mxu0 %v389
        %645 = vmatprep.subr.mxu0 0.0
        %646 = vmatpush1.msra.mxu0 %v390
        %647 = vmatprep.subr.mxu0 0.0
        %648 = vmatpush1.msra.mxu0 %v391
        %649 = vmatprep.subr.mxu0 0.0
        %650 = vmatpush1.msra.mxu0 %v392
        %651 = vmatprep.subr.mxu0 0.0
        %652 = vmatpush1.msra.mxu0 %v393
        %653 = vmatprep.subr.mxu0 0.0
        %654 = vmatpush1.msra.mxu0 %v394
        %655 = vmatprep.subr.mxu0 0.0
        %656 = vmatpush1.msra.mxu0 %v395
        %657 = vmatprep.subr.mxu0 0.0
        %658 = vmatpush1.msra.mxu0 0.0
        %659 = vmatprep.subr.mxu0 0.0
        %660 = vmatpush1.msra.mxu0 0.0
        %661 = vmatprep.subr.mxu0 0.0
        %662 = vmatpush1.msra.mxu0 0.0
        %663 = vmatprep.subr.mxu0 0.0
        %664 = vmatpush1.msra.mxu0 0.0
        %665 = vmatprep.subr.mxu0 0.0
        %666 = vmatpush1.msra.mxu0 0.0
        %667 = vmatprep.subr.mxu0 0.0
        %668 = vmatpush1.msra.mxu0 0.0
        %669 = vmatprep.subr.mxu0 0.0
        %670 = vmatpush1.msra.mxu0 0.0
        %671 = vmatprep.subr.mxu0 0.0
        %672 = vmatpush1.msra.mxu0 0.0
        %673 = vmatprep.subr.mxu0 0.0
        %674 = vmatpush1.msra.mxu0 0.0
        %675 = vmatprep.subr.mxu0 0.0
        %676 = vmatpush1.msra.mxu0 0.0
        %677 = vmatprep.subr.mxu0 0.0
        %678 = vmatpush1.msra.mxu0 0.0
        %679 = vmatprep.subr.mxu0 0.0
        %680 = vmatpush1.msra.mxu0 0.0
        %681 = vmatprep.subr.mxu0 0.0
        %682 = vmatpush1.msra.mxu0 0.0
        %683 = vmatprep.subr.mxu0 0.0
        %684 = vmatpush1.msra.mxu0 0.0
        %685 = vmatprep.subr.mxu0 0.0
        %686 = vmatpush1.msra.mxu0 0.0
        %687 = vmatprep.subr.mxu0 0.0
        %688 = vmatpush1.msra.mxu0 0.0
        %689 = vmatprep.mubr.f32.mxu0 0.0
        %690 = vmatmul.mubr.f32.gmra.mrb[0].mxu0 %v620
        %v691 = vpop.f32.mrb[0].mxu0
        %v692 = vadd.f32 0.0, %v691
        %v693 = vpop.f32.mrb[0].mxu0
        %694 = vdwg.mxu0
        %v695 = vadd.f32 %v624, %v692
        %v696 = vtanh.pop %v695
        %s697 = scalar_lea.vmem %s229, 24
        %698 = vst [vmem:[%s697] sm:$0xff] %v696
        %s699 = scalar_lea.vmem [#allocation2], 32
        %v700 = vld [vmem:[%s699] sm:$0xff]
        %701 = vmatprep.subr.mxu0 0.0
        %702 = vmatpush1.msra.mxu0 %v380
        %703 = vmatprep.subr.mxu0 0.0
        %704 = vmatpush1.msra.mxu0 %v381
        %705 = vmatprep.subr.mxu0 0.0
        %706 = vmatpush1.msra.mxu0 %v382
        %707 = vmatprep.subr.mxu0 0.0
        %708 = vmatpush1.msra.mxu0 %v383
        %709 = vmatprep.subr.mxu0 0.0
        %710 = vmatpush1.msra.mxu0 %v384
        %711 = vmatprep.subr.mxu0 0.0
        %712 = vmatpush1.msra.mxu0 %v385
        %713 = vmatprep.subr.mxu0 0.0
        %714 = vmatpush1.msra.mxu0 %v386
        %715 = vmatprep.subr.mxu0 0.0
        %716 = vmatpush1.msra.mxu0 %v387
        %717 = vmatprep.subr.mxu0 0.0
        %718 = vmatpush1.msra.mxu0 %v388
        %719 = vmatprep.subr.mxu0 0.0
        %720 = vmatpush1.msra.mxu0 %v389
        %721 = vmatprep.subr.mxu0 0.0
        %722 = vmatpush1.msra.mxu0 %v390
        %723 = vmatprep.subr.mxu0 0.0
        %724 = vmatpush1.msra.mxu0 %v391
        %725 = vmatprep.subr.mxu0 0.0
        %726 = vmatpush1.msra.mxu0 %v392
        %727 = vmatprep.subr.mxu0 0.0
        %728 = vmatpush1.msra.mxu0 %v393
        %729 = vmatprep.subr.mxu0 0.0
        %730 = vmatpush1.msra.mxu0 %v394
        %731 = vmatprep.subr.mxu0 0.0
        %732 = vmatpush1.msra.mxu0 %v395
        %733 = vmatprep.subr.mxu0 0.0
        %734 = vmatpush1.msra.mxu0 0.0
        %735 = vmatprep.subr.mxu0 0.0
        %736 = vmatpush1.msra.mxu0 0.0
        %737 = vmatprep.subr.mxu0 0.0
        %738 = vmatpush1.msra.mxu0 0.0
        %739 = vmatprep.subr.mxu0 0.0
        %740 = vmatpush1.msra.mxu0 0.0
        %741 = vmatprep.subr.mxu0 0.0
        %742 = vmatpush1.msra.mxu0 0.0
        %743 = vmatprep.subr.mxu0 0.0
        %744 = vmatpush1.msra.mxu0 0.0
        %745 = vmatprep.subr.mxu0 0.0
        %746 = vmatpush1.msra.mxu0 0.0
        %747 = vmatprep.subr.mxu0 0.0
        %748 = vmatpush1.msra.mxu0 0.0
        %749 = vmatprep.subr.mxu0 0.0
        %750 = vmatpush1.msra.mxu0 0.0
        %751 = vmatprep.subr.mxu0 0.0
        %752 = vmatpush1.msra.mxu0 0.0
        %753 = vmatprep.subr.mxu0 0.0
        %754 = vmatpush1.msra.mxu0 0.0
        %755 = vmatprep.subr.mxu0 0.0
        %756 = vmatpush1.msra.mxu0 0.0
        %757 = vmatprep.subr.mxu0 0.0
        %758 = vmatpush1.msra.mxu0 0.0
        %759 = vmatprep.subr.mxu0 0.0
        %760 = vmatpush1.msra.mxu0 0.0
        %761 = vmatprep.subr.mxu0 0.0
        %762 = vmatpush1.msra.mxu0 0.0
        %763 = vmatprep.subr.mxu0 0.0
        %764 = vmatpush1.msra.mxu0 0.0
        %765 = vmatprep.mubr.f32.mxu0 0.0
        %766 = vmatmul.mubr.f32.gmra.mrb[0].mxu0 %v696
        %v767 = vpop.f32.mrb[0].mxu0
        %v768 = vadd.f32 0.0, %v767
        %v769 = vpop.f32.mrb[0].mxu0
        %770 = vdwg.mxu0
        %v771 = vadd.f32 %v700, %v768
        %v772 = vtanh.pop %v771
        %s773 = scalar_lea.vmem %s229, 32
        %774 = vst [vmem:[%s773] sm:$0xff] %v772
        %s775 = scalar_lea.vmem [#allocation2], 40
        %v776 = vld [vmem:[%s775] sm:$0xff]
        %777 = vmatprep.subr.mxu0 0.0
        %778 = vmatpush1.msra.mxu0 %v380
        %779 = vmatprep.subr.mxu0 0.0
        %780 = vmatpush1.msra.mxu0 %v381
        %781 = vmatprep.subr.mxu0 0.0
        %782 = vmatpush1.msra.mxu0 %v382
        %783 = vmatprep.subr.mxu0 0.0
        %784 = vmatpush1.msra.mxu0 %v383
        %785 = vmatprep.subr.mxu0 0.0
        %786 = vmatpush1.msra.mxu0 %v384
        %787 = vmatprep.subr.mxu0 0.0
        %788 = vmatpush1.msra.mxu0 %v385
        %789 = vmatprep.subr.mxu0 0.0
        %790 = vmatpush1.msra.mxu0 %v386
        %791 = vmatprep.subr.mxu0 0.0
        %792 = vmatpush1.msra.mxu0 %v387
        %793 = vmatprep.subr.mxu0 0.0
        %794 = vmatpush1.msra.mxu0 %v388
        %795 = vmatprep.subr.mxu0 0.0
        %796 = vmatpush1.msra.mxu0 %v389
        %797 = vmatprep.subr.mxu0 0.0
        %798 = vmatpush1.msra.mxu0 %v390
        %799 = vmatprep.subr.mxu0 0.0
        %800 = vmatpush1.msra.mxu0 %v391
        %801 = vmatprep.subr.mxu0 0.0
        %802 = vmatpush1.msra.mxu0 %v392
        %803 = vmatprep.subr.mxu0 0.0
        %804 = vmatpush1.msra.mxu0 %v393
        %805 = vmatprep.subr.mxu0 0.0
        %806 = vmatpush1.msra.mxu0 %v394
        %807 = vmatprep.subr.mxu0 0.0
        %808 = vmatpush1.msra.mxu0 %v395
        %809 = vmatprep.subr.mxu0 0.0
        %810 = vmatpush1.msra.mxu0 0.0
        %811 = vmatprep.subr.mxu0 0.0
        %812 = vmatpush1.msra.mxu0 0.0
        %813 = vmatprep.subr.mxu0 0.0
        %814 = vmatpush1.msra.mxu0 0.0
        %815 = vmatprep.subr.mxu0 0.0
        %816 = vmatpush1.msra.mxu0 0.0
        %817 = vmatprep.subr.mxu0 0.0
        %818 = vmatpush1.msra.mxu0 0.0
        %819 = vmatprep.subr.mxu0 0.0
        %820 = vmatpush1.msra.mxu0 0.0
        %821 = vmatprep.subr.mxu0 0.0
        %822 = vmatpush1.msra.mxu0 0.0
        %823 = vmatprep.subr.mxu0 0.0
        %824 = vmatpush1.msra.mxu0 0.0
        %825 = vmatprep.subr.mxu0 0.0
        %826 = vmatpush1.msra.mxu0 0.0
        %827 = vmatprep.subr.mxu0 0.0
        %828 = vmatpush1.msra.mxu0 0.0
        %829 = vmatprep.subr.mxu0 0.0
        %830 = vmatpush1.msra.mxu0 0.0
        %831 = vmatprep.subr.mxu0 0.0
        %832 = vmatpush1.msra.mxu0 0.0
        %833 = vmatprep.subr.mxu0 0.0
        %834 = vmatpush1.msra.mxu0 0.0
        %835 = vmatprep.subr.mxu0 0.0
        %836 = vmatpush1.msra.mxu0 0.0
        %837 = vmatprep.subr.mxu0 0.0
        %838 = vmatpush1.msra.mxu0 0.0
        %839 = vmatprep.subr.mxu0 0.0
        %840 = vmatpush1.msra.mxu0 0.0
        %841 = vmatprep.mubr.f32.mxu0 0.0
        %842 = vmatmul.mubr.f32.gmra.mrb[0].mxu0 %v772
        %v843 = vpop.f32.mrb[0].mxu0
        %v844 = vadd.f32 0.0, %v843
        %v845 = vpop.f32.mrb[0].mxu0
        %846 = vdwg.mxu0
        %v847 = vadd.f32 %v776, %v844
        %v848 = vtanh.pop %v847
        %s849 = scalar_lea.vmem %s229, 40
        %850 = vst [vmem:[%s849] sm:$0xff] %v848
        %s851 = scalar_lea.vmem [#allocation2], 48
        %v852 = vld [vmem:[%s851] sm:$0xff]
        %853 = vmatprep.subr.mxu0 0.0
        %854 = vmatpush1.msra.mxu0 %v380
        %855 = vmatprep.subr.mxu0 0.0
        %856 = vmatpush1.msra.mxu0 %v381
        %857 = vmatprep.subr.mxu0 0.0
        %858 = vmatpush1.msra.mxu0 %v382
        %859 = vmatprep.subr.mxu0 0.0
        %860 = vmatpush1.msra.mxu0 %v383
        %861 = vmatprep.subr.mxu0 0.0
        %862 = vmatpush1.msra.mxu0 %v384
        %863 = vmatprep.subr.mxu0 0.0
        %864 = vmatpush1.msra.mxu0 %v385
        %865 = vmatprep.subr.mxu0 0.0
        %866 = vmatpush1.msra.mxu0 %v386
        %867 = vmatprep.subr.mxu0 0.0
        %868 = vmatpush1.msra.mxu0 %v387
        %869 = vmatprep.subr.mxu0 0.0
        %870 = vmatpush1.msra.mxu0 %v388
        %871 = vmatprep.subr.mxu0 0.0
        %872 = vmatpush1.msra.mxu0 %v389
        %873 = vmatprep.subr.mxu0 0.0
        %874 = vmatpush1.msra.mxu0 %v390
        %875 = vmatprep.subr.mxu0 0.0
        %876 = vmatpush1.msra.mxu0 %v391
        %877 = vmatprep.subr.mxu0 0.0
        %878 = vmatpush1.msra.mxu0 %v392
        %879 = vmatprep.subr.mxu0 0.0
        %880 = vmatpush1.msra.mxu0 %v393
        %881 = vmatprep.subr.mxu0 0.0
        %882 = vmatpush1.msra.mxu0 %v394
        %883 = vmatprep.subr.mxu0 0.0
        %884 = vmatpush1.msra.mxu0 %v395
        %885 = vmatprep.subr.mxu0 0.0
        %886 = vmatpush1.msra.mxu0 0.0
        %887 = vmatprep.subr.mxu0 0.0
        %888 = vmatpush1.msra.mxu0 0.0
        %889 = vmatprep.subr.mxu0 0.0
        %890 = vmatpush1.msra.mxu0 0.0
        %891 = vmatprep.subr.mxu0 0.0
        %892 = vmatpush1.msra.mxu0 0.0
        %893 = vmatprep.subr.mxu0 0.0
        %894 = vmatpush1.msra.mxu0 0.0
        %895 = vmatprep.subr.mxu0 0.0
        %896 = vmatpush1.msra.mxu0 0.0
        %897 = vmatprep.subr.mxu0 0.0
        %898 = vmatpush1.msra.mxu0 0.0
        %899 = vmatprep.subr.mxu0 0.0
        %900 = vmatpush1.msra.mxu0 0.0
        %901 = vmatprep.subr.mxu0 0.0
        %902 = vmatpush1.msra.mxu0 0.0
        %903 = vmatprep.subr.mxu0 0.0
        %904 = vmatpush1.msra.mxu0 0.0
        %905 = vmatprep.subr.mxu0 0.0
        %906 = vmatpush1.msra.mxu0 0.0
        %907 = vmatprep.subr.mxu0 0.0
        %908 = vmatpush1.msra.mxu0 0.0
        %909 = vmatprep.subr.mxu0 0.0
        %910 = vmatpush1.msra.mxu0 0.0
        %911 = vmatprep.subr.mxu0 0.0
        %912 = vmatpush1.msra.mxu0 0.0
        %913 = vmatprep.subr.mxu0 0.0
        %914 = vmatpush1.msra.mxu0 0.0
        %915 = vmatprep.subr.mxu0 0.0
        %916 = vmatpush1.msra.mxu0 0.0
        %917 = vmatprep.mubr.f32.mxu0 0.0
        %918 = vmatmul.mubr.f32.gmra.mrb[0].mxu0 %v848
        %v919 = vpop.f32.mrb[0].mxu0
        %v920 = vadd.f32 0.0, %v919
        %v921 = vpop.f32.mrb[0].mxu0
        %922 = vdwg.mxu0
        %v923 = vadd.f32 %v852, %v920
        %v924 = vtanh.pop %v923
        %s925 = scalar_lea.vmem %s229, 48
        %926 = vst [vmem:[%s925] sm:$0xff] %v924
        %s927 = scalar_lea.vmem [#allocation2], 56
        %v928 = vld [vmem:[%s927] sm:$0xff]
        %929 = vmatprep.subr.mxu0 0.0
        %930 = vmatpush1.msra.mxu0 %v380
        %931 = vmatprep.subr.mxu0 0.0
        %932 = vmatpush1.msra.mxu0 %v381
        %933 = vmatprep.subr.mxu0 0.0
        %934 = vmatpush1.msra.mxu0 %v382
        %935 = vmatprep.subr.mxu0 0.0
        %936 = vmatpush1.msra.mxu0 %v383
        %937 = vmatprep.subr.mxu0 0.0
        %938 = vmatpush1.msra.mxu0 %v384
        %939 = vmatprep.subr.mxu0 0.0
        %940 = vmatpush1.msra.mxu0 %v385
        %941 = vmatprep.subr.mxu0 0.0
        %942 = vmatpush1.msra.mxu0 %v386
        %943 = vmatprep.subr.mxu0 0.0
        %944 = vmatpush1.msra.mxu0 %v387
        %945 = vmatprep.subr.mxu0 0.0
        %946 = vmatpush1.msra.mxu0 %v388
        %947 = vmatprep.subr.mxu0 0.0
        %948 = vmatpush1.msra.mxu0 %v389
        %949 = vmatprep.subr.mxu0 0.0
        %950 = vmatpush1.msra.mxu0 %v390
        %951 = vmatprep.subr.mxu0 0.0
        %952 = vmatpush1.msra.mxu0 %v391
        %953 = vmatprep.subr.mxu0 0.0
        %954 = vmatpush1.msra.mxu0 %v392
        %955 = vmatprep.subr.mxu0 0.0
        %956 = vmatpush1.msra.mxu0 %v393
        %957 = vmatprep.subr.mxu0 0.0
        %958 = vmatpush1.msra.mxu0 %v394
        %959 = vmatprep.subr.mxu0 0.0
        %960 = vmatpush1.msra.mxu0 %v395
        %961 = vmatprep.subr.mxu0 0.0
        %962 = vmatpush1.msra.mxu0 0.0
        %963 = vmatprep.subr.mxu0 0.0
        %964 = vmatpush1.msra.mxu0 0.0
        %965 = vmatprep.subr.mxu0 0.0
        %966 = vmatpush1.msra.mxu0 0.0
        %967 = vmatprep.subr.mxu0 0.0
        %968 = vmatpush1.msra.mxu0 0.0
        %969 = vmatprep.subr.mxu0 0.0
        %970 = vmatpush1.msra.mxu0 0.0
        %971 = vmatprep.subr.mxu0 0.0
        %972 = vmatpush1.msra.mxu0 0.0
        %973 = vmatprep.subr.mxu0 0.0
        %974 = vmatpush1.msra.mxu0 0.0
        %975 = vmatprep.subr.mxu0 0.0
        %976 = vmatpush1.msra.mxu0 0.0
        %977 = vmatprep.subr.mxu0 0.0
        %978 = vmatpush1.msra.mxu0 0.0
        %979 = vmatprep.subr.mxu0 0.0
        %980 = vmatpush1.msra.mxu0 0.0
        %981 = vmatprep.subr.mxu0 0.0
        %982 = vmatpush1.msra.mxu0 0.0
        %983 = vmatprep.subr.mxu0 0.0
        %984 = vmatpush1.msra.mxu0 0.0
        %985 = vmatprep.subr.mxu0 0.0
        %986 = vmatpush1.msra.mxu0 0.0
        %987 = vmatprep.subr.mxu0 0.0
        %988 = vmatpush1.msra.mxu0 0.0
        %989 = vmatprep.subr.mxu0 0.0
        %990 = vmatpush1.msra.mxu0 0.0
        %991 = vmatprep.subr.mxu0 0.0
        %992 = vmatpush1.msra.mxu0 0.0
        %993 = vmatprep.mubr.f32.mxu0 0.0
        %994 = vmatmul.mubr.f32.gmra.mrb[0].mxu0 %v924
        %v995 = vpop.f32.mrb[0].mxu0
        %v996 = vadd.f32 0.0, %v995
        %v997 = vpop.f32.mrb[0].mxu0
        %998 = vdwg.mxu0
        %v999 = vadd.f32 %v928, %v996
        %v1000 = vtanh.pop %v999
        %s1001 = scalar_lea.vmem %s229, 56
        %1002 = vst [vmem:[%s1001] sm:$0xff] %v1000
        %1003 = vst [vmem:[#allocation3] sm:$0xff] %v1000
        %s1004 = smul.u32 8, %s17
        %p1005 = scmp.lt.s32.totalorder %s1004, 31
        %s1006 = scalar_select %p1005, %s1004, 31
        %s1007 = smul.addr %s1006, 8
        %s1008 = scalar_lea.vmem %s4, %s1007
        // Predicated region
        $region49: #{lm_rnn_forward.2} parent=35 // pred_check
          %p1009 = pneg %p124
        $region50: #{lm_rnn_forward.2} parent=35 // pred_check_branch
          %1011 = sbr.rel (%p1009) target = $region52
        $region51: #{lm_rnn_forward.2} parent=35 // pred_region
          %s1012 = smul.u32 8, %s17
        $region52: #{lm_rnn_forward.2} parent=35 // pred_fallthru
          _
      $region36: #{lm_rnn_forward.2} parent=5 // pred_fallthru
        _
      %p1013 = scmp.le.s32.totalorder 2, %s12
      // Predicated region
      $region53: #{lm_rnn_forward.2} parent=5 // pred_check
        %p1014 = pneg %p1013
      $region54: #{lm_rnn_forward.2} parent=5 // pred_check_branch
        %1016 = sbr.rel (%p1014) target = $region56
      $region55: #{lm_rnn_forward.2} parent=5 // pred_region
        %s1017 = ssub.s32 %s12, 2
        // Predicated region
        $region57: #{lm_rnn_forward.2} parent=55 // pred_check
          %p1018 = pneg %p130
        $region58: #{lm_rnn_forward.2} parent=55 // pred_check_branch
          %1020 = sbr.rel (%p1018) target = $region60
        $region59: #{lm_rnn_forward.2} parent=55 // pred_region
          %s1021 = smul.u32 8, %s18
          %p1022 = scmp.lt.s32.totalorder %s1021, 31
          %s1023 = scalar_select %p1022, %s1021, 31
          %s1024 = smul.addr %s1023, 8
          %s1025 = scalar_lea.vmem %s4, %s1024
        $region60: #{lm_rnn_forward.2} parent=55 // pred_fallthru
          _
      $region56: #{lm_rnn_forward.2} parent=5 // pred_fallthru
        _
    $region6: #{lm_rnn_forward.2} parent=1 // loop_footer
      %s16 = sadd.s32 1, %s12
    $region7: #{lm_rnn_forward.2} parent=1 // loop_footer_branch
      %11 = sbr.rel target = $region3
    $region8: #{lm_rnn_forward.2} parent=1 // loop_exit
      _
    %1026 = vsyncpa [#allocation5], 1
    %s1027 = scalar_lea.sflag [#allocation5], 1
    %1028 = vsyncpa %s1027, 1
    %1029 = vsyncpa [#allocation7], 1

</llo_original>
